<compile_context>
chip_gen: v7x
topology: tpu7x:2x2x1
jax: 0.10.0
libtpu: 0.0.40
codegen_flags: <defaults>
</compile_context>

<pallas_src>
import jax
import jax.numpy as jnp
import numpy as np
from jax.experimental import pallas as pl
from jax.experimental.pallas import tpu as pltpu

# ---------------- config (small, deterministic) ----------------
USER_ID_DIM = 8
ITEM_ID_DIM = 8
CATE_ID_DIM = 8
EMB_DIM = ITEM_ID_DIM + CATE_ID_DIM            # item_feat_size = 16
ATTN_HID = (64, 16)                            # LocalActivationUnit hidden_unit
FC_HID = (64, 16, 1)                           # config['hid_units'] (last must be 1)
TOTAL_DIM = USER_ID_DIM + 2 * EMB_DIM          # 40

N_USERS = 10                                   # agent_num + 1
MAX_ITEM = 50                                  # max_item_num
N_CATES = 9                                    # cates_num + 1


# ---------------- Pallas kernel ----------------
def policy_kernel(item_ref, user_ref, his_ref, cmask_ref,
                  attn_w_ref, score_w_ref, fc1_w_ref, fc2_w_ref, fc3_w_ref,
                  out_ref):
    ie = item_ref[...]                      # (R, D)   candidate item embeddings, R = TB*N
    ue = user_ref[...]                      # (R, Du)  user embeddings (repeated per candidate)
    ub = his_ref[...]                       # (R*L, D) history embeddings (already history-masked)
    cmask = cmask_ref[...]                  # (TB, N, 1) additive candidate mask (0 or -inf)

    R, D = ie.shape
    Du = ue.shape[1]
    RL = ub.shape[0]
    L = RL // R
    TB, N, _ = cmask.shape

    aw = attn_w_ref[...]                    # (3D+1, H1): [Wq; Wub; Wqub; bias]
    sw = score_w_ref[...]                   # (H1+1, 1):  [wa2@wa3; bias]
    f1 = fc1_w_ref[...]                     # (2D+Du+1, H1): [Wi; Wb; Wu; bias]
    f2 = fc2_w_ref[...]                     # (H1+1, H2): [wf2; bias]
    f3 = fc3_w_ref[...]                     # (H2+1, 1):  [wf3; bias]
    H1 = sw.shape[0] - 1
    H2 = f3.shape[0] - 1

    f32 = jnp.float32

    # ---- LocalActivationUnit with folded weights:
    #      [q, ub, q-ub, q*ub] @ Wa1 == q@(W1+W3) + ub@(W2-W3) + (q*ub)@W4
    q = jnp.broadcast_to(ie[:, None, :], (R, L, D)).reshape(RL, D)
    h = (jnp.dot(q, aw[0:D], preferred_element_type=f32)
         + jnp.dot(ub, aw[D:2 * D], preferred_element_type=f32)
         + jnp.dot(q * ub, aw[2 * D:3 * D], preferred_element_type=f32)
         + aw[3 * D:3 * D + 1])
    h = jnp.maximum(h, 0.0)
    # fc1's second linear and fc2 are folded into one (H1, 1) matrix (no nonlinearity between)
    score = jnp.dot(h, sw[0:H1], preferred_element_type=f32) + sw[H1:H1 + 1]      # (RL, 1)

    # ---- masked attention pooling (history mask already folded into ub) ----
    browse = (score * ub).reshape(R, L, D).sum(axis=1)                            # (R, D)

    # ---- FC tower; first layer folded so no [item, browse, user] lane-concat ----
    z = (jnp.dot(ie, f1[0:D], preferred_element_type=f32)
         + jnp.dot(browse, f1[D:2 * D], preferred_element_type=f32)
         + jnp.dot(ue, f1[2 * D:2 * D + Du], preferred_element_type=f32)
         + f1[2 * D + Du:2 * D + Du + 1])
    z = jnp.maximum(z, 0.0)
    z = jnp.maximum(jnp.dot(z, f2[0:H1], preferred_element_type=f32) + f2[H1:H1 + 1], 0.0)
    logit = jnp.dot(z, f3[0:H2], preferred_element_type=f32) + f3[H2:H2 + 1]      # (R, 1)
    logit = jax.nn.sigmoid(logit)

    # ---- candidate mask (-inf additive) + softmax over the N candidates per batch row ----
    lg = logit.reshape(TB, N, 1) + cmask
    m = jnp.max(lg, axis=1, keepdims=True)
    e = jnp.exp(lg - m)
    out_ref[...] = e / jnp.sum(e, axis=1, keepdims=True)                          # (TB, N, 1)


# ---------------- wrapper ----------------
def policy_forward(params, user, items, items_cate, interest_items, interest_items_cate,
                   *, block_b=None):
    B, N = items.shape
    L = interest_items.shape[-1]
    D, Du = EMB_DIM, USER_ID_DIM

    # batch tile: multiple of 8 sublanes, capped so intermediates stay well inside VMEM
    # (re-derive the cap for v7x's smaller VMEM if you raise it).
    if block_b is None:
        block_b = min(32, ((B + 7) // 8) * 8)
    TB = block_b
    G = -(-B // TB)            # number of grid steps
    Bp = G * TB
    pad = Bp - B

    # --- glue: embedding gathers (data-dependent gather stays in plain JAX) ---
    user_emb = params["user_table"][user]                                             # (B, N, Du)
    item_emb = jnp.concatenate([params["item_table"][items],
                                params["cate_table"][items_cate]], axis=-1)           # (B, N, D)
    his_emb = jnp.concatenate([params["item_table"][interest_items],
                               params["cate_table"][interest_items_cate]], axis=-1)   # (B, N, L, D)

    # fold the history mask into the history embeddings: masked positions then
    # contribute score * 0 in the pooling, exactly like masking the score itself.
    his_emb = his_emb * (interest_items != 0)[..., None].astype(his_emb.dtype)

    # additive candidate mask; padded batch rows stay 0.0 (valid) so no NaN scratch
    addmask = jnp.where(items == 0, -jnp.inf, 0.0).astype(jnp.float32)                # (B, N)

    if pad:
        item_emb = jnp.pad(item_emb, ((0, pad), (0, 0), (0, 0)))
        user_emb = jnp.pad(user_emb, ((0, pad), (0, 0), (0, 0)))
        his_emb = jnp.pad(his_emb, ((0, pad), (0, 0), (0, 0), (0, 0)))
        addmask = jnp.pad(addmask, ((0, pad), (0, 0)))

    item_f = item_emb.reshape(Bp * N, D)
    user_f = user_emb.reshape(Bp * N, Du)
    his_f = his_emb.reshape(Bp * N * L, D)
    cmask = addmask.reshape(Bp, N, 1)

    # ---- fold weights once (exact algebra; no nonlinearity is crossed) ----
    wa1, ba1 = params["wa1"], params["ba1"]
    attn_w = jnp.concatenate([wa1[0:D] + wa1[2 * D:3 * D],        # acts on q
                              wa1[D:2 * D] - wa1[2 * D:3 * D],    # acts on ub
                              wa1[3 * D:4 * D],                   # acts on q*ub
                              ba1], axis=0)                       # (3D+1, 64)
    wa23 = params["wa2"] @ params["wa3"]
    ba23 = params["ba2"] @ params["wa3"] + params["ba3"]
    score_w = jnp.concatenate([wa23, ba23], axis=0)               # (65, 1)
    fc1_w = jnp.concatenate([params["wf1"], params["bf1"]], axis=0)   # (41, 64)
    fc2_w = jnp.concatenate([params["wf2"], params["bf2"]], axis=0)   # (65, 16)
    fc3_w = jnp.concatenate([params["wf3"], params["bf3"]], axis=0)   # (17, 1)
    weights = [attn_w, score_w, fc1_w, fc2_w, fc3_w]

    in_specs = [
        pl.BlockSpec((TB * N, D), lambda g: (g, 0)),          # item embeddings
        pl.BlockSpec((TB * N, Du), lambda g: (g, 0)),         # user embeddings
        pl.BlockSpec((TB * N * L, D), lambda g: (g, 0)),      # history embeddings (masked)
        pl.BlockSpec((TB, N, 1), lambda g: (g, 0, 0)),        # additive candidate mask
    ] + [pl.BlockSpec(w.shape, lambda g: (0, 0)) for w in weights]

    out = pl.pallas_call(
        policy_kernel,
        out_shape=jax.ShapeDtypeStruct((Bp, N, 1), jnp.float32),
        grid=(G,),
        in_specs=in_specs,
        out_specs=pl.BlockSpec((TB, N, 1), lambda g: (g, 0, 0)),
        compiler_params=pltpu.CompilerParams(dimension_semantics=("parallel",)),
    )(item_f, user_f, his_f, cmask, *weights)

    return out.reshape(Bp, N)[:B]


# ---------------- pure-JAX reference (mirrors the torch forward) ----------------
def reference_forward(params, user, items, items_cate, interest_items, interest_items_cate):
    user_emb = params["user_table"][user]
    item_emb = jnp.concatenate([params["item_table"][items],
                                params["cate_table"][items_cate]], -1)
    his_emb = jnp.concatenate([params["item_table"][interest_items],
                               params["cate_table"][interest_items_cate]], -1)
    mask = interest_items == 0
    B, N, L, D = his_emb.shape
    q = jnp.broadcast_to(item_emb[:, :, None, :], (B, N, L, D))
    ai = jnp.concatenate([q, his_emb, q - his_emb, q * his_emb], -1)
    h = jax.nn.relu(ai @ params["wa1"] + params["ba1"][0])
    h = h @ params["wa2"] + params["ba2"][0]
    score = h @ params["wa3"] + params["ba3"][0]                 # (B, N, L, 1)
    score = jnp.transpose(score, (0, 1, 3, 2))                   # (B, N, 1, L)
    score = jnp.where(mask[:, :, None, :], 0.0, score)
    browse = jnp.matmul(score, his_emb)[:, :, 0, :]              # (B, N, D)
    feat = jnp.concatenate([item_emb, browse, user_emb], -1)
    z = jax.nn.relu(feat @ params["wf1"] + params["bf1"][0])
    z = jax.nn.relu(z @ params["wf2"] + params["bf2"][0])
    z = jax.nn.sigmoid(z @ params["wf3"] + params["bf3"][0])[..., 0]
    z = jnp.where(items == 0, -jnp.inf, z)
    return jax.nn.softmax(z, axis=-1)


# ---------------- deterministic parameter init ----------------
def init_params(seed=0):
    key = jax.random.PRNGKey(seed)
    ks = jax.random.split(key, 16)

    def xavier(k, shape):
        lim = (6.0 / (shape[0] + shape[-1])) ** 0.5
        return jax.random.uniform(k, shape, jnp.float32, -lim, lim)

    def bias(k, fan_in, out):
        lim = 1.0 / (fan_in ** 0.5)
        return jax.random.uniform(k, (1, out), jnp.float32, -lim, lim)

    p = {}
    p["user_table"] = xavier(ks[0], (N_USERS, USER_ID_DIM)).at[0].set(0.0)
    p["item_table"] = xavier(ks[1], (MAX_ITEM, ITEM_ID_DIM)).at[0].set(0.0)
    p["cate_table"] = xavier(ks[2], (N_CATES, CATE_ID_DIM)).at[0].set(0.0)

    # LocalActivationUnit: fc1 = Linear(4D, 64) -> ReLU -> Linear(64, 16); fc2 = Linear(16, 1)
    p["wa1"] = xavier(ks[3], (4 * EMB_DIM, ATTN_HID[0]));  p["ba1"] = bias(ks[4], 4 * EMB_DIM, ATTN_HID[0])
    p["wa2"] = xavier(ks[5], (ATTN_HID[0], ATTN_HID[1]));  p["ba2"] = bias(ks[6], ATTN_HID[0], ATTN_HID[1])
    p["wa3"] = xavier(ks[7], (ATTN_HID[1], 1));            p["ba3"] = bias(ks[8], ATTN_HID[1], 1)

    # fc_layer: Linear(40,64) -> ReLU -> Linear(64,16) -> ReLU -> Linear(16,1) -> Sigmoid
    p["wf1"] = xavier(ks[9], (TOTAL_DIM, FC_HID[0]));      p["bf1"] = bias(ks[10], TOTAL_DIM, FC_HID[0])
    p["wf2"] = xavier(ks[11], (FC_HID[0], FC_HID[1]));     p["bf2"] = bias(ks[12], FC_HID[0], FC_HID[1])
    p["wf3"] = xavier(ks[13], (FC_HID[1], FC_HID[2]));     p["bf3"] = bias(ks[14], FC_HID[1], FC_HID[2])
    return p


if __name__ == "__main__":
    B, N, L = 2, 8, 8
    key = jax.random.PRNGKey(0)
    k1, k2, k3, k4, k5 = jax.random.split(key, 5)

    user = jnp.repeat(jax.random.randint(k1, (B, 1), 1, N_USERS), N, axis=1)          # (B, N)
    items = jax.random.randint(k2, (B, N), 1, MAX_ITEM)                               # (B, N)
    items = items.at[0, -1].set(0)                                                    # exercise candidate padding
    items_cate = jax.random.randint(k3, (B, N), 1, N_CATES)                           # (B, N)
    interest_items = jax.random.randint(k4, (B, N, L), 0, MAX_ITEM)                   # (B, N, L) (0 = pad)
    interest_items_cate = jax.random.randint(k5, (B, N, L), 1, N_CATES)               # (B, N, L)

    params = init_params(seed=0)

    out = policy_forward(params, user, items, items_cate, interest_items, interest_items_cate)
    out = jax.block_until_ready(out)

    ref = reference_forward(params, user, items, items_cate, interest_items, interest_items_cate)
    np.testing.assert_allclose(np.asarray(out), np.asarray(ref), rtol=1e-4, atol=1e-5)
    assert np.allclose(np.asarray(out).sum(-1), 1.0, atol=1e-4)

    print("KERNEL_OK")
</pallas_src>

<mosaic_0001>
module attributes {stable_mosaic.version = 11 : i64} {
  func.func @policy_kernel(%arg0: i32, %arg1: memref<64x16xf32, #tpu.memory_space<vmem>>, %arg2: memref<64x8xf32, #tpu.memory_space<vmem>>, %arg3: memref<512x16xf32, #tpu.memory_space<vmem>>, %arg4: memref<8x8x1xf32, #tpu.memory_space<vmem>>, %arg5: memref<49x64xf32, #tpu.memory_space<vmem>>, %arg6: memref<65x1xf32, #tpu.memory_space<vmem>>, %arg7: memref<41x64xf32, #tpu.memory_space<vmem>>, %arg8: memref<65x16xf32, #tpu.memory_space<vmem>>, %arg9: memref<17x1xf32, #tpu.memory_space<vmem>>, %arg10: memref<8x8x1xf32, #tpu.memory_space<vmem>>) attributes {dimension_semantics = [#tpu.dimension_semantics<parallel>], iteration_bounds = array<i64: 1>, scalar_prefetch = 0 : i64, scratch_operands = 0 : i64, tpu.core_type = #tpu.core_type<tc>, window_params = [{transform_indices = @transform_0, window_bounds = array<i64: 64, 16>}, {transform_indices = @transform_1, window_bounds = array<i64: 64, 8>}, {transform_indices = @transform_2, window_bounds = array<i64: 512, 16>}, {transform_indices = @transform_3, window_bounds = array<i64: 8, 8, 1>}, {pipeline_mode = #tpu.pipeline_mode<synchronous>, transform_indices = @transform_4, window_bounds = array<i64: 49, 64>}, {pipeline_mode = #tpu.pipeline_mode<synchronous>, transform_indices = @transform_5, window_bounds = array<i64: 65, 1>}, {pipeline_mode = #tpu.pipeline_mode<synchronous>, transform_indices = @transform_6, window_bounds = array<i64: 41, 64>}, {pipeline_mode = #tpu.pipeline_mode<synchronous>, transform_indices = @transform_7, window_bounds = array<i64: 65, 16>}, {pipeline_mode = #tpu.pipeline_mode<synchronous>, transform_indices = @transform_8, window_bounds = array<i64: 17, 1>}, {transform_indices = @transform_9, window_bounds = array<i64: 8, 8, 1>}]} {
    %c0 = arith.constant 0 : index
    %c0_0 = arith.constant 0 : index
    %0 = vector.load %arg1[%c0, %c0_0] : memref<64x16xf32, #tpu.memory_space<vmem>>, vector<64x16xf32>
    %c0_1 = arith.constant 0 : index
    %c0_2 = arith.constant 0 : index
    %1 = vector.load %arg2[%c0_1, %c0_2] : memref<64x8xf32, #tpu.memory_space<vmem>>, vector<64x8xf32>
    %c0_3 = arith.constant 0 : index
    %c0_4 = arith.constant 0 : index
    %2 = vector.load %arg3[%c0_3, %c0_4] : memref<512x16xf32, #tpu.memory_space<vmem>>, vector<512x16xf32>
    %c0_5 = arith.constant 0 : index
    %c0_6 = arith.constant 0 : index
    %c0_7 = arith.constant 0 : index
    %3 = vector.load %arg4[%c0_5, %c0_6, %c0_7] : memref<8x8x1xf32, #tpu.memory_space<vmem>>, vector<8x8x1xf32>
    %c0_8 = arith.constant 0 : index
    %c0_9 = arith.constant 0 : index
    %4 = vector.load %arg5[%c0_8, %c0_9] : memref<49x64xf32, #tpu.memory_space<vmem>>, vector<49x64xf32>
    %c0_10 = arith.constant 0 : index
    %c0_11 = arith.constant 0 : index
    %5 = vector.load %arg6[%c0_10, %c0_11] : memref<65x1xf32, #tpu.memory_space<vmem>>, vector<65x1xf32>
    %c0_12 = arith.constant 0 : index
    %c0_13 = arith.constant 0 : index
    %6 = vector.load %arg7[%c0_12, %c0_13] : memref<41x64xf32, #tpu.memory_space<vmem>>, vector<41x64xf32>
    %c0_14 = arith.constant 0 : index
    %c0_15 = arith.constant 0 : index
    %7 = vector.load %arg8[%c0_14, %c0_15] : memref<65x16xf32, #tpu.memory_space<vmem>>, vector<65x16xf32>
    %c0_16 = arith.constant 0 : index
    %c0_17 = arith.constant 0 : index
    %8 = vector.load %arg9[%c0_16, %c0_17] : memref<17x1xf32, #tpu.memory_space<vmem>>, vector<17x1xf32>
    %9 = vector.shape_cast %0 : vector<64x16xf32> to vector<64x1x16xf32>
    %10 = vector.shape_cast %9 : vector<64x1x16xf32> to vector<64x1x16xf32>
    %11 = vector.broadcast %10 : vector<64x1x16xf32> to vector<64x8x16xf32>
    %12 = vector.shape_cast %11 : vector<64x8x16xf32> to vector<512x16xf32>
    %13 = vector.extract_strided_slice %4 {offsets = [0, 0], sizes = [16, 64], strides = [1, 1]} : vector<49x64xf32> to vector<16x64xf32>
    %cst = arith.constant dense<0.000000e+00> : vector<512x64xf32>
    %14 = tpu.matmul %12, %13, %cst {dimension_numbers = #tpu.dot_dimension_numbers<[1], [0], [0], [1], [0, 0, 1, 1], [], []>} : vector<512x16xf32>, vector<16x64xf32>, vector<512x64xf32> -> vector<512x64xf32>
    %15 = vector.extract_strided_slice %4 {offsets = [16, 0], sizes = [16, 64], strides = [1, 1]} : vector<49x64xf32> to vector<16x64xf32>
    %cst_18 = arith.constant dense<0.000000e+00> : vector<512x64xf32>
    %16 = tpu.matmul %2, %15, %cst_18 {dimension_numbers = #tpu.dot_dimension_numbers<[1], [0], [0], [1], [0, 0, 1, 1], [], []>} : vector<512x16xf32>, vector<16x64xf32>, vector<512x64xf32> -> vector<512x64xf32>
    %17 = arith.addf %14, %16 : vector<512x64xf32>
    %18 = arith.mulf %12, %2 : vector<512x16xf32>
    %19 = vector.extract_strided_slice %4 {offsets = [32, 0], sizes = [16, 64], strides = [1, 1]} : vector<49x64xf32> to vector<16x64xf32>
    %cst_19 = arith.constant dense<0.000000e+00> : vector<512x64xf32>
    %20 = tpu.matmul %18, %19, %cst_19 {dimension_numbers = #tpu.dot_dimension_numbers<[1], [0], [0], [1], [0, 0, 1, 1], [], []>} : vector<512x16xf32>, vector<16x64xf32>, vector<512x64xf32> -> vector<512x64xf32>
    %21 = arith.addf %17, %20 : vector<512x64xf32>
    %22 = vector.extract_strided_slice %4 {offsets = [48, 0], sizes = [1, 64], strides = [1, 1]} : vector<49x64xf32> to vector<1x64xf32>
    %23 = vector.broadcast %22 : vector<1x64xf32> to vector<512x64xf32>
    %24 = arith.addf %21, %23 : vector<512x64xf32>
    %cst_20 = arith.constant 0.000000e+00 : f32
    %25 = vector.broadcast %cst_20 : f32 to vector<512x64xf32>
    %26 = arith.maximumf %24, %25 : vector<512x64xf32>
    %27 = vector.extract_strided_slice %5 {offsets = [0, 0], sizes = [64, 1], strides = [1, 1]} : vector<65x1xf32> to vector<64x1xf32>
    %cst_21 = arith.constant dense<0.000000e+00> : vector<512x1xf32>
    %28 = tpu.matmul %26, %27, %cst_21 {dimension_numbers = #tpu.dot_dimension_numbers<[1], [0], [0], [1], [0, 0, 1, 1], [], []>} : vector<512x64xf32>, vector<64x1xf32>, vector<512x1xf32> -> vector<512x1xf32>
    %29 = vector.extract_strided_slice %5 {offsets = [64, 0], sizes = [1, 1], strides = [1, 1]} : vector<65x1xf32> to vector<1x1xf32>
    %30 = vector.broadcast %29 : vector<1x1xf32> to vector<512x1xf32>
    %31 = arith.addf %28, %30 : vector<512x1xf32>
    %32 = vector.broadcast %31 : vector<512x1xf32> to vector<512x16xf32>
    %33 = arith.mulf %32, %2 : vector<512x16xf32>
    %34 = vector.shape_cast %33 : vector<512x16xf32> to vector<64x8x16xf32>
    %cst_22 = arith.constant dense<0.000000e+00> : vector<64x16xf32>
    %35 = vector.multi_reduction <add>, %34, %cst_22 [1] : vector<64x8x16xf32> to vector<64x16xf32>
    %36 = vector.extract_strided_slice %6 {offsets = [0, 0], sizes = [16, 64], strides = [1, 1]} : vector<41x64xf32> to vector<16x64xf32>
    %cst_23 = arith.constant dense<0.000000e+00> : vector<64x64xf32>
    %37 = tpu.matmul %0, %36, %cst_23 {dimension_numbers = #tpu.dot_dimension_numbers<[1], [0], [0], [1], [0, 0, 1, 1], [], []>} : vector<64x16xf32>, vector<16x64xf32>, vector<64x64xf32> -> vector<64x64xf32>
    %38 = vector.extract_strided_slice %6 {offsets = [16, 0], sizes = [16, 64], strides = [1, 1]} : vector<41x64xf32> to vector<16x64xf32>
    %cst_24 = arith.constant dense<0.000000e+00> : vector<64x64xf32>
    %39 = tpu.matmul %35, %38, %cst_24 {dimension_numbers = #tpu.dot_dimension_numbers<[1], [0], [0], [1], [0, 0, 1, 1], [], []>} : vector<64x16xf32>, vector<16x64xf32>, vector<64x64xf32> -> vector<64x64xf32>
    %40 = arith.addf %37, %39 : vector<64x64xf32>
    %41 = vector.extract_strided_slice %6 {offsets = [32, 0], sizes = [8, 64], strides = [1, 1]} : vector<41x64xf32> to vector<8x64xf32>
    %cst_25 = arith.constant dense<0.000000e+00> : vector<64x64xf32>
    %42 = tpu.matmul %1, %41, %cst_25 {dimension_numbers = #tpu.dot_dimension_numbers<[1], [0], [0], [1], [0, 0, 1, 1], [], []>} : vector<64x8xf32>, vector<8x64xf32>, vector<64x64xf32> -> vector<64x64xf32>
    %43 = arith.addf %40, %42 : vector<64x64xf32>
    %44 = vector.extract_strided_slice %6 {offsets = [40, 0], sizes = [1, 64], strides = [1, 1]} : vector<41x64xf32> to vector<1x64xf32>
    %45 = vector.broadcast %44 : vector<1x64xf32> to vector<64x64xf32>
    %46 = arith.addf %43, %45 : vector<64x64xf32>
    %cst_26 = arith.constant 0.000000e+00 : f32
    %47 = vector.broadcast %cst_26 : f32 to vector<64x64xf32>
    %48 = arith.maximumf %46, %47 : vector<64x64xf32>
    %49 = vector.extract_strided_slice %7 {offsets = [0, 0], sizes = [64, 16], strides = [1, 1]} : vector<65x16xf32> to vector<64x16xf32>
    %cst_27 = arith.constant dense<0.000000e+00> : vector<64x16xf32>
    %50 = tpu.matmul %48, %49, %cst_27 {dimension_numbers = #tpu.dot_dimension_numbers<[1], [0], [0], [1], [0, 0, 1, 1], [], []>} : vector<64x64xf32>, vector<64x16xf32>, vector<64x16xf32> -> vector<64x16xf32>
    %51 = vector.extract_strided_slice %7 {offsets = [64, 0], sizes = [1, 16], strides = [1, 1]} : vector<65x16xf32> to vector<1x16xf32>
    %52 = vector.broadcast %51 : vector<1x16xf32> to vector<64x16xf32>
    %53 = arith.addf %50, %52 : vector<64x16xf32>
    %cst_28 = arith.constant 0.000000e+00 : f32
    %54 = vector.broadcast %cst_28 : f32 to vector<64x16xf32>
    %55 = arith.maximumf %53, %54 : vector<64x16xf32>
    %56 = vector.extract_strided_slice %8 {offsets = [0, 0], sizes = [16, 1], strides = [1, 1]} : vector<17x1xf32> to vector<16x1xf32>
    %cst_29 = arith.constant dense<0.000000e+00> : vector<64x1xf32>
    %57 = tpu.matmul %55, %56, %cst_29 {dimension_numbers = #tpu.dot_dimension_numbers<[1], [0], [0], [1], [0, 0, 1, 1], [], []>} : vector<64x16xf32>, vector<16x1xf32>, vector<64x1xf32> -> vector<64x1xf32>
    %58 = vector.extract_strided_slice %8 {offsets = [16, 0], sizes = [1, 1], strides = [1, 1]} : vector<17x1xf32> to vector<1x1xf32>
    %59 = vector.broadcast %58 : vector<1x1xf32> to vector<64x1xf32>
    %60 = arith.addf %57, %59 : vector<64x1xf32>
    %61 = arith.negf %60 : vector<64x1xf32>
    %62 = math.exp %61 : vector<64x1xf32>
    %cst_30 = arith.constant 1.000000e+00 : f32
    %63 = vector.broadcast %cst_30 : f32 to vector<64x1xf32>
    %64 = arith.addf %63, %62 : vector<64x1xf32>
    %65 = arith.divf %63, %64 : vector<64x1xf32>
    %66 = vector.shape_cast %65 : vector<64x1xf32> to vector<8x8x1xf32>
    %67 = arith.addf %66, %3 : vector<8x8x1xf32>
    %cst_31 = arith.constant dense<0xFF800000> : vector<8x1xf32>
    %68 = vector.multi_reduction <maximumf>, %67, %cst_31 [1] : vector<8x8x1xf32> to vector<8x1xf32>
    %69 = vector.shape_cast %68 : vector<8x1xf32> to vector<8x1x1xf32>
    %70 = vector.broadcast %69 : vector<8x1x1xf32> to vector<8x8x1xf32>
    %71 = arith.subf %67, %70 : vector<8x8x1xf32>
    %72 = math.exp %71 : vector<8x8x1xf32>
    %cst_32 = arith.constant dense<0.000000e+00> : vector<8x1xf32>
    %73 = vector.multi_reduction <add>, %72, %cst_32 [1] : vector<8x8x1xf32> to vector<8x1xf32>
    %74 = vector.shape_cast %73 : vector<8x1xf32> to vector<8x1x1xf32>
    %75 = vector.broadcast %74 : vector<8x1x1xf32> to vector<8x8x1xf32>
    %76 = arith.divf %72, %75 : vector<8x8x1xf32>
    %c0_33 = arith.constant 0 : index
    %c0_34 = arith.constant 0 : index
    %c0_35 = arith.constant 0 : index
    %77 = vector.load %arg10[%c0_33, %c0_34, %c0_35] : memref<8x8x1xf32, #tpu.memory_space<vmem>>, vector<8x8x1xf32>
    tpu.vector_store %arg10[%c0_33, %c0_34, %c0_35], %76 {strides = array<i32>} : memref<8x8x1xf32, #tpu.memory_space<vmem>>, vector<8x8x1xf32>,
    return
  }
  func.func @transform_0(%arg0: i32) -> (i32, i32) {
    %c0_i32 = arith.constant 0 : i32
    %c0_i32_0 = arith.constant 0 : i32
    return %arg0, %c0_i32 : i32, i32
  }
  func.func @transform_1(%arg0: i32) -> (i32, i32) {
    %c0_i32 = arith.constant 0 : i32
    %c0_i32_0 = arith.constant 0 : i32
    return %arg0, %c0_i32 : i32, i32
  }
  func.func @transform_2(%arg0: i32) -> (i32, i32) {
    %c0_i32 = arith.constant 0 : i32
    %c0_i32_0 = arith.constant 0 : i32
    return %arg0, %c0_i32 : i32, i32
  }
  func.func @transform_3(%arg0: i32) -> (i32, i32, i32) {
    %c0_i32 = arith.constant 0 : i32
    %c0_i32_0 = arith.constant 0 : i32
    %c0_i32_1 = arith.constant 0 : i32
    return %arg0, %c0_i32, %c0_i32_0 : i32, i32, i32
  }
  func.func @transform_4(%arg0: i32) -> (i32, i32) {
    %c0_i32 = arith.constant 0 : i32
    %c0_i32_0 = arith.constant 0 : i32
    %c0_i32_1 = arith.constant 0 : i32
    return %c0_i32, %c0_i32_0 : i32, i32
  }
  func.func @transform_5(%arg0: i32) -> (i32, i32) {
    %c0_i32 = arith.constant 0 : i32
    %c0_i32_0 = arith.constant 0 : i32
    %c0_i32_1 = arith.constant 0 : i32
    return %c0_i32, %c0_i32_0 : i32, i32
  }
  func.func @transform_6(%arg0: i32) -> (i32, i32) {
    %c0_i32 = arith.constant 0 : i32
    %c0_i32_0 = arith.constant 0 : i32
    %c0_i32_1 = arith.constant 0 : i32
    return %c0_i32, %c0_i32_0 : i32, i32
  }
  func.func @transform_7(%arg0: i32) -> (i32, i32) {
    %c0_i32 = arith.constant 0 : i32
    %c0_i32_0 = arith.constant 0 : i32
    %c0_i32_1 = arith.constant 0 : i32
    return %c0_i32, %c0_i32_0 : i32, i32
  }
  func.func @transform_8(%arg0: i32) -> (i32, i32) {
    %c0_i32 = arith.constant 0 : i32
    %c0_i32_0 = arith.constant 0 : i32
    %c0_i32_1 = arith.constant 0 : i32
    return %c0_i32, %c0_i32_0 : i32, i32
  }
  func.func @transform_9(%arg0: i32) -> (i32, i32, i32) {
    %c0_i32 = arith.constant 0 : i32
    %c0_i32_0 = arith.constant 0 : i32
    %c0_i32_1 = arith.constant 0 : i32
    return %arg0, %c0_i32, %c0_i32_0 : i32, i32, i32
  }
}

</mosaic_0001>

<llo_original>
// kernel: tpu_custom_call.1
$region0: #{tpu_custom_call.1}
  #allocation0 [shape = 'u32[]', space=smem, size = 0x4, offset = 0x4, fixed_abs, tag = 'smem constant byte address 0x4 - core index']
  #allocation1 [shape = 'u32[144,128]{1,0:T(1,128)}', space=vmem, size = 0x12000, scoped, tag = 'internal scratch']
  %s0 = inlined_call_operand.vmem [shape: f32[64,16], index: 0, kind: input, shape index: {}]
  %s1 = inlined_call_operand.vmem [shape: f32[64,8], index: 1, kind: input, shape index: {}]
  %s2 = inlined_call_operand.vmem [shape: f32[512,16], index: 2, kind: input, shape index: {}]
  %s3 = inlined_call_operand.vmem [shape: f32[8,8,1], index: 3, kind: input, shape index: {}]
  %s4 = inlined_call_operand.vmem [shape: f32[49,64], index: 4, kind: input, shape index: {}]
  %s5 = inlined_call_operand.vmem [shape: f32[65,1], index: 5, kind: input, shape index: {}]
  %s6 = inlined_call_operand.vmem [shape: f32[41,64], index: 6, kind: input, shape index: {}]
  %s7 = inlined_call_operand.vmem [shape: f32[65,16], index: 7, kind: input, shape index: {}]
  %s8 = inlined_call_operand.vmem [shape: f32[17,1], index: 8, kind: input, shape index: {}]
  %s9 = inlined_call_operand.vmem [shape: f32[8,8,1], index: 9, kind: output, shape index: {}]
  %s10 = sld [smem:[#allocation0]]
  $region46: #{tpu_custom_call.1} parent=0
    _
  %s12 = ssub.s32 1, %s10
  %s13 = scalar_select 0, %s12, %s10
  // Predicated region
  $region2: #{tpu_custom_call.1} parent=0 // pred_check
    _
  $region3: #{tpu_custom_call.1} parent=0 // pred_check_branch
    %15 = sbr.rel (0) target = $region5
  $region4: #{tpu_custom_call.1} parent=0 // pred_region
    _
  $region5: #{tpu_custom_call.1} parent=0 // pred_fallthru
    _
  // Predicated region
  $region6: #{tpu_custom_call.1} parent=0 // pred_check
    _
  $region7: #{tpu_custom_call.1} parent=0 // pred_check_branch
    %17 = sbr.rel (0) target = $region9
  $region8: #{tpu_custom_call.1} parent=0 // pred_region
    _
  $region9: #{tpu_custom_call.1} parent=0 // pred_fallthru
    _
  // Predicated region
  $region10: #{tpu_custom_call.1} parent=0 // pred_check
    _
  $region11: #{tpu_custom_call.1} parent=0 // pred_check_branch
    %19 = sbr.rel (0) target = $region13
  $region12: #{tpu_custom_call.1} parent=0 // pred_region
    _
  $region13: #{tpu_custom_call.1} parent=0 // pred_fallthru
    _
  // Predicated region
  $region14: #{tpu_custom_call.1} parent=0 // pred_check
    _
  $region15: #{tpu_custom_call.1} parent=0 // pred_check_branch
    %21 = sbr.rel (0) target = $region17
  $region16: #{tpu_custom_call.1} parent=0 // pred_region
    _
  $region17: #{tpu_custom_call.1} parent=0 // pred_fallthru
    _
  // Predicated region
  $region18: #{tpu_custom_call.1} parent=0 // pred_check
    _
  $region19: #{tpu_custom_call.1} parent=0 // pred_check_branch
    %23 = sbr.rel (0) target = $region21
  $region20: #{tpu_custom_call.1} parent=0 // pred_region
    _
  $region21: #{tpu_custom_call.1} parent=0 // pred_fallthru
    _
  // Predicated region
  $region22: #{tpu_custom_call.1} parent=0 // pred_check
    _
  $region23: #{tpu_custom_call.1} parent=0 // pred_check_branch
    %25 = sbr.rel (0) target = $region25
  $region24: #{tpu_custom_call.1} parent=0 // pred_region
    _
  $region25: #{tpu_custom_call.1} parent=0 // pred_fallthru
    _
  // Predicated region
  $region26: #{tpu_custom_call.1} parent=0 // pred_check
    _
  $region27: #{tpu_custom_call.1} parent=0 // pred_check_branch
    %27 = sbr.rel (0) target = $region29
  $region28: #{tpu_custom_call.1} parent=0 // pred_region
    _
  $region29: #{tpu_custom_call.1} parent=0 // pred_fallthru
    _
  // Predicated region
  $region30: #{tpu_custom_call.1} parent=0 // pred_check
    _
  $region31: #{tpu_custom_call.1} parent=0 // pred_check_branch
    %29 = sbr.rel (0) target = $region33
  $region32: #{tpu_custom_call.1} parent=0 // pred_region
    _
  $region33: #{tpu_custom_call.1} parent=0 // pred_fallthru
    _
  // Predicated region
  $region34: #{tpu_custom_call.1} parent=0 // pred_check
    _
  $region35: #{tpu_custom_call.1} parent=0 // pred_check_branch
    %31 = sbr.rel (0) target = $region37
  $region36: #{tpu_custom_call.1} parent=0 // pred_region
    _
  $region37: #{tpu_custom_call.1} parent=0 // pred_fallthru
    _
  %v32 = vld [vmem:[%s0] sm:$0xff]
  %v33 = vld [vmem:[%s0 + $0x8] sm:$0xff]
  %v34 = vld [vmem:[%s0 + $0x10] sm:$0xff]
  %v35 = vld [vmem:[%s0 + $0x18] sm:$0xff]
  %v36 = vld [vmem:[%s0 + $0x20] sm:$0xff]
  %v37 = vld [vmem:[%s0 + $0x28] sm:$0xff]
  %v38 = vld [vmem:[%s0 + $0x30] sm:$0xff]
  %v39 = vld [vmem:[%s0 + $0x38] sm:$0xff]
  %v40 = vld [vmem:[%s1] sm:$0xff]
  %v41 = vld [vmem:[%s1 + $0x8] sm:$0xff]
  %v42 = vld [vmem:[%s1 + $0x10] sm:$0xff]
  %v43 = vld [vmem:[%s1 + $0x18] sm:$0xff]
  %v44 = vld [vmem:[%s1 + $0x20] sm:$0xff]
  %v45 = vld [vmem:[%s1 + $0x28] sm:$0xff]
  %v46 = vld [vmem:[%s1 + $0x30] sm:$0xff]
  %v47 = vld [vmem:[%s1 + $0x38] sm:$0xff]
  %v48 = vld [vmem:[%s2] sm:$0xff]
  %v49 = vld [vmem:[%s2 + $0x8] sm:$0xff]
  %v50 = vld [vmem:[%s2 + $0x10] sm:$0xff]
  %v51 = vld [vmem:[%s2 + $0x18] sm:$0xff]
  %v52 = vld [vmem:[%s2 + $0x20] sm:$0xff]
  %v53 = vld [vmem:[%s2 + $0x28] sm:$0xff]
  %v54 = vld [vmem:[%s2 + $0x30] sm:$0xff]
  %v55 = vld [vmem:[%s2 + $0x38] sm:$0xff]
  %v56 = vld [vmem:[%s2 + $0x40] sm:$0xff]
  %v57 = vld [vmem:[%s2 + $0x48] sm:$0xff]
  %v58 = vld [vmem:[%s2 + $0x50] sm:$0xff]
  %v59 = vld [vmem:[%s2 + $0x58] sm:$0xff]
  %v60 = vld [vmem:[%s2 + $0x60] sm:$0xff]
  %v61 = vld [vmem:[%s2 + $0x68] sm:$0xff]
  %v62 = vld [vmem:[%s2 + $0x70] sm:$0xff]
  %v63 = vld [vmem:[%s2 + $0x78] sm:$0xff]
  %v64 = vld [vmem:[%s2 + $0x80] sm:$0xff]
  %v65 = vld [vmem:[%s2 + $0x88] sm:$0xff]
  %v66 = vld [vmem:[%s2 + $0x90] sm:$0xff]
  %v67 = vld [vmem:[%s2 + $0x98] sm:$0xff]
  %v68 = vld [vmem:[%s2 + $0xa0] sm:$0xff]
  %v69 = vld [vmem:[%s2 + $0xa8] sm:$0xff]
  %v70 = vld [vmem:[%s2 + $0xb0] sm:$0xff]
  %v71 = vld [vmem:[%s2 + $0xb8] sm:$0xff]
  %v72 = vld [vmem:[%s2 + $0xc0] sm:$0xff]
  %v73 = vld [vmem:[%s2 + $0xc8] sm:$0xff]
  %v74 = vld [vmem:[%s2 + $0xd0] sm:$0xff]
  %v75 = vld [vmem:[%s2 + $0xd8] sm:$0xff]
  %v76 = vld [vmem:[%s2 + $0xe0] sm:$0xff]
  %v77 = vld [vmem:[%s2 + $0xe8] sm:$0xff]
  %v78 = vld [vmem:[%s2 + $0xf0] sm:$0xff]
  %v79 = vld [vmem:[%s2 + $0xf8] sm:$0xff]
  %v80 = vld [vmem:[%s2 + $0x100] sm:$0xff]
  %v81 = vld [vmem:[%s2 + $0x108] sm:$0xff]
  %v82 = vld [vmem:[%s2 + $0x110] sm:$0xff]
  %v83 = vld [vmem:[%s2 + $0x118] sm:$0xff]
  %v84 = vld [vmem:[%s2 + $0x120] sm:$0xff]
  %v85 = vld [vmem:[%s2 + $0x128] sm:$0xff]
  %v86 = vld [vmem:[%s2 + $0x130] sm:$0xff]
  %v87 = vld [vmem:[%s2 + $0x138] sm:$0xff]
  %v88 = vld [vmem:[%s2 + $0x140] sm:$0xff]
  %v89 = vld [vmem:[%s2 + $0x148] sm:$0xff]
  %v90 = vld [vmem:[%s2 + $0x150] sm:$0xff]
  %v91 = vld [vmem:[%s2 + $0x158] sm:$0xff]
  %v92 = vld [vmem:[%s2 + $0x160] sm:$0xff]
  %v93 = vld [vmem:[%s2 + $0x168] sm:$0xff]
  %v94 = vld [vmem:[%s2 + $0x170] sm:$0xff]
  %v95 = vld [vmem:[%s2 + $0x178] sm:$0xff]
  %v96 = vld [vmem:[%s2 + $0x180] sm:$0xff]
  %v97 = vld [vmem:[%s2 + $0x188] sm:$0xff]
  %v98 = vld [vmem:[%s2 + $0x190] sm:$0xff]
  %v99 = vld [vmem:[%s2 + $0x198] sm:$0xff]
  %v100 = vld [vmem:[%s2 + $0x1a0] sm:$0xff]
  %v101 = vld [vmem:[%s2 + $0x1a8] sm:$0xff]
  %v102 = vld [vmem:[%s2 + $0x1b0] sm:$0xff]
  %v103 = vld [vmem:[%s2 + $0x1b8] sm:$0xff]
  %v104 = vld [vmem:[%s2 + $0x1c0] sm:$0xff]
  %v105 = vld [vmem:[%s2 + $0x1c8] sm:$0xff]
  %v106 = vld [vmem:[%s2 + $0x1d0] sm:$0xff]
  %v107 = vld [vmem:[%s2 + $0x1d8] sm:$0xff]
  %v108 = vld [vmem:[%s2 + $0x1e0] sm:$0xff]
  %v109 = vld [vmem:[%s2 + $0x1e8] sm:$0xff]
  %v110 = vld [vmem:[%s2 + $0x1f0] sm:$0xff]
  %v111 = vld [vmem:[%s2 + $0x1f8] sm:$0xff]
  %v112 = vld [vmem:[%s3] sm:$0xff]
  %v113 = vld [vmem:[%s3 + $0x8] sm:$0xff]
  %v114 = vld [vmem:[%s3 + $0x10] sm:$0xff]
  %v115 = vld [vmem:[%s3 + $0x18] sm:$0xff]
  %v116 = vld [vmem:[%s3 + $0x20] sm:$0xff]
  %v117 = vld [vmem:[%s3 + $0x28] sm:$0xff]
  %v118 = vld [vmem:[%s3 + $0x30] sm:$0xff]
  %v119 = vld [vmem:[%s3 + $0x38] sm:$0xff]
  %v120 = vld [vmem:[%s4] sm:$0xff]
  %v121 = vld [vmem:[%s4 + $0x8] sm:$0xff]
  %v122 = vld [vmem:[%s4 + $0x10] sm:$0xff]
  %v123 = vld [vmem:[%s4 + $0x18] sm:$0xff]
  %v124 = vld [vmem:[%s4 + $0x20] sm:$0xff]
  %v125 = vld [vmem:[%s4 + $0x28] sm:$0xff]
  %v126 = vld [vmem:[%s4 + $0x30] sm:$0x1]
  %v127 = vld [vmem:[%s5] sm:$0xff]
  %v128 = vld [vmem:[%s5 + $0x8] sm:$0xff]
  %v129 = vld [vmem:[%s5 + $0x10] sm:$0xff]
  %v130 = vld [vmem:[%s5 + $0x18] sm:$0xff]
  %v131 = vld [vmem:[%s5 + $0x20] sm:$0xff]
  %v132 = vld [vmem:[%s5 + $0x28] sm:$0xff]
  %v133 = vld [vmem:[%s5 + $0x30] sm:$0xff]
  %v134 = vld [vmem:[%s5 + $0x38] sm:$0xff]
  %v135 = vld [vmem:[%s5 + $0x40] sm:$0x1]
  %v136 = vld [vmem:[%s6] sm:$0xff]
  %v137 = vld [vmem:[%s6 + $0x8] sm:$0xff]
  %v138 = vld [vmem:[%s6 + $0x10] sm:$0xff]
  %v139 = vld [vmem:[%s6 + $0x18] sm:$0xff]
  %v140 = vld [vmem:[%s6 + $0x20] sm:$0xff]
  %v141 = vld [vmem:[%s6 + $0x28] sm:$0x1]
  %v142 = vld [vmem:[%s7] sm:$0xff]
  %v143 = vld [vmem:[%s7 + $0x8] sm:$0xff]
  %v144 = vld [vmem:[%s7 + $0x10] sm:$0xff]
  %v145 = vld [vmem:[%s7 + $0x18] sm:$0xff]
  %v146 = vld [vmem:[%s7 + $0x20] sm:$0xff]
  %v147 = vld [vmem:[%s7 + $0x28] sm:$0xff]
  %v148 = vld [vmem:[%s7 + $0x30] sm:$0xff]
  %v149 = vld [vmem:[%s7 + $0x38] sm:$0xff]
  %v150 = vld [vmem:[%s7 + $0x40] sm:$0x1]
  %v151 = vld [vmem:[%s8] sm:$0xff]
  %v152 = vld [vmem:[%s8 + $0x8] sm:$0xff]
  %v153 = vld [vmem:[%s8 + $0x10] sm:$0x1]
  %v162 = vcombine.high %v32, %v32
  %v164 = vunpack.c.l.s4 1966171168
  %v165 = vunpack.c.0.s8 %v164
  %v166 = vlaneseq
  %v167 = vshrl.u32 %v166, 7
  %v168 = vsub.s32 %v165, %v167
  %v169 = vrot.slane %v32, %v168
  %v171 = vunpack.c.l.s4 1966171168
  %v172 = vunpack.c.0.s8 %v171
  %v173 = vlaneseq
  %v174 = vshrl.u32 %v173, 7
  %v175 = vsub.s32 %v172, %v174
  %v176 = vrot.slane %v162, %v175
  %v177 = vcombine.high %v169, %v169
  %v178 = vcombine.high %v176, %v176
  %v180 = vunpack.c.l.s4 1966171168
  %v181 = vunpack.c.0.s8 %v180
  %v182 = vlaneseq
  %v183 = vshrl.u32 %v182, 7
  %v184 = vsub.s32 %v181, %v183
  %v185 = vrot.slane %v169, %v184
  %v187 = vunpack.c.l.s4 1966171168
  %v188 = vunpack.c.0.s8 %v187
  %v189 = vlaneseq
  %v190 = vshrl.u32 %v189, 7
  %v191 = vsub.s32 %v188, %v190
  %v192 = vrot.slane %v176, %v191
  %v194 = vunpack.c.l.s4 1966171168
  %v195 = vunpack.c.0.s8 %v194
  %v196 = vlaneseq
  %v197 = vshrl.u32 %v196, 7
  %v198 = vsub.s32 %v195, %v197
  %v199 = vrot.slane %v177, %v198
  %v201 = vunpack.c.l.s4 1966171168
  %v202 = vunpack.c.0.s8 %v201
  %v203 = vlaneseq
  %v204 = vshrl.u32 %v203, 7
  %v205 = vsub.s32 %v202, %v204
  %v206 = vrot.slane %v178, %v205
  %v207 = vcombine.high %v185, %v185
  %v208 = vcombine.high %v192, %v192
  %v209 = vcombine.high %v199, %v199
  %v210 = vcombine.high %v206, %v206
  %v211 = vcombine.high %v33, %v33
  %v213 = vunpack.c.l.s4 1966171168
  %v214 = vunpack.c.0.s8 %v213
  %v215 = vlaneseq
  %v216 = vshrl.u32 %v215, 7
  %v217 = vsub.s32 %v214, %v216
  %v218 = vrot.slane %v33, %v217
  %v220 = vunpack.c.l.s4 1966171168
  %v221 = vunpack.c.0.s8 %v220
  %v222 = vlaneseq
  %v223 = vshrl.u32 %v222, 7
  %v224 = vsub.s32 %v221, %v223
  %v225 = vrot.slane %v211, %v224
  %v226 = vcombine.high %v218, %v218
  %v227 = vcombine.high %v225, %v225
  %v229 = vunpack.c.l.s4 1966171168
  %v230 = vunpack.c.0.s8 %v229
  %v231 = vlaneseq
  %v232 = vshrl.u32 %v231, 7
  %v233 = vsub.s32 %v230, %v232
  %v234 = vrot.slane %v218, %v233
  %v236 = vunpack.c.l.s4 1966171168
  %v237 = vunpack.c.0.s8 %v236
  %v238 = vlaneseq
  %v239 = vshrl.u32 %v238, 7
  %v240 = vsub.s32 %v237, %v239
  %v241 = vrot.slane %v225, %v240
  %v243 = vunpack.c.l.s4 1966171168
  %v244 = vunpack.c.0.s8 %v243
  %v245 = vlaneseq
  %v246 = vshrl.u32 %v245, 7
  %v247 = vsub.s32 %v244, %v246
  %v248 = vrot.slane %v226, %v247
  %v250 = vunpack.c.l.s4 1966171168
  %v251 = vunpack.c.0.s8 %v250
  %v252 = vlaneseq
  %v253 = vshrl.u32 %v252, 7
  %v254 = vsub.s32 %v251, %v253
  %v255 = vrot.slane %v227, %v254
  %v256 = vcombine.high %v234, %v234
  %v257 = vcombine.high %v241, %v241
  %v258 = vcombine.high %v248, %v248
  %v259 = vcombine.high %v255, %v255
  %v260 = vcombine.high %v34, %v34
  %v262 = vunpack.c.l.s4 1966171168
  %v263 = vunpack.c.0.s8 %v262
  %v264 = vlaneseq
  %v265 = vshrl.u32 %v264, 7
  %v266 = vsub.s32 %v263, %v265
  %v267 = vrot.slane %v34, %v266
  %v269 = vunpack.c.l.s4 1966171168
  %v270 = vunpack.c.0.s8 %v269
  %v271 = vlaneseq
  %v272 = vshrl.u32 %v271, 7
  %v273 = vsub.s32 %v270, %v272
  %v274 = vrot.slane %v260, %v273
  %v275 = vcombine.high %v267, %v267
  %v276 = vcombine.high %v274, %v274
  %v278 = vunpack.c.l.s4 1966171168
  %v279 = vunpack.c.0.s8 %v278
  %v280 = vlaneseq
  %v281 = vshrl.u32 %v280, 7
  %v282 = vsub.s32 %v279, %v281
  %v283 = vrot.slane %v267, %v282
  %v285 = vunpack.c.l.s4 1966171168
  %v286 = vunpack.c.0.s8 %v285
  %v287 = vlaneseq
  %v288 = vshrl.u32 %v287, 7
  %v289 = vsub.s32 %v286, %v288
  %v290 = vrot.slane %v274, %v289
  %v292 = vunpack.c.l.s4 1966171168
  %v293 = vunpack.c.0.s8 %v292
  %v294 = vlaneseq
  %v295 = vshrl.u32 %v294, 7
  %v296 = vsub.s32 %v293, %v295
  %v297 = vrot.slane %v275, %v296
  %v299 = vunpack.c.l.s4 1966171168
  %v300 = vunpack.c.0.s8 %v299
  %v301 = vlaneseq
  %v302 = vshrl.u32 %v301, 7
  %v303 = vsub.s32 %v300, %v302
  %v304 = vrot.slane %v276, %v303
  %v305 = vcombine.high %v283, %v283
  %v306 = vcombine.high %v290, %v290
  %v307 = vcombine.high %v297, %v297
  %v308 = vcombine.high %v304, %v304
  %v309 = vcombine.high %v35, %v35
  %v311 = vunpack.c.l.s4 1966171168
  %v312 = vunpack.c.0.s8 %v311
  %v313 = vlaneseq
  %v314 = vshrl.u32 %v313, 7
  %v315 = vsub.s32 %v312, %v314
  %v316 = vrot.slane %v35, %v315
  %v318 = vunpack.c.l.s4 1966171168
  %v319 = vunpack.c.0.s8 %v318
  %v320 = vlaneseq
  %v321 = vshrl.u32 %v320, 7
  %v322 = vsub.s32 %v319, %v321
  %v323 = vrot.slane %v309, %v322
  %v324 = vcombine.high %v316, %v316
  %v325 = vcombine.high %v323, %v323
  %v327 = vunpack.c.l.s4 1966171168
  %v328 = vunpack.c.0.s8 %v327
  %v329 = vlaneseq
  %v330 = vshrl.u32 %v329, 7
  %v331 = vsub.s32 %v328, %v330
  %v332 = vrot.slane %v316, %v331
  %v334 = vunpack.c.l.s4 1966171168
  %v335 = vunpack.c.0.s8 %v334
  %v336 = vlaneseq
  %v337 = vshrl.u32 %v336, 7
  %v338 = vsub.s32 %v335, %v337
  %v339 = vrot.slane %v323, %v338
  %v341 = vunpack.c.l.s4 1966171168
  %v342 = vunpack.c.0.s8 %v341
  %v343 = vlaneseq
  %v344 = vshrl.u32 %v343, 7
  %v345 = vsub.s32 %v342, %v344
  %v346 = vrot.slane %v324, %v345
  %v348 = vunpack.c.l.s4 1966171168
  %v349 = vunpack.c.0.s8 %v348
  %v350 = vlaneseq
  %v351 = vshrl.u32 %v350, 7
  %v352 = vsub.s32 %v349, %v351
  %v353 = vrot.slane %v325, %v352
  %v354 = vcombine.high %v332, %v332
  %v355 = vcombine.high %v339, %v339
  %v356 = vcombine.high %v346, %v346
  %v357 = vcombine.high %v353, %v353
  %v358 = vcombine.high %v36, %v36
  %v360 = vunpack.c.l.s4 1966171168
  %v361 = vunpack.c.0.s8 %v360
  %v362 = vlaneseq
  %v363 = vshrl.u32 %v362, 7
  %v364 = vsub.s32 %v361, %v363
  %v365 = vrot.slane %v36, %v364
  %v367 = vunpack.c.l.s4 1966171168
  %v368 = vunpack.c.0.s8 %v367
  %v369 = vlaneseq
  %v370 = vshrl.u32 %v369, 7
  %v371 = vsub.s32 %v368, %v370
  %v372 = vrot.slane %v358, %v371
  %v373 = vcombine.high %v365, %v365
  %v374 = vcombine.high %v372, %v372
  %v376 = vunpack.c.l.s4 1966171168
  %v377 = vunpack.c.0.s8 %v376
  %v378 = vlaneseq
  %v379 = vshrl.u32 %v378, 7
  %v380 = vsub.s32 %v377, %v379
  %v381 = vrot.slane %v365, %v380
  %v383 = vunpack.c.l.s4 1966171168
  %v384 = vunpack.c.0.s8 %v383
  %v385 = vlaneseq
  %v386 = vshrl.u32 %v385, 7
  %v387 = vsub.s32 %v384, %v386
  %v388 = vrot.slane %v372, %v387
  %v390 = vunpack.c.l.s4 1966171168
  %v391 = vunpack.c.0.s8 %v390
  %v392 = vlaneseq
  %v393 = vshrl.u32 %v392, 7
  %v394 = vsub.s32 %v391, %v393
  %v395 = vrot.slane %v373, %v394
  %v397 = vunpack.c.l.s4 1966171168
  %v398 = vunpack.c.0.s8 %v397
  %v399 = vlaneseq
  %v400 = vshrl.u32 %v399, 7
  %v401 = vsub.s32 %v398, %v400
  %v402 = vrot.slane %v374, %v401
  %v403 = vcombine.high %v381, %v381
  %v404 = vcombine.high %v388, %v388
  %v405 = vcombine.high %v395, %v395
  %v406 = vcombine.high %v402, %v402
  %v407 = vcombine.high %v37, %v37
  %v409 = vunpack.c.l.s4 1966171168
  %v410 = vunpack.c.0.s8 %v409
  %v411 = vlaneseq
  %v412 = vshrl.u32 %v411, 7
  %v413 = vsub.s32 %v410, %v412
  %v414 = vrot.slane %v37, %v413
  %v416 = vunpack.c.l.s4 1966171168
  %v417 = vunpack.c.0.s8 %v416
  %v418 = vlaneseq
  %v419 = vshrl.u32 %v418, 7
  %v420 = vsub.s32 %v417, %v419
  %v421 = vrot.slane %v407, %v420
  %v422 = vcombine.high %v414, %v414
  %v423 = vcombine.high %v421, %v421
  %v425 = vunpack.c.l.s4 1966171168
  %v426 = vunpack.c.0.s8 %v425
  %v427 = vlaneseq
  %v428 = vshrl.u32 %v427, 7
  %v429 = vsub.s32 %v426, %v428
  %v430 = vrot.slane %v414, %v429
  %v432 = vunpack.c.l.s4 1966171168
  %v433 = vunpack.c.0.s8 %v432
  %v434 = vlaneseq
  %v435 = vshrl.u32 %v434, 7
  %v436 = vsub.s32 %v433, %v435
  %v437 = vrot.slane %v421, %v436
  %v439 = vunpack.c.l.s4 1966171168
  %v440 = vunpack.c.0.s8 %v439
  %v441 = vlaneseq
  %v442 = vshrl.u32 %v441, 7
  %v443 = vsub.s32 %v440, %v442
  %v444 = vrot.slane %v422, %v443
  %v446 = vunpack.c.l.s4 1966171168
  %v447 = vunpack.c.0.s8 %v446
  %v448 = vlaneseq
  %v449 = vshrl.u32 %v448, 7
  %v450 = vsub.s32 %v447, %v449
  %v451 = vrot.slane %v423, %v450
  %v452 = vcombine.high %v430, %v430
  %v453 = vcombine.high %v437, %v437
  %v454 = vcombine.high %v444, %v444
  %v455 = vcombine.high %v451, %v451
  %v456 = vcombine.high %v38, %v38
  %v458 = vunpack.c.l.s4 1966171168
  %v459 = vunpack.c.0.s8 %v458
  %v460 = vlaneseq
  %v461 = vshrl.u32 %v460, 7
  %v462 = vsub.s32 %v459, %v461
  %v463 = vrot.slane %v38, %v462
  %v465 = vunpack.c.l.s4 1966171168
  %v466 = vunpack.c.0.s8 %v465
  %v467 = vlaneseq
  %v468 = vshrl.u32 %v467, 7
  %v469 = vsub.s32 %v466, %v468
  %v470 = vrot.slane %v456, %v469
  %v471 = vcombine.high %v463, %v463
  %v472 = vcombine.high %v470, %v470
  %v474 = vunpack.c.l.s4 1966171168
  %v475 = vunpack.c.0.s8 %v474
  %v476 = vlaneseq
  %v477 = vshrl.u32 %v476, 7
  %v478 = vsub.s32 %v475, %v477
  %v479 = vrot.slane %v463, %v478
  %v481 = vunpack.c.l.s4 1966171168
  %v482 = vunpack.c.0.s8 %v481
  %v483 = vlaneseq
  %v484 = vshrl.u32 %v483, 7
  %v485 = vsub.s32 %v482, %v484
  %v486 = vrot.slane %v470, %v485
  %v488 = vunpack.c.l.s4 1966171168
  %v489 = vunpack.c.0.s8 %v488
  %v490 = vlaneseq
  %v491 = vshrl.u32 %v490, 7
  %v492 = vsub.s32 %v489, %v491
  %v493 = vrot.slane %v471, %v492
  %v495 = vunpack.c.l.s4 1966171168
  %v496 = vunpack.c.0.s8 %v495
  %v497 = vlaneseq
  %v498 = vshrl.u32 %v497, 7
  %v499 = vsub.s32 %v496, %v498
  %v500 = vrot.slane %v472, %v499
  %v501 = vcombine.high %v479, %v479
  %v502 = vcombine.high %v486, %v486
  %v503 = vcombine.high %v493, %v493
  %v504 = vcombine.high %v500, %v500
  %v505 = vcombine.high %v39, %v39
  %v507 = vunpack.c.l.s4 1966171168
  %v508 = vunpack.c.0.s8 %v507
  %v509 = vlaneseq
  %v510 = vshrl.u32 %v509, 7
  %v511 = vsub.s32 %v508, %v510
  %v512 = vrot.slane %v39, %v511
  %v514 = vunpack.c.l.s4 1966171168
  %v515 = vunpack.c.0.s8 %v514
  %v516 = vlaneseq
  %v517 = vshrl.u32 %v516, 7
  %v518 = vsub.s32 %v515, %v517
  %v519 = vrot.slane %v505, %v518
  %v520 = vcombine.high %v512, %v512
  %v521 = vcombine.high %v519, %v519
  %v523 = vunpack.c.l.s4 1966171168
  %v524 = vunpack.c.0.s8 %v523
  %v525 = vlaneseq
  %v526 = vshrl.u32 %v525, 7
  %v527 = vsub.s32 %v524, %v526
  %v528 = vrot.slane %v512, %v527
  %v530 = vunpack.c.l.s4 1966171168
  %v531 = vunpack.c.0.s8 %v530
  %v532 = vlaneseq
  %v533 = vshrl.u32 %v532, 7
  %v534 = vsub.s32 %v531, %v533
  %v535 = vrot.slane %v519, %v534
  %v537 = vunpack.c.l.s4 1966171168
  %v538 = vunpack.c.0.s8 %v537
  %v539 = vlaneseq
  %v540 = vshrl.u32 %v539, 7
  %v541 = vsub.s32 %v538, %v540
  %v542 = vrot.slane %v520, %v541
  %v544 = vunpack.c.l.s4 1966171168
  %v545 = vunpack.c.0.s8 %v544
  %v546 = vlaneseq
  %v547 = vshrl.u32 %v546, 7
  %v548 = vsub.s32 %v545, %v547
  %v549 = vrot.slane %v521, %v548
  %v550 = vcombine.high %v528, %v528
  %v551 = vcombine.high %v535, %v535
  %v552 = vcombine.high %v542, %v542
  %v553 = vcombine.high %v549, %v549
  %v554 = vlaneseq
  %v555 = vshrl.u32 %v554, 7
  %v556 = vsub.s32 0, %v555
  %v557 = vrot.slane %v185, %v556
  %v558 = vlaneseq
  %v559 = vshrl.u32 %v558, 7
  %v560 = vsub.s32 0, %v559
  %v561 = vrot.slane %v199, %v560
  %v562 = vlaneseq
  %v563 = vshrl.u32 %v562, 7
  %v564 = vsub.s32 0, %v563
  %v565 = vrot.slane %v207, %v564
  %v566 = vlaneseq
  %v567 = vshrl.u32 %v566, 7
  %v568 = vsub.s32 0, %v567
  %v569 = vrot.slane %v209, %v568
  %v570 = vlaneseq
  %v571 = vshrl.u32 %v570, 7
  %v572 = vsub.s32 0, %v571
  %v573 = vrot.slane %v192, %v572
  %v574 = vlaneseq
  %v575 = vshrl.u32 %v574, 7
  %v576 = vsub.s32 0, %v575
  %v577 = vrot.slane %v206, %v576
  %v578 = vlaneseq
  %v579 = vshrl.u32 %v578, 7
  %v580 = vsub.s32 0, %v579
  %v581 = vrot.slane %v208, %v580
  %v582 = vlaneseq
  %v583 = vshrl.u32 %v582, 7
  %v584 = vsub.s32 0, %v583
  %v585 = vrot.slane %v210, %v584
  %v586 = vlaneseq
  %v587 = vshrl.u32 %v586, 7
  %v588 = vsub.s32 0, %v587
  %v589 = vrot.slane %v234, %v588
  %v590 = vlaneseq
  %v591 = vshrl.u32 %v590, 7
  %v592 = vsub.s32 0, %v591
  %v593 = vrot.slane %v248, %v592
  %v594 = vlaneseq
  %v595 = vshrl.u32 %v594, 7
  %v596 = vsub.s32 0, %v595
  %v597 = vrot.slane %v256, %v596
  %v598 = vlaneseq
  %v599 = vshrl.u32 %v598, 7
  %v600 = vsub.s32 0, %v599
  %v601 = vrot.slane %v258, %v600
  %v602 = vlaneseq
  %v603 = vshrl.u32 %v602, 7
  %v604 = vsub.s32 0, %v603
  %v605 = vrot.slane %v241, %v604
  %v606 = vlaneseq
  %v607 = vshrl.u32 %v606, 7
  %v608 = vsub.s32 0, %v607
  %v609 = vrot.slane %v255, %v608
  %v610 = vlaneseq
  %v611 = vshrl.u32 %v610, 7
  %v612 = vsub.s32 0, %v611
  %v613 = vrot.slane %v257, %v612
  %v614 = vlaneseq
  %v615 = vshrl.u32 %v614, 7
  %v616 = vsub.s32 0, %v615
  %v617 = vrot.slane %v259, %v616
  %v618 = vlaneseq
  %v619 = vshrl.u32 %v618, 7
  %v620 = vsub.s32 0, %v619
  %v621 = vrot.slane %v283, %v620
  %v622 = vlaneseq
  %v623 = vshrl.u32 %v622, 7
  %v624 = vsub.s32 0, %v623
  %v625 = vrot.slane %v297, %v624
  %v626 = vlaneseq
  %v627 = vshrl.u32 %v626, 7
  %v628 = vsub.s32 0, %v627
  %v629 = vrot.slane %v305, %v628
  %v630 = vlaneseq
  %v631 = vshrl.u32 %v630, 7
  %v632 = vsub.s32 0, %v631
  %v633 = vrot.slane %v307, %v632
  %v634 = vlaneseq
  %v635 = vshrl.u32 %v634, 7
  %v636 = vsub.s32 0, %v635
  %v637 = vrot.slane %v290, %v636
  %v638 = vlaneseq
  %v639 = vshrl.u32 %v638, 7
  %v640 = vsub.s32 0, %v639
  %v641 = vrot.slane %v304, %v640
  %v642 = vlaneseq
  %v643 = vshrl.u32 %v642, 7
  %v644 = vsub.s32 0, %v643
  %v645 = vrot.slane %v306, %v644
  %v646 = vlaneseq
  %v647 = vshrl.u32 %v646, 7
  %v648 = vsub.s32 0, %v647
  %v649 = vrot.slane %v308, %v648
  %v650 = vlaneseq
  %v651 = vshrl.u32 %v650, 7
  %v652 = vsub.s32 0, %v651
  %v653 = vrot.slane %v332, %v652
  %v654 = vlaneseq
  %v655 = vshrl.u32 %v654, 7
  %v656 = vsub.s32 0, %v655
  %v657 = vrot.slane %v346, %v656
  %v658 = vlaneseq
  %v659 = vshrl.u32 %v658, 7
  %v660 = vsub.s32 0, %v659
  %v661 = vrot.slane %v354, %v660
  %v662 = vlaneseq
  %v663 = vshrl.u32 %v662, 7
  %v664 = vsub.s32 0, %v663
  %v665 = vrot.slane %v356, %v664
  %v666 = vlaneseq
  %v667 = vshrl.u32 %v666, 7
  %v668 = vsub.s32 0, %v667
  %v669 = vrot.slane %v339, %v668
  %v670 = vlaneseq
  %v671 = vshrl.u32 %v670, 7
  %v672 = vsub.s32 0, %v671
  %v673 = vrot.slane %v353, %v672
  %v674 = vlaneseq
  %v675 = vshrl.u32 %v674, 7
  %v676 = vsub.s32 0, %v675
  %v677 = vrot.slane %v355, %v676
  %v678 = vlaneseq
  %v679 = vshrl.u32 %v678, 7
  %v680 = vsub.s32 0, %v679
  %v681 = vrot.slane %v357, %v680
  %v682 = vlaneseq
  %v683 = vshrl.u32 %v682, 7
  %v684 = vsub.s32 0, %v683
  %v685 = vrot.slane %v381, %v684
  %v686 = vlaneseq
  %v687 = vshrl.u32 %v686, 7
  %v688 = vsub.s32 0, %v687
  %v689 = vrot.slane %v395, %v688
  %v690 = vlaneseq
  %v691 = vshrl.u32 %v690, 7
  %v692 = vsub.s32 0, %v691
  %v693 = vrot.slane %v403, %v692
  %v694 = vlaneseq
  %v695 = vshrl.u32 %v694, 7
  %v696 = vsub.s32 0, %v695
  %v697 = vrot.slane %v405, %v696
  %v698 = vlaneseq
  %v699 = vshrl.u32 %v698, 7
  %v700 = vsub.s32 0, %v699
  %v701 = vrot.slane %v388, %v700
  %v702 = vlaneseq
  %v703 = vshrl.u32 %v702, 7
  %v704 = vsub.s32 0, %v703
  %v705 = vrot.slane %v402, %v704
  %v706 = vlaneseq
  %v707 = vshrl.u32 %v706, 7
  %v708 = vsub.s32 0, %v707
  %v709 = vrot.slane %v404, %v708
  %v710 = vlaneseq
  %v711 = vshrl.u32 %v710, 7
  %v712 = vsub.s32 0, %v711
  %v713 = vrot.slane %v406, %v712
  %v714 = vlaneseq
  %v715 = vshrl.u32 %v714, 7
  %v716 = vsub.s32 0, %v715
  %v717 = vrot.slane %v430, %v716
  %v718 = vlaneseq
  %v719 = vshrl.u32 %v718, 7
  %v720 = vsub.s32 0, %v719
  %v721 = vrot.slane %v444, %v720
  %v722 = vlaneseq
  %v723 = vshrl.u32 %v722, 7
  %v724 = vsub.s32 0, %v723
  %v725 = vrot.slane %v452, %v724
  %v726 = vlaneseq
  %v727 = vshrl.u32 %v726, 7
  %v728 = vsub.s32 0, %v727
  %v729 = vrot.slane %v454, %v728
  %v730 = vlaneseq
  %v731 = vshrl.u32 %v730, 7
  %v732 = vsub.s32 0, %v731
  %v733 = vrot.slane %v437, %v732
  %v734 = vlaneseq
  %v735 = vshrl.u32 %v734, 7
  %v736 = vsub.s32 0, %v735
  %v737 = vrot.slane %v451, %v736
  %v738 = vlaneseq
  %v739 = vshrl.u32 %v738, 7
  %v740 = vsub.s32 0, %v739
  %v741 = vrot.slane %v453, %v740
  %v742 = vlaneseq
  %v743 = vshrl.u32 %v742, 7
  %v744 = vsub.s32 0, %v743
  %v745 = vrot.slane %v455, %v744
  %v746 = vlaneseq
  %v747 = vshrl.u32 %v746, 7
  %v748 = vsub.s32 0, %v747
  %v749 = vrot.slane %v479, %v748
  %v750 = vlaneseq
  %v751 = vshrl.u32 %v750, 7
  %v752 = vsub.s32 0, %v751
  %v753 = vrot.slane %v493, %v752
  %v754 = vlaneseq
  %v755 = vshrl.u32 %v754, 7
  %v756 = vsub.s32 0, %v755
  %v757 = vrot.slane %v501, %v756
  %v758 = vlaneseq
  %v759 = vshrl.u32 %v758, 7
  %v760 = vsub.s32 0, %v759
  %v761 = vrot.slane %v503, %v760
  %v762 = vlaneseq
  %v763 = vshrl.u32 %v762, 7
  %v764 = vsub.s32 0, %v763
  %v765 = vrot.slane %v486, %v764
  %v766 = vlaneseq
  %v767 = vshrl.u32 %v766, 7
  %v768 = vsub.s32 0, %v767
  %v769 = vrot.slane %v500, %v768
  %v770 = vlaneseq
  %v771 = vshrl.u32 %v770, 7
  %v772 = vsub.s32 0, %v771
  %v773 = vrot.slane %v502, %v772
  %v774 = vlaneseq
  %v775 = vshrl.u32 %v774, 7
  %v776 = vsub.s32 0, %v775
  %v777 = vrot.slane %v504, %v776
  %v778 = vlaneseq
  %v779 = vshrl.u32 %v778, 7
  %v780 = vsub.s32 0, %v779
  %v781 = vrot.slane %v528, %v780
  %v782 = vlaneseq
  %v783 = vshrl.u32 %v782, 7
  %v784 = vsub.s32 0, %v783
  %v785 = vrot.slane %v542, %v784
  %v786 = vlaneseq
  %v787 = vshrl.u32 %v786, 7
  %v788 = vsub.s32 0, %v787
  %v789 = vrot.slane %v550, %v788
  %v790 = vlaneseq
  %v791 = vshrl.u32 %v790, 7
  %v792 = vsub.s32 0, %v791
  %v793 = vrot.slane %v552, %v792
  %v794 = vlaneseq
  %v795 = vshrl.u32 %v794, 7
  %v796 = vsub.s32 0, %v795
  %v797 = vrot.slane %v535, %v796
  %v798 = vlaneseq
  %v799 = vshrl.u32 %v798, 7
  %v800 = vsub.s32 0, %v799
  %v801 = vrot.slane %v549, %v800
  %v802 = vlaneseq
  %v803 = vshrl.u32 %v802, 7
  %v804 = vsub.s32 0, %v803
  %v805 = vrot.slane %v551, %v804
  %v806 = vlaneseq
  %v807 = vshrl.u32 %v806, 7
  %v808 = vsub.s32 0, %v807
  %v809 = vrot.slane %v553, %v808
  %vm874 = vcmask 130048
  %v876 = vsel %vm874, %v48, 0
  %v879 = vsel %vm874, %v49, 0
  %v882 = vsel %vm874, %v50, 0
  %v885 = vsel %vm874, %v51, 0
  %v888 = vsel %vm874, %v52, 0
  %v891 = vsel %vm874, %v53, 0
  %v894 = vsel %vm874, %v54, 0
  %v897 = vsel %vm874, %v55, 0
  %v900 = vsel %vm874, %v56, 0
  %v903 = vsel %vm874, %v57, 0
  %v906 = vsel %vm874, %v58, 0
  %v909 = vsel %vm874, %v59, 0
  %v912 = vsel %vm874, %v60, 0
  %v915 = vsel %vm874, %v61, 0
  %v918 = vsel %vm874, %v62, 0
  %v921 = vsel %vm874, %v63, 0
  %v924 = vsel %vm874, %v64, 0
  %v927 = vsel %vm874, %v65, 0
  %v930 = vsel %vm874, %v66, 0
  %v933 = vsel %vm874, %v67, 0
  %v936 = vsel %vm874, %v68, 0
  %v939 = vsel %vm874, %v69, 0
  %v942 = vsel %vm874, %v70, 0
  %v945 = vsel %vm874, %v71, 0
  %v948 = vsel %vm874, %v72, 0
  %v951 = vsel %vm874, %v73, 0
  %v954 = vsel %vm874, %v74, 0
  %v957 = vsel %vm874, %v75, 0
  %v960 = vsel %vm874, %v76, 0
  %v963 = vsel %vm874, %v77, 0
  %v966 = vsel %vm874, %v78, 0
  %v969 = vsel %vm874, %v79, 0
  %v972 = vsel %vm874, %v80, 0
  %v975 = vsel %vm874, %v81, 0
  %v978 = vsel %vm874, %v82, 0
  %v981 = vsel %vm874, %v83, 0
  %v984 = vsel %vm874, %v84, 0
  %v987 = vsel %vm874, %v85, 0
  %v990 = vsel %vm874, %v86, 0
  %v993 = vsel %vm874, %v87, 0
  %v996 = vsel %vm874, %v88, 0
  %v999 = vsel %vm874, %v89, 0
  %v1002 = vsel %vm874, %v90, 0
  %v1005 = vsel %vm874, %v91, 0
  %v1008 = vsel %vm874, %v92, 0
  %v1011 = vsel %vm874, %v93, 0
  %v1014 = vsel %vm874, %v94, 0
  %v1017 = vsel %vm874, %v95, 0
  %v1020 = vsel %vm874, %v96, 0
  %v1023 = vsel %vm874, %v97, 0
  %v1026 = vsel %vm874, %v98, 0
  %v1029 = vsel %vm874, %v99, 0
  %v1032 = vsel %vm874, %v100, 0
  %v1035 = vsel %vm874, %v101, 0
  %v1038 = vsel %vm874, %v102, 0
  %v1041 = vsel %vm874, %v103, 0
  %v1044 = vsel %vm874, %v104, 0
  %v1047 = vsel %vm874, %v105, 0
  %v1050 = vsel %vm874, %v106, 0
  %v1053 = vsel %vm874, %v107, 0
  %v1056 = vsel %vm874, %v108, 0
  %v1059 = vsel %vm874, %v109, 0
  %v1062 = vsel %vm874, %v110, 0
  %v1065 = vsel %vm874, %v111, 0
  %1067 = vmatprep.subr.mxu0 0.0
  %1068 = vmatpush1.msra.mxu0 %v122
  %1069 = vmatprep.subr.mxu0 0.0
  %1070 = vmatpush1.msra.mxu0 %v123
  %1071 = vmatprep.subr.mxu0 0.0
  %1072 = vmatpush1.msra.mxu0 0.0
  %1073 = vmatprep.subr.mxu0 0.0
  %1074 = vmatpush1.msra.mxu0 0.0
  %1075 = vmatprep.subr.mxu0 0.0
  %1076 = vmatpush1.msra.mxu0 0.0
  %1077 = vmatprep.subr.mxu0 0.0
  %1078 = vmatpush1.msra.mxu0 0.0
  %1079 = vmatprep.subr.mxu0 0.0
  %1080 = vmatpush1.msra.mxu0 0.0
  %1081 = vmatprep.subr.mxu0 0.0
  %1082 = vmatpush1.msra.mxu0 0.0
  %1083 = vmatprep.subr.mxu0 0.0
  %1084 = vmatpush1.msra.mxu0 0.0
  %1085 = vmatprep.subr.mxu0 0.0
  %1086 = vmatpush1.msra.mxu0 0.0
  %1087 = vmatprep.subr.mxu0 0.0
  %1088 = vmatpush1.msra.mxu0 0.0
  %1089 = vmatprep.subr.mxu0 0.0
  %1090 = vmatpush1.msra.mxu0 0.0
  %1091 = vmatprep.subr.mxu0 0.0
  %1092 = vmatpush1.msra.mxu0 0.0
  %1093 = vmatprep.subr.mxu0 0.0
  %1094 = vmatpush1.msra.mxu0 0.0
  %1095 = vmatprep.subr.mxu0 0.0
  %1096 = vmatpush1.msra.mxu0 0.0
  %1097 = vmatprep.subr.mxu0 0.0
  %1098 = vmatpush1.msra.mxu0 0.0
  %1099 = vmatprep.subr.mxu0 0.0
  %1100 = vmatpush1.msra.mxu0 0.0
  %1101 = vmatprep.subr.mxu0 0.0
  %1102 = vmatpush1.msra.mxu0 0.0
  %1103 = vmatprep.subr.mxu0 0.0
  %1104 = vmatpush1.msra.mxu0 0.0
  %1105 = vmatprep.subr.mxu0 0.0
  %1106 = vmatpush1.msra.mxu0 0.0
  %1107 = vmatprep.subr.mxu0 0.0
  %1108 = vmatpush1.msra.mxu0 0.0
  %1109 = vmatprep.subr.mxu0 0.0
  %1110 = vmatpush1.msra.mxu0 0.0
  %1111 = vmatprep.subr.mxu0 0.0
  %1112 = vmatpush1.msra.mxu0 0.0
  %1113 = vmatprep.subr.mxu0 0.0
  %1114 = vmatpush1.msra.mxu0 0.0
  %1115 = vmatprep.subr.mxu0 0.0
  %1116 = vmatpush1.msra.mxu0 0.0
  %1117 = vmatprep.subr.mxu0 0.0
  %1118 = vmatpush1.msra.mxu0 0.0
  %1119 = vmatprep.subr.mxu0 0.0
  %1120 = vmatpush1.msra.mxu0 0.0
  %1121 = vmatprep.subr.mxu0 0.0
  %1122 = vmatpush1.msra.mxu0 0.0
  %1123 = vmatprep.subr.mxu0 0.0
  %1124 = vmatpush1.msra.mxu0 0.0
  %1125 = vmatprep.subr.mxu0 0.0
  %1126 = vmatpush1.msra.mxu0 0.0
  %1127 = vmatprep.subr.mxu0 0.0
  %1128 = vmatpush1.msra.mxu0 0.0
  %1129 = vmatprep.subr.mxu0 0.0
  %1130 = vmatpush1.msra.mxu0 0.0
  %1131 = vmatprep.mubr.f32.mxu0 0.0
  %1132 = vmatmul.mubr.f32.gmra.mrb[0].mxu0 %v876
  %v1133 = vpop.f32.mrb[0].mxu0
  %v1134 = vadd.f32 0.0, %v1133
  %v1135 = vpop.f32.mrb[0].mxu0
  %1136 = vmatprep.mubr.f32.mxu0 0.0
  %1137 = vmatmul.mubr.f32.gmra.mrb[0].mxu0 %v879
  %v1138 = vpop.f32.mrb[0].mxu0
  %v1139 = vadd.f32 0.0, %v1138
  %v1140 = vpop.f32.mrb[0].mxu0
  %1141 = vmatprep.mubr.f32.mxu0 0.0
  %1142 = vmatmul.mubr.f32.gmra.mrb[0].mxu0 %v882
  %v1143 = vpop.f32.mrb[0].mxu0
  %v1144 = vadd.f32 0.0, %v1143
  %v1145 = vpop.f32.mrb[0].mxu0
  %1146 = vmatprep.mubr.f32.mxu0 0.0
  %1147 = vmatmul.mubr.f32.gmra.mrb[0].mxu0 %v885
  %v1148 = vpop.f32.mrb[0].mxu0
  %v1149 = vadd.f32 0.0, %v1148
  %v1150 = vpop.f32.mrb[0].mxu0
  %1151 = vmatprep.mubr.f32.mxu0 0.0
  %1152 = vmatmul.mubr.f32.gmra.mrb[0].mxu0 %v888
  %v1153 = vpop.f32.mrb[0].mxu0
  %v1154 = vadd.f32 0.0, %v1153
  %v1155 = vpop.f32.mrb[0].mxu0
  %1156 = vmatprep.mubr.f32.mxu0 0.0
  %1157 = vmatmul.mubr.f32.gmra.mrb[0].mxu0 %v891
  %v1158 = vpop.f32.mrb[0].mxu0
  %v1159 = vadd.f32 0.0, %v1158
  %v1160 = vpop.f32.mrb[0].mxu0
  %1161 = vmatprep.mubr.f32.mxu0 0.0
  %1162 = vmatmul.mubr.f32.gmra.mrb[0].mxu0 %v894
  %v1163 = vpop.f32.mrb[0].mxu0
  %v1164 = vadd.f32 0.0, %v1163
  %v1165 = vpop.f32.mrb[0].mxu0
  %1166 = vmatprep.mubr.f32.mxu0 0.0
  %1167 = vmatmul.mubr.f32.gmra.mrb[0].mxu0 %v897
  %v1168 = vpop.f32.mrb[0].mxu0
  %v1169 = vadd.f32 0.0, %v1168
  %v1170 = vpop.f32.mrb[0].mxu0
  %1171 = vmatprep.mubr.f32.mxu0 0.0
  %1172 = vmatmul.mubr.f32.gmra.mrb[0].mxu0 %v900
  %v1173 = vpop.f32.mrb[0].mxu0
  %v1174 = vadd.f32 0.0, %v1173
  %v1175 = vpop.f32.mrb[0].mxu0
  %1176 = vmatprep.mubr.f32.mxu0 0.0
  %1177 = vmatmul.mubr.f32.gmra.mrb[0].mxu0 %v903
  %v1178 = vpop.f32.mrb[0].mxu0
  %v1179 = vadd.f32 0.0, %v1178
  %v1180 = vpop.f32.mrb[0].mxu0
  %1181 = vmatprep.mubr.f32.mxu0 0.0
  %1182 = vmatmul.mubr.f32.gmra.mrb[0].mxu0 %v906
  %v1183 = vpop.f32.mrb[0].mxu0
  %v1184 = vadd.f32 0.0, %v1183
  %v1185 = vpop.f32.mrb[0].mxu0
  %1186 = vmatprep.mubr.f32.mxu0 0.0
  %1187 = vmatmul.mubr.f32.gmra.mrb[0].mxu0 %v909
  %v1188 = vpop.f32.mrb[0].mxu0
  %v1189 = vadd.f32 0.0, %v1188
  %v1190 = vpop.f32.mrb[0].mxu0
  %1191 = vmatprep.mubr.f32.mxu0 0.0
  %1192 = vmatmul.mubr.f32.gmra.mrb[0].mxu0 %v912
  %v1193 = vpop.f32.mrb[0].mxu0
  %v1194 = vadd.f32 0.0, %v1193
  %v1195 = vpop.f32.mrb[0].mxu0
  %1196 = vmatprep.mubr.f32.mxu0 0.0
  %1197 = vmatmul.mubr.f32.gmra.mrb[0].mxu0 %v915
  %v1198 = vpop.f32.mrb[0].mxu0
  %v1199 = vadd.f32 0.0, %v1198
  %v1200 = vpop.f32.mrb[0].mxu0
  %1201 = vmatprep.mubr.f32.mxu0 0.0
  %1202 = vmatmul.mubr.f32.gmra.mrb[0].mxu0 %v918
  %v1203 = vpop.f32.mrb[0].mxu0
  %v1204 = vadd.f32 0.0, %v1203
  %v1205 = vpop.f32.mrb[0].mxu0
  %1206 = vmatprep.mubr.f32.mxu0 0.0
  %1207 = vmatmul.mubr.f32.gmra.mrb[0].mxu0 %v921
  %v1208 = vpop.f32.mrb[0].mxu0
  %v1209 = vadd.f32 0.0, %v1208
  %v1210 = vpop.f32.mrb[0].mxu0
  %1211 = vmatprep.mubr.f32.mxu0 0.0
  %1212 = vmatmul.mubr.f32.gmra.mrb[0].mxu0 %v924
  %v1213 = vpop.f32.mrb[0].mxu0
  %v1214 = vadd.f32 0.0, %v1213
  %v1215 = vpop.f32.mrb[0].mxu0
  %1216 = vmatprep.mubr.f32.mxu0 0.0
  %1217 = vmatmul.mubr.f32.gmra.mrb[0].mxu0 %v927
  %v1218 = vpop.f32.mrb[0].mxu0
  %v1219 = vadd.f32 0.0, %v1218
  %v1220 = vpop.f32.mrb[0].mxu0
  %1221 = vmatprep.mubr.f32.mxu0 0.0
  %1222 = vmatmul.mubr.f32.gmra.mrb[0].mxu0 %v930
  %v1223 = vpop.f32.mrb[0].mxu0
  %v1224 = vadd.f32 0.0, %v1223
  %v1225 = vpop.f32.mrb[0].mxu0
  %1226 = vmatprep.mubr.f32.mxu0 0.0
  %1227 = vmatmul.mubr.f32.gmra.mrb[0].mxu0 %v933
  %v1228 = vpop.f32.mrb[0].mxu0
  %v1229 = vadd.f32 0.0, %v1228
  %v1230 = vpop.f32.mrb[0].mxu0
  %1231 = vmatprep.mubr.f32.mxu0 0.0
  %1232 = vmatmul.mubr.f32.gmra.mrb[0].mxu0 %v936
  %v1233 = vpop.f32.mrb[0].mxu0
  %v1234 = vadd.f32 0.0, %v1233
  %v1235 = vpop.f32.mrb[0].mxu0
  %1236 = vmatprep.mubr.f32.mxu0 0.0
  %1237 = vmatmul.mubr.f32.gmra.mrb[0].mxu0 %v939
  %v1238 = vpop.f32.mrb[0].mxu0
  %v1239 = vadd.f32 0.0, %v1238
  %v1240 = vpop.f32.mrb[0].mxu0
  %1241 = vmatprep.mubr.f32.mxu0 0.0
  %1242 = vmatmul.mubr.f32.gmra.mrb[0].mxu0 %v942
  %v1243 = vpop.f32.mrb[0].mxu0
  %v1244 = vadd.f32 0.0, %v1243
  %v1245 = vpop.f32.mrb[0].mxu0
  %1246 = vmatprep.mubr.f32.mxu0 0.0
  %1247 = vmatmul.mubr.f32.gmra.mrb[0].mxu0 %v945
  %v1248 = vpop.f32.mrb[0].mxu0
  %v1249 = vadd.f32 0.0, %v1248
  %v1250 = vpop.f32.mrb[0].mxu0
  %1251 = vmatprep.mubr.f32.mxu0 0.0
  %1252 = vmatmul.mubr.f32.gmra.mrb[0].mxu0 %v948
  %v1253 = vpop.f32.mrb[0].mxu0
  %v1254 = vadd.f32 0.0, %v1253
  %v1255 = vpop.f32.mrb[0].mxu0
  %1256 = vmatprep.mubr.f32.mxu0 0.0
  %1257 = vmatmul.mubr.f32.gmra.mrb[0].mxu0 %v951
  %v1258 = vpop.f32.mrb[0].mxu0
  %v1259 = vadd.f32 0.0, %v1258
  %v1260 = vpop.f32.mrb[0].mxu0
  %1261 = vmatprep.mubr.f32.mxu0 0.0
  %1262 = vmatmul.mubr.f32.gmra.mrb[0].mxu0 %v954
  %v1263 = vpop.f32.mrb[0].mxu0
  %v1264 = vadd.f32 0.0, %v1263
  %v1265 = vpop.f32.mrb[0].mxu0
  %1266 = vmatprep.mubr.f32.mxu0 0.0
  %1267 = vmatmul.mubr.f32.gmra.mrb[0].mxu0 %v957
  %v1268 = vpop.f32.mrb[0].mxu0
  %v1269 = vadd.f32 0.0, %v1268
  %v1270 = vpop.f32.mrb[0].mxu0
  %1271 = vmatprep.mubr.f32.mxu0 0.0
  %1272 = vmatmul.mubr.f32.gmra.mrb[0].mxu0 %v960
  %v1273 = vpop.f32.mrb[0].mxu0
  %v1274 = vadd.f32 0.0, %v1273
  %v1275 = vpop.f32.mrb[0].mxu0
  %1276 = vmatprep.mubr.f32.mxu0 0.0
  %1277 = vmatmul.mubr.f32.gmra.mrb[0].mxu0 %v963
  %v1278 = vpop.f32.mrb[0].mxu0
  %v1279 = vadd.f32 0.0, %v1278
  %v1280 = vpop.f32.mrb[0].mxu0
  %1281 = vmatprep.mubr.f32.mxu0 0.0
  %1282 = vmatmul.mubr.f32.gmra.mrb[0].mxu0 %v966
  %v1283 = vpop.f32.mrb[0].mxu0
  %v1284 = vadd.f32 0.0, %v1283
  %v1285 = vpop.f32.mrb[0].mxu0
  %1286 = vmatprep.mubr.f32.mxu0 0.0
  %1287 = vmatmul.mubr.f32.gmra.mrb[0].mxu0 %v969
  %v1288 = vpop.f32.mrb[0].mxu0
  %v1289 = vadd.f32 0.0, %v1288
  %v1290 = vpop.f32.mrb[0].mxu0
  %1291 = vmatprep.mubr.f32.mxu0 0.0
  %1292 = vmatmul.mubr.f32.gmra.mrb[0].mxu0 %v972
  %v1293 = vpop.f32.mrb[0].mxu0
  %v1294 = vadd.f32 0.0, %v1293
  %v1295 = vpop.f32.mrb[0].mxu0
  %1296 = vmatprep.mubr.f32.mxu0 0.0
  %1297 = vmatmul.mubr.f32.gmra.mrb[0].mxu0 %v975
  %v1298 = vpop.f32.mrb[0].mxu0
  %v1299 = vadd.f32 0.0, %v1298
  %v1300 = vpop.f32.mrb[0].mxu0
  %1301 = vmatprep.mubr.f32.mxu0 0.0
  %1302 = vmatmul.mubr.f32.gmra.mrb[0].mxu0 %v978
  %v1303 = vpop.f32.mrb[0].mxu0
  %v1304 = vadd.f32 0.0, %v1303
  %v1305 = vpop.f32.mrb[0].mxu0
  %1306 = vmatprep.mubr.f32.mxu0 0.0
  %1307 = vmatmul.mubr.f32.gmra.mrb[0].mxu0 %v981
  %v1308 = vpop.f32.mrb[0].mxu0
  %v1309 = vadd.f32 0.0, %v1308
  %v1310 = vpop.f32.mrb[0].mxu0
  %1311 = vmatprep.mubr.f32.mxu0 0.0
  %1312 = vmatmul.mubr.f32.gmra.mrb[0].mxu0 %v984
  %v1313 = vpop.f32.mrb[0].mxu0
  %v1314 = vadd.f32 0.0, %v1313
  %v1315 = vpop.f32.mrb[0].mxu0
  %1316 = vmatprep.mubr.f32.mxu0 0.0
  %1317 = vmatmul.mubr.f32.gmra.mrb[0].mxu0 %v987
  %v1318 = vpop.f32.mrb[0].mxu0
  %v1319 = vadd.f32 0.0, %v1318
  %v1320 = vpop.f32.mrb[0].mxu0
  %1321 = vmatprep.mubr.f32.mxu0 0.0
  %1322 = vmatmul.mubr.f32.gmra.mrb[0].mxu0 %v990
  %v1323 = vpop.f32.mrb[0].mxu0
  %v1324 = vadd.f32 0.0, %v1323
  %v1325 = vpop.f32.mrb[0].mxu0
  %1326 = vmatprep.mubr.f32.mxu0 0.0
  %1327 = vmatmul.mubr.f32.gmra.mrb[0].mxu0 %v993
  %v1328 = vpop.f32.mrb[0].mxu0
  %v1329 = vadd.f32 0.0, %v1328
  %v1330 = vpop.f32.mrb[0].mxu0
  %1331 = vmatprep.mubr.f32.mxu0 0.0
  %1332 = vmatmul.mubr.f32.gmra.mrb[0].mxu0 %v996
  %v1333 = vpop.f32.mrb[0].mxu0
  %v1334 = vadd.f32 0.0, %v1333
  %v1335 = vpop.f32.mrb[0].mxu0
  %1336 = vmatprep.mubr.f32.mxu0 0.0
  %1337 = vmatmul.mubr.f32.gmra.mrb[0].mxu0 %v999
  %v1338 = vpop.f32.mrb[0].mxu0
  %v1339 = vadd.f32 0.0, %v1338
  %v1340 = vpop.f32.mrb[0].mxu0
  %1341 = vmatprep.mubr.f32.mxu0 0.0
  %1342 = vmatmul.mubr.f32.gmra.mrb[0].mxu0 %v1002
  %v1343 = vpop.f32.mrb[0].mxu0
  %v1344 = vadd.f32 0.0, %v1343
  %v1345 = vpop.f32.mrb[0].mxu0
  %1346 = vmatprep.mubr.f32.mxu0 0.0
  %1347 = vmatmul.mubr.f32.gmra.mrb[0].mxu0 %v1005
  %v1348 = vpop.f32.mrb[0].mxu0
  %v1349 = vadd.f32 0.0, %v1348
  %v1350 = vpop.f32.mrb[0].mxu0
  %1351 = vmatprep.mubr.f32.mxu0 0.0
  %1352 = vmatmul.mubr.f32.gmra.mrb[0].mxu0 %v1008
  %v1353 = vpop.f32.mrb[0].mxu0
  %v1354 = vadd.f32 0.0, %v1353
  %v1355 = vpop.f32.mrb[0].mxu0
  %1356 = vmatprep.mubr.f32.mxu0 0.0
  %1357 = vmatmul.mubr.f32.gmra.mrb[0].mxu0 %v1011
  %v1358 = vpop.f32.mrb[0].mxu0
  %v1359 = vadd.f32 0.0, %v1358
  %v1360 = vpop.f32.mrb[0].mxu0
  %1361 = vmatprep.mubr.f32.mxu0 0.0
  %1362 = vmatmul.mubr.f32.gmra.mrb[0].mxu0 %v1014
  %v1363 = vpop.f32.mrb[0].mxu0
  %v1364 = vadd.f32 0.0, %v1363
  %v1365 = vpop.f32.mrb[0].mxu0
  %1366 = vmatprep.mubr.f32.mxu0 0.0
  %1367 = vmatmul.mubr.f32.gmra.mrb[0].mxu0 %v1017
  %v1368 = vpop.f32.mrb[0].mxu0
  %v1369 = vadd.f32 0.0, %v1368
  %v1370 = vpop.f32.mrb[0].mxu0
  %1371 = vmatprep.mubr.f32.mxu0 0.0
  %1372 = vmatmul.mubr.f32.gmra.mrb[0].mxu0 %v1020
  %v1373 = vpop.f32.mrb[0].mxu0
  %v1374 = vadd.f32 0.0, %v1373
  %v1375 = vpop.f32.mrb[0].mxu0
  %1376 = vmatprep.mubr.f32.mxu0 0.0
  %1377 = vmatmul.mubr.f32.gmra.mrb[0].mxu0 %v1023
  %v1378 = vpop.f32.mrb[0].mxu0
  %v1379 = vadd.f32 0.0, %v1378
  %v1380 = vpop.f32.mrb[0].mxu0
  %1381 = vmatprep.mubr.f32.mxu0 0.0
  %1382 = vmatmul.mubr.f32.gmra.mrb[0].mxu0 %v1026
  %v1383 = vpop.f32.mrb[0].mxu0
  %v1384 = vadd.f32 0.0, %v1383
  %v1385 = vpop.f32.mrb[0].mxu0
  %1386 = vmatprep.mubr.f32.mxu0 0.0
  %1387 = vmatmul.mubr.f32.gmra.mrb[0].mxu0 %v1029
  %v1388 = vpop.f32.mrb[0].mxu0
  %v1389 = vadd.f32 0.0, %v1388
  %v1390 = vpop.f32.mrb[0].mxu0
  %1391 = vmatprep.mubr.f32.mxu0 0.0
  %1392 = vmatmul.mubr.f32.gmra.mrb[0].mxu0 %v1032
  %v1393 = vpop.f32.mrb[0].mxu0
  %v1394 = vadd.f32 0.0, %v1393
  %v1395 = vpop.f32.mrb[0].mxu0
  %1396 = vmatprep.mubr.f32.mxu0 0.0
  %1397 = vmatmul.mubr.f32.gmra.mrb[0].mxu0 %v1035
  %v1398 = vpop.f32.mrb[0].mxu0
  %v1399 = vadd.f32 0.0, %v1398
  %v1400 = vpop.f32.mrb[0].mxu0
  %1401 = vmatprep.mubr.f32.mxu0 0.0
  %1402 = vmatmul.mubr.f32.gmra.mrb[0].mxu0 %v1038
  %v1403 = vpop.f32.mrb[0].mxu0
  %v1404 = vadd.f32 0.0, %v1403
  %v1405 = vpop.f32.mrb[0].mxu0
  %1406 = vmatprep.mubr.f32.mxu0 0.0
  %1407 = vmatmul.mubr.f32.gmra.mrb[0].mxu0 %v1041
  %v1408 = vpop.f32.mrb[0].mxu0
  %v1409 = vadd.f32 0.0, %v1408
  %v1410 = vpop.f32.mrb[0].mxu0
  %1411 = vmatprep.mubr.f32.mxu0 0.0
  %1412 = vmatmul.mubr.f32.gmra.mrb[0].mxu0 %v1044
  %v1413 = vpop.f32.mrb[0].mxu0
  %v1414 = vadd.f32 0.0, %v1413
  %v1415 = vpop.f32.mrb[0].mxu0
  %1416 = vmatprep.mubr.f32.mxu0 0.0
  %1417 = vmatmul.mubr.f32.gmra.mrb[0].mxu0 %v1047
  %v1418 = vpop.f32.mrb[0].mxu0
  %v1419 = vadd.f32 0.0, %v1418
  %v1420 = vpop.f32.mrb[0].mxu0
  %1421 = vmatprep.mubr.f32.mxu0 0.0
  %1422 = vmatmul.mubr.f32.gmra.mrb[0].mxu0 %v1050
  %v1423 = vpop.f32.mrb[0].mxu0
  %v1424 = vadd.f32 0.0, %v1423
  %v1425 = vpop.f32.mrb[0].mxu0
  %1426 = vmatprep.mubr.f32.mxu0 0.0
  %1427 = vmatmul.mubr.f32.gmra.mrb[0].mxu0 %v1053
  %v1428 = vpop.f32.mrb[0].mxu0
  %v1429 = vadd.f32 0.0, %v1428
  %v1430 = vpop.f32.mrb[0].mxu0
  %1431 = vmatprep.mubr.f32.mxu0 0.0
  %1432 = vmatmul.mubr.f32.gmra.mrb[0].mxu0 %v1056
  %v1433 = vpop.f32.mrb[0].mxu0
  %v1434 = vadd.f32 0.0, %v1433
  %v1435 = vpop.f32.mrb[0].mxu0
  %1436 = vmatprep.mubr.f32.mxu0 0.0
  %1437 = vmatmul.mubr.f32.gmra.mrb[0].mxu0 %v1059
  %v1438 = vpop.f32.mrb[0].mxu0
  %v1439 = vadd.f32 0.0, %v1438
  %v1440 = vpop.f32.mrb[0].mxu0
  %1441 = vmatprep.mubr.f32.mxu0 0.0
  %1442 = vmatmul.mubr.f32.gmra.mrb[0].mxu0 %v1062
  %v1443 = vpop.f32.mrb[0].mxu0
  %v1444 = vadd.f32 0.0, %v1443
  %v1445 = vpop.f32.mrb[0].mxu0
  %1446 = vmatprep.mubr.f32.mxu0 0.0
  %1447 = vmatmul.mubr.f32.gmra.mrb[0].mxu0 %v1065
  %v1448 = vpop.f32.mrb[0].mxu0
  %v1449 = vadd.f32 0.0, %v1448
  %v1450 = vpop.f32.mrb[0].mxu0
  %1451 = vdwg.mxu0
  %v1452 = vsel %vm874, %v557, 0
  %v1454 = vsel %vm874, %v561, 0
  %v1456 = vsel %vm874, %v565, 0
  %v1458 = vsel %vm874, %v569, 0
  %v1460 = vsel %vm874, %v573, 0
  %v1462 = vsel %vm874, %v577, 0
  %v1464 = vsel %vm874, %v581, 0
  %v1466 = vsel %vm874, %v585, 0
  %v1468 = vsel %vm874, %v589, 0
  %v1470 = vsel %vm874, %v593, 0
  %v1472 = vsel %vm874, %v597, 0
  %v1474 = vsel %vm874, %v601, 0
  %v1476 = vsel %vm874, %v605, 0
  %v1478 = vsel %vm874, %v609, 0
  %v1480 = vsel %vm874, %v613, 0
  %v1482 = vsel %vm874, %v617, 0
  %v1484 = vsel %vm874, %v621, 0
  %v1486 = vsel %vm874, %v625, 0
  %v1488 = vsel %vm874, %v629, 0
  %v1490 = vsel %vm874, %v633, 0
  %v1492 = vsel %vm874, %v637, 0
  %v1494 = vsel %vm874, %v641, 0
  %v1496 = vsel %vm874, %v645, 0
  %v1498 = vsel %vm874, %v649, 0
  %v1500 = vsel %vm874, %v653, 0
  %v1502 = vsel %vm874, %v657, 0
  %v1504 = vsel %vm874, %v661, 0
  %v1506 = vsel %vm874, %v665, 0
  %v1508 = vsel %vm874, %v669, 0
  %v1510 = vsel %vm874, %v673, 0
  %v1512 = vsel %vm874, %v677, 0
  %v1514 = vsel %vm874, %v681, 0
  %v1516 = vsel %vm874, %v685, 0
  %v1518 = vsel %vm874, %v689, 0
  %v1520 = vsel %vm874, %v693, 0
  %v1522 = vsel %vm874, %v697, 0
  %v1524 = vsel %vm874, %v701, 0
  %v1526 = vsel %vm874, %v705, 0
  %v1528 = vsel %vm874, %v709, 0
  %v1530 = vsel %vm874, %v713, 0
  %v1532 = vsel %vm874, %v717, 0
  %v1534 = vsel %vm874, %v721, 0
  %v1536 = vsel %vm874, %v725, 0
  %v1538 = vsel %vm874, %v729, 0
  %v1540 = vsel %vm874, %v733, 0
  %v1542 = vsel %vm874, %v737, 0
  %v1544 = vsel %vm874, %v741, 0
  %v1546 = vsel %vm874, %v745, 0
  %v1548 = vsel %vm874, %v749, 0
  %v1550 = vsel %vm874, %v753, 0
  %v1552 = vsel %vm874, %v757, 0
  %v1554 = vsel %vm874, %v761, 0
  %v1556 = vsel %vm874, %v765, 0
  %v1558 = vsel %vm874, %v769, 0
  %v1560 = vsel %vm874, %v773, 0
  %v1562 = vsel %vm874, %v777, 0
  %v1564 = vsel %vm874, %v781, 0
  %v1566 = vsel %vm874, %v785, 0
  %v1568 = vsel %vm874, %v789, 0
  %v1570 = vsel %vm874, %v793, 0
  %v1572 = vsel %vm874, %v797, 0
  %v1574 = vsel %vm874, %v801, 0
  %v1576 = vsel %vm874, %v805, 0
  %v1578 = vsel %vm874, %v809, 0
  %1580 = vmatprep.subr.mxu0 0.0
  %1581 = vmatpush1.msra.mxu0 %v120
  %1582 = vmatprep.subr.mxu0 0.0
  %1583 = vmatpush1.msra.mxu0 %v121
  %1584 = vmatprep.subr.mxu0 0.0
  %1585 = vmatpush1.msra.mxu0 0.0
  %1586 = vmatprep.subr.mxu0 0.0
  %1587 = vmatpush1.msra.mxu0 0.0
  %1588 = vmatprep.subr.mxu0 0.0
  %1589 = vmatpush1.msra.mxu0 0.0
  %1590 = vmatprep.subr.mxu0 0.0
  %1591 = vmatpush1.msra.mxu0 0.0
  %1592 = vmatprep.subr.mxu0 0.0
  %1593 = vmatpush1.msra.mxu0 0.0
  %1594 = vmatprep.subr.mxu0 0.0
  %1595 = vmatpush1.msra.mxu0 0.0
  %1596 = vmatprep.subr.mxu0 0.0
  %1597 = vmatpush1.msra.mxu0 0.0
  %1598 = vmatprep.subr.mxu0 0.0
  %1599 = vmatpush1.msra.mxu0 0.0
  %1600 = vmatprep.subr.mxu0 0.0
  %1601 = vmatpush1.msra.mxu0 0.0
  %1602 = vmatprep.subr.mxu0 0.0
  %1603 = vmatpush1.msra.mxu0 0.0
  %1604 = vmatprep.subr.mxu0 0.0
  %1605 = vmatpush1.msra.mxu0 0.0
  %1606 = vmatprep.subr.mxu0 0.0
  %1607 = vmatpush1.msra.mxu0 0.0
  %1608 = vmatprep.subr.mxu0 0.0
  %1609 = vmatpush1.msra.mxu0 0.0
  %1610 = vmatprep.subr.mxu0 0.0
  %1611 = vmatpush1.msra.mxu0 0.0
  %1612 = vmatprep.subr.mxu0 0.0
  %1613 = vmatpush1.msra.mxu0 0.0
  %1614 = vmatprep.subr.mxu0 0.0
  %1615 = vmatpush1.msra.mxu0 0.0
  %1616 = vmatprep.subr.mxu0 0.0
  %1617 = vmatpush1.msra.mxu0 0.0
  %1618 = vmatprep.subr.mxu0 0.0
  %1619 = vmatpush1.msra.mxu0 0.0
  %1620 = vmatprep.subr.mxu0 0.0
  %1621 = vmatpush1.msra.mxu0 0.0
  %1622 = vmatprep.subr.mxu0 0.0
  %1623 = vmatpush1.msra.mxu0 0.0
  %1624 = vmatprep.subr.mxu0 0.0
  %1625 = vmatpush1.msra.mxu0 0.0
  %1626 = vmatprep.subr.mxu0 0.0
  %1627 = vmatpush1.msra.mxu0 0.0
  %1628 = vmatprep.subr.mxu0 0.0
  %1629 = vmatpush1.msra.mxu0 0.0
  %1630 = vmatprep.subr.mxu0 0.0
  %1631 = vmatpush1.msra.mxu0 0.0
  %1632 = vmatprep.subr.mxu0 0.0
  %1633 = vmatpush1.msra.mxu0 0.0
  %1634 = vmatprep.subr.mxu0 0.0
  %1635 = vmatpush1.msra.mxu0 0.0
  %1636 = vmatprep.subr.mxu0 0.0
  %1637 = vmatpush1.msra.mxu0 0.0
  %1638 = vmatprep.subr.mxu0 0.0
  %1639 = vmatpush1.msra.mxu0 0.0
  %1640 = vmatprep.subr.mxu0 0.0
  %1641 = vmatpush1.msra.mxu0 0.0
  %1642 = vmatprep.subr.mxu0 0.0
  %1643 = vmatpush1.msra.mxu0 0.0
  %1644 = vmatprep.mubr.f32.mxu0 0.0
  %1645 = vmatmul.mubr.f32.gmra.mrb[0].mxu0 %v1452
  %v1646 = vpop.f32.mrb[0].mxu0
  %v1647 = vadd.f32 %v1134, %v1646
  %v1648 = vpop.f32.mrb[0].mxu0
  %1649 = vmatprep.mubr.f32.mxu0 0.0
  %1650 = vmatmul.mubr.f32.gmra.mrb[0].mxu0 %v1454
  %v1651 = vpop.f32.mrb[0].mxu0
  %v1652 = vadd.f32 %v1139, %v1651
  %v1653 = vpop.f32.mrb[0].mxu0
  %1654 = vmatprep.mubr.f32.mxu0 0.0
  %1655 = vmatmul.mubr.f32.gmra.mrb[0].mxu0 %v1456
  %v1656 = vpop.f32.mrb[0].mxu0
  %v1657 = vadd.f32 %v1144, %v1656
  %v1658 = vpop.f32.mrb[0].mxu0
  %1659 = vmatprep.mubr.f32.mxu0 0.0
  %1660 = vmatmul.mubr.f32.gmra.mrb[0].mxu0 %v1458
  %v1661 = vpop.f32.mrb[0].mxu0
  %v1662 = vadd.f32 %v1149, %v1661
  %v1663 = vpop.f32.mrb[0].mxu0
  %1664 = vmatprep.mubr.f32.mxu0 0.0
  %1665 = vmatmul.mubr.f32.gmra.mrb[0].mxu0 %v1460
  %v1666 = vpop.f32.mrb[0].mxu0
  %v1667 = vadd.f32 %v1154, %v1666
  %v1668 = vpop.f32.mrb[0].mxu0
  %1669 = vmatprep.mubr.f32.mxu0 0.0
  %1670 = vmatmul.mubr.f32.gmra.mrb[0].mxu0 %v1462
  %v1671 = vpop.f32.mrb[0].mxu0
  %v1672 = vadd.f32 %v1159, %v1671
  %v1673 = vpop.f32.mrb[0].mxu0
  %1674 = vmatprep.mubr.f32.mxu0 0.0
  %1675 = vmatmul.mubr.f32.gmra.mrb[0].mxu0 %v1464
  %v1676 = vpop.f32.mrb[0].mxu0
  %v1677 = vadd.f32 %v1164, %v1676
  %v1678 = vpop.f32.mrb[0].mxu0
  %1679 = vmatprep.mubr.f32.mxu0 0.0
  %1680 = vmatmul.mubr.f32.gmra.mrb[0].mxu0 %v1466
  %v1681 = vpop.f32.mrb[0].mxu0
  %v1682 = vadd.f32 %v1169, %v1681
  %v1683 = vpop.f32.mrb[0].mxu0
  %1684 = vmatprep.mubr.f32.mxu0 0.0
  %1685 = vmatmul.mubr.f32.gmra.mrb[0].mxu0 %v1468
  %v1686 = vpop.f32.mrb[0].mxu0
  %v1687 = vadd.f32 %v1174, %v1686
  %v1688 = vpop.f32.mrb[0].mxu0
  %1689 = vmatprep.mubr.f32.mxu0 0.0
  %1690 = vmatmul.mubr.f32.gmra.mrb[0].mxu0 %v1470
  %v1691 = vpop.f32.mrb[0].mxu0
  %v1692 = vadd.f32 %v1179, %v1691
  %v1693 = vpop.f32.mrb[0].mxu0
  %1694 = vmatprep.mubr.f32.mxu0 0.0
  %1695 = vmatmul.mubr.f32.gmra.mrb[0].mxu0 %v1472
  %v1696 = vpop.f32.mrb[0].mxu0
  %v1697 = vadd.f32 %v1184, %v1696
  %v1698 = vpop.f32.mrb[0].mxu0
  %1699 = vmatprep.mubr.f32.mxu0 0.0
  %1700 = vmatmul.mubr.f32.gmra.mrb[0].mxu0 %v1474
  %v1701 = vpop.f32.mrb[0].mxu0
  %v1702 = vadd.f32 %v1189, %v1701
  %v1703 = vpop.f32.mrb[0].mxu0
  %1704 = vmatprep.mubr.f32.mxu0 0.0
  %1705 = vmatmul.mubr.f32.gmra.mrb[0].mxu0 %v1476
  %v1706 = vpop.f32.mrb[0].mxu0
  %v1707 = vadd.f32 %v1194, %v1706
  %v1708 = vpop.f32.mrb[0].mxu0
  %1709 = vmatprep.mubr.f32.mxu0 0.0
  %1710 = vmatmul.mubr.f32.gmra.mrb[0].mxu0 %v1478
  %v1711 = vpop.f32.mrb[0].mxu0
  %v1712 = vadd.f32 %v1199, %v1711
  %v1713 = vpop.f32.mrb[0].mxu0
  %1714 = vmatprep.mubr.f32.mxu0 0.0
  %1715 = vmatmul.mubr.f32.gmra.mrb[0].mxu0 %v1480
  %v1716 = vpop.f32.mrb[0].mxu0
  %v1717 = vadd.f32 %v1204, %v1716
  %v1718 = vpop.f32.mrb[0].mxu0
  %1719 = vmatprep.mubr.f32.mxu0 0.0
  %1720 = vmatmul.mubr.f32.gmra.mrb[0].mxu0 %v1482
  %v1721 = vpop.f32.mrb[0].mxu0
  %v1722 = vadd.f32 %v1209, %v1721
  %v1723 = vpop.f32.mrb[0].mxu0
  %1724 = vmatprep.mubr.f32.mxu0 0.0
  %1725 = vmatmul.mubr.f32.gmra.mrb[0].mxu0 %v1484
  %v1726 = vpop.f32.mrb[0].mxu0
  %v1727 = vadd.f32 %v1214, %v1726
  %v1728 = vpop.f32.mrb[0].mxu0
  %1729 = vmatprep.mubr.f32.mxu0 0.0
  %1730 = vmatmul.mubr.f32.gmra.mrb[0].mxu0 %v1486
  %v1731 = vpop.f32.mrb[0].mxu0
  %v1732 = vadd.f32 %v1219, %v1731
  %v1733 = vpop.f32.mrb[0].mxu0
  %1734 = vmatprep.mubr.f32.mxu0 0.0
  %1735 = vmatmul.mubr.f32.gmra.mrb[0].mxu0 %v1488
  %v1736 = vpop.f32.mrb[0].mxu0
  %v1737 = vadd.f32 %v1224, %v1736
  %v1738 = vpop.f32.mrb[0].mxu0
  %1739 = vmatprep.mubr.f32.mxu0 0.0
  %1740 = vmatmul.mubr.f32.gmra.mrb[0].mxu0 %v1490
  %v1741 = vpop.f32.mrb[0].mxu0
  %v1742 = vadd.f32 %v1229, %v1741
  %v1743 = vpop.f32.mrb[0].mxu0
  %1744 = vmatprep.mubr.f32.mxu0 0.0
  %1745 = vmatmul.mubr.f32.gmra.mrb[0].mxu0 %v1492
  %v1746 = vpop.f32.mrb[0].mxu0
  %v1747 = vadd.f32 %v1234, %v1746
  %v1748 = vpop.f32.mrb[0].mxu0
  %1749 = vmatprep.mubr.f32.mxu0 0.0
  %1750 = vmatmul.mubr.f32.gmra.mrb[0].mxu0 %v1494
  %v1751 = vpop.f32.mrb[0].mxu0
  %v1752 = vadd.f32 %v1239, %v1751
  %v1753 = vpop.f32.mrb[0].mxu0
  %1754 = vmatprep.mubr.f32.mxu0 0.0
  %1755 = vmatmul.mubr.f32.gmra.mrb[0].mxu0 %v1496
  %v1756 = vpop.f32.mrb[0].mxu0
  %v1757 = vadd.f32 %v1244, %v1756
  %v1758 = vpop.f32.mrb[0].mxu0
  %1759 = vmatprep.mubr.f32.mxu0 0.0
  %1760 = vmatmul.mubr.f32.gmra.mrb[0].mxu0 %v1498
  %v1761 = vpop.f32.mrb[0].mxu0
  %v1762 = vadd.f32 %v1249, %v1761
  %v1763 = vpop.f32.mrb[0].mxu0
  %1764 = vmatprep.mubr.f32.mxu0 0.0
  %1765 = vmatmul.mubr.f32.gmra.mrb[0].mxu0 %v1500
  %v1766 = vpop.f32.mrb[0].mxu0
  %v1767 = vadd.f32 %v1254, %v1766
  %v1768 = vpop.f32.mrb[0].mxu0
  %1769 = vmatprep.mubr.f32.mxu0 0.0
  %1770 = vmatmul.mubr.f32.gmra.mrb[0].mxu0 %v1502
  %v1771 = vpop.f32.mrb[0].mxu0
  %v1772 = vadd.f32 %v1259, %v1771
  %v1773 = vpop.f32.mrb[0].mxu0
  %1774 = vmatprep.mubr.f32.mxu0 0.0
  %1775 = vmatmul.mubr.f32.gmra.mrb[0].mxu0 %v1504
  %v1776 = vpop.f32.mrb[0].mxu0
  %v1777 = vadd.f32 %v1264, %v1776
  %v1778 = vpop.f32.mrb[0].mxu0
  %1779 = vmatprep.mubr.f32.mxu0 0.0
  %1780 = vmatmul.mubr.f32.gmra.mrb[0].mxu0 %v1506
  %v1781 = vpop.f32.mrb[0].mxu0
  %v1782 = vadd.f32 %v1269, %v1781
  %v1783 = vpop.f32.mrb[0].mxu0
  %1784 = vmatprep.mubr.f32.mxu0 0.0
  %1785 = vmatmul.mubr.f32.gmra.mrb[0].mxu0 %v1508
  %v1786 = vpop.f32.mrb[0].mxu0
  %v1787 = vadd.f32 %v1274, %v1786
  %v1788 = vpop.f32.mrb[0].mxu0
  %1789 = vmatprep.mubr.f32.mxu0 0.0
  %1790 = vmatmul.mubr.f32.gmra.mrb[0].mxu0 %v1510
  %v1791 = vpop.f32.mrb[0].mxu0
  %v1792 = vadd.f32 %v1279, %v1791
  %v1793 = vpop.f32.mrb[0].mxu0
  %1794 = vmatprep.mubr.f32.mxu0 0.0
  %1795 = vmatmul.mubr.f32.gmra.mrb[0].mxu0 %v1512
  %v1796 = vpop.f32.mrb[0].mxu0
  %v1797 = vadd.f32 %v1284, %v1796
  %v1798 = vpop.f32.mrb[0].mxu0
  %1799 = vmatprep.mubr.f32.mxu0 0.0
  %1800 = vmatmul.mubr.f32.gmra.mrb[0].mxu0 %v1514
  %v1801 = vpop.f32.mrb[0].mxu0
  %v1802 = vadd.f32 %v1289, %v1801
  %v1803 = vpop.f32.mrb[0].mxu0
  %1804 = vmatprep.mubr.f32.mxu0 0.0
  %1805 = vmatmul.mubr.f32.gmra.mrb[0].mxu0 %v1516
  %v1806 = vpop.f32.mrb[0].mxu0
  %v1807 = vadd.f32 %v1294, %v1806
  %v1808 = vpop.f32.mrb[0].mxu0
  %1809 = vmatprep.mubr.f32.mxu0 0.0
  %1810 = vmatmul.mubr.f32.gmra.mrb[0].mxu0 %v1518
  %v1811 = vpop.f32.mrb[0].mxu0
  %v1812 = vadd.f32 %v1299, %v1811
  %v1813 = vpop.f32.mrb[0].mxu0
  %1814 = vmatprep.mubr.f32.mxu0 0.0
  %1815 = vmatmul.mubr.f32.gmra.mrb[0].mxu0 %v1520
  %v1816 = vpop.f32.mrb[0].mxu0
  %v1817 = vadd.f32 %v1304, %v1816
  %v1818 = vpop.f32.mrb[0].mxu0
  %1819 = vmatprep.mubr.f32.mxu0 0.0
  %1820 = vmatmul.mubr.f32.gmra.mrb[0].mxu0 %v1522
  %v1821 = vpop.f32.mrb[0].mxu0
  %v1822 = vadd.f32 %v1309, %v1821
  %v1823 = vpop.f32.mrb[0].mxu0
  %1824 = vmatprep.mubr.f32.mxu0 0.0
  %1825 = vmatmul.mubr.f32.gmra.mrb[0].mxu0 %v1524
  %v1826 = vpop.f32.mrb[0].mxu0
  %v1827 = vadd.f32 %v1314, %v1826
  %v1828 = vpop.f32.mrb[0].mxu0
  %1829 = vmatprep.mubr.f32.mxu0 0.0
  %1830 = vmatmul.mubr.f32.gmra.mrb[0].mxu0 %v1526
  %v1831 = vpop.f32.mrb[0].mxu0
  %v1832 = vadd.f32 %v1319, %v1831
  %v1833 = vpop.f32.mrb[0].mxu0
  %1834 = vmatprep.mubr.f32.mxu0 0.0
  %1835 = vmatmul.mubr.f32.gmra.mrb[0].mxu0 %v1528
  %v1836 = vpop.f32.mrb[0].mxu0
  %v1837 = vadd.f32 %v1324, %v1836
  %v1838 = vpop.f32.mrb[0].mxu0
  %1839 = vmatprep.mubr.f32.mxu0 0.0
  %1840 = vmatmul.mubr.f32.gmra.mrb[0].mxu0 %v1530
  %v1841 = vpop.f32.mrb[0].mxu0
  %v1842 = vadd.f32 %v1329, %v1841
  %v1843 = vpop.f32.mrb[0].mxu0
  %1844 = vmatprep.mubr.f32.mxu0 0.0
  %1845 = vmatmul.mubr.f32.gmra.mrb[0].mxu0 %v1532
  %v1846 = vpop.f32.mrb[0].mxu0
  %v1847 = vadd.f32 %v1334, %v1846
  %v1848 = vpop.f32.mrb[0].mxu0
  %1849 = vmatprep.mubr.f32.mxu0 0.0
  %1850 = vmatmul.mubr.f32.gmra.mrb[0].mxu0 %v1534
  %v1851 = vpop.f32.mrb[0].mxu0
  %v1852 = vadd.f32 %v1339, %v1851
  %v1853 = vpop.f32.mrb[0].mxu0
  %1854 = vmatprep.mubr.f32.mxu0 0.0
  %1855 = vmatmul.mubr.f32.gmra.mrb[0].mxu0 %v1536
  %v1856 = vpop.f32.mrb[0].mxu0
  %v1857 = vadd.f32 %v1344, %v1856
  %v1858 = vpop.f32.mrb[0].mxu0
  %1859 = vmatprep.mubr.f32.mxu0 0.0
  %1860 = vmatmul.mubr.f32.gmra.mrb[0].mxu0 %v1538
  %v1861 = vpop.f32.mrb[0].mxu0
  %v1862 = vadd.f32 %v1349, %v1861
  %v1863 = vpop.f32.mrb[0].mxu0
  %1864 = vmatprep.mubr.f32.mxu0 0.0
  %1865 = vmatmul.mubr.f32.gmra.mrb[0].mxu0 %v1540
  %v1866 = vpop.f32.mrb[0].mxu0
  %v1867 = vadd.f32 %v1354, %v1866
  %v1868 = vpop.f32.mrb[0].mxu0
  %1869 = vmatprep.mubr.f32.mxu0 0.0
  %1870 = vmatmul.mubr.f32.gmra.mrb[0].mxu0 %v1542
  %v1871 = vpop.f32.mrb[0].mxu0
  %v1872 = vadd.f32 %v1359, %v1871
  %v1873 = vpop.f32.mrb[0].mxu0
  %1874 = vmatprep.mubr.f32.mxu0 0.0
  %1875 = vmatmul.mubr.f32.gmra.mrb[0].mxu0 %v1544
  %v1876 = vpop.f32.mrb[0].mxu0
  %v1877 = vadd.f32 %v1364, %v1876
  %v1878 = vpop.f32.mrb[0].mxu0
  %1879 = vmatprep.mubr.f32.mxu0 0.0
  %1880 = vmatmul.mubr.f32.gmra.mrb[0].mxu0 %v1546
  %v1881 = vpop.f32.mrb[0].mxu0
  %v1882 = vadd.f32 %v1369, %v1881
  %v1883 = vpop.f32.mrb[0].mxu0
  %1884 = vmatprep.mubr.f32.mxu0 0.0
  %1885 = vmatmul.mubr.f32.gmra.mrb[0].mxu0 %v1548
  %v1886 = vpop.f32.mrb[0].mxu0
  %v1887 = vadd.f32 %v1374, %v1886
  %v1888 = vpop.f32.mrb[0].mxu0
  %1889 = vmatprep.mubr.f32.mxu0 0.0
  %1890 = vmatmul.mubr.f32.gmra.mrb[0].mxu0 %v1550
  %v1891 = vpop.f32.mrb[0].mxu0
  %v1892 = vadd.f32 %v1379, %v1891
  %v1893 = vpop.f32.mrb[0].mxu0
  %1894 = vmatprep.mubr.f32.mxu0 0.0
  %1895 = vmatmul.mubr.f32.gmra.mrb[0].mxu0 %v1552
  %v1896 = vpop.f32.mrb[0].mxu0
  %v1897 = vadd.f32 %v1384, %v1896
  %v1898 = vpop.f32.mrb[0].mxu0
  %1899 = vmatprep.mubr.f32.mxu0 0.0
  %1900 = vmatmul.mubr.f32.gmra.mrb[0].mxu0 %v1554
  %v1901 = vpop.f32.mrb[0].mxu0
  %v1902 = vadd.f32 %v1389, %v1901
  %v1903 = vpop.f32.mrb[0].mxu0
  %1904 = vmatprep.mubr.f32.mxu0 0.0
  %1905 = vmatmul.mubr.f32.gmra.mrb[0].mxu0 %v1556
  %v1906 = vpop.f32.mrb[0].mxu0
  %v1907 = vadd.f32 %v1394, %v1906
  %v1908 = vpop.f32.mrb[0].mxu0
  %1909 = vmatprep.mubr.f32.mxu0 0.0
  %1910 = vmatmul.mubr.f32.gmra.mrb[0].mxu0 %v1558
  %v1911 = vpop.f32.mrb[0].mxu0
  %v1912 = vadd.f32 %v1399, %v1911
  %v1913 = vpop.f32.mrb[0].mxu0
  %1914 = vmatprep.mubr.f32.mxu0 0.0
  %1915 = vmatmul.mubr.f32.gmra.mrb[0].mxu0 %v1560
  %v1916 = vpop.f32.mrb[0].mxu0
  %v1917 = vadd.f32 %v1404, %v1916
  %v1918 = vpop.f32.mrb[0].mxu0
  %1919 = vmatprep.mubr.f32.mxu0 0.0
  %1920 = vmatmul.mubr.f32.gmra.mrb[0].mxu0 %v1562
  %v1921 = vpop.f32.mrb[0].mxu0
  %v1922 = vadd.f32 %v1409, %v1921
  %v1923 = vpop.f32.mrb[0].mxu0
  %1924 = vmatprep.mubr.f32.mxu0 0.0
  %1925 = vmatmul.mubr.f32.gmra.mrb[0].mxu0 %v1564
  %v1926 = vpop.f32.mrb[0].mxu0
  %v1927 = vadd.f32 %v1414, %v1926
  %v1928 = vpop.f32.mrb[0].mxu0
  %1929 = vmatprep.mubr.f32.mxu0 0.0
  %1930 = vmatmul.mubr.f32.gmra.mrb[0].mxu0 %v1566
  %v1931 = vpop.f32.mrb[0].mxu0
  %v1932 = vadd.f32 %v1419, %v1931
  %v1933 = vpop.f32.mrb[0].mxu0
  %1934 = vmatprep.mubr.f32.mxu0 0.0
  %1935 = vmatmul.mubr.f32.gmra.mrb[0].mxu0 %v1568
  %v1936 = vpop.f32.mrb[0].mxu0
  %v1937 = vadd.f32 %v1424, %v1936
  %v1938 = vpop.f32.mrb[0].mxu0
  %1939 = vmatprep.mubr.f32.mxu0 0.0
  %1940 = vmatmul.mubr.f32.gmra.mrb[0].mxu0 %v1570
  %v1941 = vpop.f32.mrb[0].mxu0
  %v1942 = vadd.f32 %v1429, %v1941
  %v1943 = vpop.f32.mrb[0].mxu0
  %1944 = vmatprep.mubr.f32.mxu0 0.0
  %1945 = vmatmul.mubr.f32.gmra.mrb[0].mxu0 %v1572
  %v1946 = vpop.f32.mrb[0].mxu0
  %v1947 = vadd.f32 %v1434, %v1946
  %v1948 = vpop.f32.mrb[0].mxu0
  %1949 = vmatprep.mubr.f32.mxu0 0.0
  %1950 = vmatmul.mubr.f32.gmra.mrb[0].mxu0 %v1574
  %v1951 = vpop.f32.mrb[0].mxu0
  %v1952 = vadd.f32 %v1439, %v1951
  %v1953 = vpop.f32.mrb[0].mxu0
  %1954 = vmatprep.mubr.f32.mxu0 0.0
  %1955 = vmatmul.mubr.f32.gmra.mrb[0].mxu0 %v1576
  %v1956 = vpop.f32.mrb[0].mxu0
  %v1957 = vadd.f32 %v1444, %v1956
  %v1958 = vpop.f32.mrb[0].mxu0
  %1959 = vmatprep.mubr.f32.mxu0 0.0
  %1960 = vmatmul.mubr.f32.gmra.mrb[0].mxu0 %v1578
  %v1961 = vpop.f32.mrb[0].mxu0
  %v1962 = vadd.f32 %v1449, %v1961
  %v1963 = vpop.f32.mrb[0].mxu0
  %1964 = vdwg.mxu0
  %v1965 = vmul.f32 %v557, %v48
  %v1966 = vmul.f32 %v561, %v49
  %v1967 = vmul.f32 %v565, %v50
  %v1968 = vmul.f32 %v569, %v51
  %v1969 = vmul.f32 %v573, %v52
  %v1970 = vmul.f32 %v577, %v53
  %v1971 = vmul.f32 %v581, %v54
  %v1972 = vmul.f32 %v585, %v55
  %v1973 = vmul.f32 %v589, %v56
  %v1974 = vmul.f32 %v593, %v57
  %v1975 = vmul.f32 %v597, %v58
  %v1976 = vmul.f32 %v601, %v59
  %v1977 = vmul.f32 %v605, %v60
  %v1978 = vmul.f32 %v609, %v61
  %v1979 = vmul.f32 %v613, %v62
  %v1980 = vmul.f32 %v617, %v63
  %v1981 = vmul.f32 %v621, %v64
  %v1982 = vmul.f32 %v625, %v65
  %v1983 = vmul.f32 %v629, %v66
  %v1984 = vmul.f32 %v633, %v67
  %v1985 = vmul.f32 %v637, %v68
  %v1986 = vmul.f32 %v641, %v69
  %v1987 = vmul.f32 %v645, %v70
  %v1988 = vmul.f32 %v649, %v71
  %v1989 = vmul.f32 %v653, %v72
  %v1990 = vmul.f32 %v657, %v73
  %v1991 = vmul.f32 %v661, %v74
  %v1992 = vmul.f32 %v665, %v75
  %v1993 = vmul.f32 %v669, %v76
  %v1994 = vmul.f32 %v673, %v77
  %v1995 = vmul.f32 %v677, %v78
  %v1996 = vmul.f32 %v681, %v79
  %v1997 = vmul.f32 %v685, %v80
  %v1998 = vmul.f32 %v689, %v81
  %v1999 = vmul.f32 %v693, %v82
  %v2000 = vmul.f32 %v697, %v83
  %v2001 = vmul.f32 %v701, %v84
  %v2002 = vmul.f32 %v705, %v85
  %v2003 = vmul.f32 %v709, %v86
  %v2004 = vmul.f32 %v713, %v87
  %v2005 = vmul.f32 %v717, %v88
  %v2006 = vmul.f32 %v721, %v89
  %v2007 = vmul.f32 %v725, %v90
  %v2008 = vmul.f32 %v729, %v91
  %v2009 = vmul.f32 %v733, %v92
  %v2010 = vmul.f32 %v737, %v93
  %v2011 = vmul.f32 %v741, %v94
  %v2012 = vmul.f32 %v745, %v95
  %v2013 = vmul.f32 %v749, %v96
  %v2014 = vmul.f32 %v753, %v97
  %v2015 = vmul.f32 %v757, %v98
  %v2016 = vmul.f32 %v761, %v99
  %v2017 = vmul.f32 %v765, %v100
  %v2018 = vmul.f32 %v769, %v101
  %v2019 = vmul.f32 %v773, %v102
  %v2020 = vmul.f32 %v777, %v103
  %v2021 = vmul.f32 %v781, %v104
  %v2022 = vmul.f32 %v785, %v105
  %v2023 = vmul.f32 %v789, %v106
  %v2024 = vmul.f32 %v793, %v107
  %v2025 = vmul.f32 %v797, %v108
  %v2026 = vmul.f32 %v801, %v109
  %v2027 = vmul.f32 %v805, %v110
  %v2028 = vmul.f32 %v809, %v111
  %v2030 = vsel %vm874, %v1965, 0
  %v2033 = vsel %vm874, %v1966, 0
  %v2036 = vsel %vm874, %v1967, 0
  %v2039 = vsel %vm874, %v1968, 0
  %v2042 = vsel %vm874, %v1969, 0
  %v2045 = vsel %vm874, %v1970, 0
  %v2048 = vsel %vm874, %v1971, 0
  %v2051 = vsel %vm874, %v1972, 0
  %v2054 = vsel %vm874, %v1973, 0
  %v2057 = vsel %vm874, %v1974, 0
  %v2060 = vsel %vm874, %v1975, 0
  %v2063 = vsel %vm874, %v1976, 0
  %v2066 = vsel %vm874, %v1977, 0
  %v2069 = vsel %vm874, %v1978, 0
  %v2072 = vsel %vm874, %v1979, 0
  %v2075 = vsel %vm874, %v1980, 0
  %v2078 = vsel %vm874, %v1981, 0
  %v2081 = vsel %vm874, %v1982, 0
  %v2084 = vsel %vm874, %v1983, 0
  %v2087 = vsel %vm874, %v1984, 0
  %v2090 = vsel %vm874, %v1985, 0
  %v2093 = vsel %vm874, %v1986, 0
  %v2096 = vsel %vm874, %v1987, 0
  %v2099 = vsel %vm874, %v1988, 0
  %v2102 = vsel %vm874, %v1989, 0
  %v2105 = vsel %vm874, %v1990, 0
  %v2108 = vsel %vm874, %v1991, 0
  %v2111 = vsel %vm874, %v1992, 0
  %v2114 = vsel %vm874, %v1993, 0
  %v2117 = vsel %vm874, %v1994, 0
  %v2120 = vsel %vm874, %v1995, 0
  %v2123 = vsel %vm874, %v1996, 0
  %v2126 = vsel %vm874, %v1997, 0
  %v2129 = vsel %vm874, %v1998, 0
  %v2132 = vsel %vm874, %v1999, 0
  %v2135 = vsel %vm874, %v2000, 0
  %v2138 = vsel %vm874, %v2001, 0
  %v2141 = vsel %vm874, %v2002, 0
  %v2144 = vsel %vm874, %v2003, 0
  %v2147 = vsel %vm874, %v2004, 0
  %v2150 = vsel %vm874, %v2005, 0
  %v2153 = vsel %vm874, %v2006, 0
  %v2156 = vsel %vm874, %v2007, 0
  %v2159 = vsel %vm874, %v2008, 0
  %v2162 = vsel %vm874, %v2009, 0
  %v2165 = vsel %vm874, %v2010, 0
  %v2168 = vsel %vm874, %v2011, 0
  %v2171 = vsel %vm874, %v2012, 0
  %v2174 = vsel %vm874, %v2013, 0
  %v2177 = vsel %vm874, %v2014, 0
  %v2180 = vsel %vm874, %v2015, 0
  %v2183 = vsel %vm874, %v2016, 0
  %v2186 = vsel %vm874, %v2017, 0
  %v2189 = vsel %vm874, %v2018, 0
  %v2192 = vsel %vm874, %v2019, 0
  %v2195 = vsel %vm874, %v2020, 0
  %v2198 = vsel %vm874, %v2021, 0
  %v2201 = vsel %vm874, %v2022, 0
  %v2204 = vsel %vm874, %v2023, 0
  %v2207 = vsel %vm874, %v2024, 0
  %v2210 = vsel %vm874, %v2025, 0
  %v2213 = vsel %vm874, %v2026, 0
  %v2216 = vsel %vm874, %v2027, 0
  %v2219 = vsel %vm874, %v2028, 0
  %2221 = vmatprep.subr.mxu0 0.0
  %2222 = vmatpush1.msra.mxu0 %v124
  %2223 = vmatprep.subr.mxu0 0.0
  %2224 = vmatpush1.msra.mxu0 %v125
  %2225 = vmatprep.subr.mxu0 0.0
  %2226 = vmatpush1.msra.mxu0 0.0
  %2227 = vmatprep.subr.mxu0 0.0
  %2228 = vmatpush1.msra.mxu0 0.0
  %2229 = vmatprep.subr.mxu0 0.0
  %2230 = vmatpush1.msra.mxu0 0.0
  %2231 = vmatprep.subr.mxu0 0.0
  %2232 = vmatpush1.msra.mxu0 0.0
  %2233 = vmatprep.subr.mxu0 0.0
  %2234 = vmatpush1.msra.mxu0 0.0
  %2235 = vmatprep.subr.mxu0 0.0
  %2236 = vmatpush1.msra.mxu0 0.0
  %2237 = vmatprep.subr.mxu0 0.0
  %2238 = vmatpush1.msra.mxu0 0.0
  %2239 = vmatprep.subr.mxu0 0.0
  %2240 = vmatpush1.msra.mxu0 0.0
  %2241 = vmatprep.subr.mxu0 0.0
  %2242 = vmatpush1.msra.mxu0 0.0
  %2243 = vmatprep.subr.mxu0 0.0
  %2244 = vmatpush1.msra.mxu0 0.0
  %2245 = vmatprep.subr.mxu0 0.0
  %2246 = vmatpush1.msra.mxu0 0.0
  %2247 = vmatprep.subr.mxu0 0.0
  %2248 = vmatpush1.msra.mxu0 0.0
  %2249 = vmatprep.subr.mxu0 0.0
  %2250 = vmatpush1.msra.mxu0 0.0
  %2251 = vmatprep.subr.mxu0 0.0
  %2252 = vmatpush1.msra.mxu0 0.0
  %2253 = vmatprep.subr.mxu0 0.0
  %2254 = vmatpush1.msra.mxu0 0.0
  %2255 = vmatprep.subr.mxu0 0.0
  %2256 = vmatpush1.msra.mxu0 0.0
  %2257 = vmatprep.subr.mxu0 0.0
  %2258 = vmatpush1.msra.mxu0 0.0
  %2259 = vmatprep.subr.mxu0 0.0
  %2260 = vmatpush1.msra.mxu0 0.0
  %2261 = vmatprep.subr.mxu0 0.0
  %2262 = vmatpush1.msra.mxu0 0.0
  %2263 = vmatprep.subr.mxu0 0.0
  %2264 = vmatpush1.msra.mxu0 0.0
  %2265 = vmatprep.subr.mxu0 0.0
  %2266 = vmatpush1.msra.mxu0 0.0
  %2267 = vmatprep.subr.mxu0 0.0
  %2268 = vmatpush1.msra.mxu0 0.0
  %2269 = vmatprep.subr.mxu0 0.0
  %2270 = vmatpush1.msra.mxu0 0.0
  %2271 = vmatprep.subr.mxu0 0.0
  %2272 = vmatpush1.msra.mxu0 0.0
  %2273 = vmatprep.subr.mxu0 0.0
  %2274 = vmatpush1.msra.mxu0 0.0
  %2275 = vmatprep.subr.mxu0 0.0
  %2276 = vmatpush1.msra.mxu0 0.0
  %2277 = vmatprep.subr.mxu0 0.0
  %2278 = vmatpush1.msra.mxu0 0.0
  %2279 = vmatprep.subr.mxu0 0.0
  %2280 = vmatpush1.msra.mxu0 0.0
  %2281 = vmatprep.subr.mxu0 0.0
  %2282 = vmatpush1.msra.mxu0 0.0
  %2283 = vmatprep.subr.mxu0 0.0
  %2284 = vmatpush1.msra.mxu0 0.0
  %2285 = vmatprep.mubr.f32.mxu0 0.0
  %2286 = vmatmul.mubr.f32.gmra.mrb[0].mxu0 %v2030
  %v2287 = vpop.f32.mrb[0].mxu0
  %v2288 = vadd.f32 0.0, %v2287
  %v2289 = vpop.f32.mrb[0].mxu0
  %2290 = vmatprep.mubr.f32.mxu0 0.0
  %2291 = vmatmul.mubr.f32.gmra.mrb[0].mxu0 %v2033
  %v2292 = vpop.f32.mrb[0].mxu0
  %v2293 = vadd.f32 0.0, %v2292
  %v2294 = vpop.f32.mrb[0].mxu0
  %2295 = vmatprep.mubr.f32.mxu0 0.0
  %2296 = vmatmul.mubr.f32.gmra.mrb[0].mxu0 %v2036
  %v2297 = vpop.f32.mrb[0].mxu0
  %v2298 = vadd.f32 0.0, %v2297
  %v2299 = vpop.f32.mrb[0].mxu0
  %2300 = vmatprep.mubr.f32.mxu0 0.0
  %2301 = vmatmul.mubr.f32.gmra.mrb[0].mxu0 %v2039
  %v2302 = vpop.f32.mrb[0].mxu0
  %v2303 = vadd.f32 0.0, %v2302
  %v2304 = vpop.f32.mrb[0].mxu0
  %2305 = vmatprep.mubr.f32.mxu0 0.0
  %2306 = vmatmul.mubr.f32.gmra.mrb[0].mxu0 %v2042
  %v2307 = vpop.f32.mrb[0].mxu0
  %v2308 = vadd.f32 0.0, %v2307
  %v2309 = vpop.f32.mrb[0].mxu0
  %2310 = vmatprep.mubr.f32.mxu0 0.0
  %2311 = vmatmul.mubr.f32.gmra.mrb[0].mxu0 %v2045
  %v2312 = vpop.f32.mrb[0].mxu0
  %v2313 = vadd.f32 0.0, %v2312
  %v2314 = vpop.f32.mrb[0].mxu0
  %2315 = vmatprep.mubr.f32.mxu0 0.0
  %2316 = vmatmul.mubr.f32.gmra.mrb[0].mxu0 %v2048
  %v2317 = vpop.f32.mrb[0].mxu0
  %v2318 = vadd.f32 0.0, %v2317
  %v2319 = vpop.f32.mrb[0].mxu0
  %2320 = vmatprep.mubr.f32.mxu0 0.0
  %2321 = vmatmul.mubr.f32.gmra.mrb[0].mxu0 %v2051
  %v2322 = vpop.f32.mrb[0].mxu0
  %v2323 = vadd.f32 0.0, %v2322
  %v2324 = vpop.f32.mrb[0].mxu0
  %2325 = vmatprep.mubr.f32.mxu0 0.0
  %2326 = vmatmul.mubr.f32.gmra.mrb[0].mxu0 %v2054
  %v2327 = vpop.f32.mrb[0].mxu0
  %v2328 = vadd.f32 0.0, %v2327
  %v2329 = vpop.f32.mrb[0].mxu0
  %2330 = vmatprep.mubr.f32.mxu0 0.0
  %2331 = vmatmul.mubr.f32.gmra.mrb[0].mxu0 %v2057
  %v2332 = vpop.f32.mrb[0].mxu0
  %v2333 = vadd.f32 0.0, %v2332
  %v2334 = vpop.f32.mrb[0].mxu0
  %2335 = vmatprep.mubr.f32.mxu0 0.0
  %2336 = vmatmul.mubr.f32.gmra.mrb[0].mxu0 %v2060
  %v2337 = vpop.f32.mrb[0].mxu0
  %v2338 = vadd.f32 0.0, %v2337
  %v2339 = vpop.f32.mrb[0].mxu0
  %2340 = vmatprep.mubr.f32.mxu0 0.0
  %2341 = vmatmul.mubr.f32.gmra.mrb[0].mxu0 %v2063
  %v2342 = vpop.f32.mrb[0].mxu0
  %v2343 = vadd.f32 0.0, %v2342
  %v2344 = vpop.f32.mrb[0].mxu0
  %2345 = vmatprep.mubr.f32.mxu0 0.0
  %2346 = vmatmul.mubr.f32.gmra.mrb[0].mxu0 %v2066
  %v2347 = vpop.f32.mrb[0].mxu0
  %v2348 = vadd.f32 0.0, %v2347
  %v2349 = vpop.f32.mrb[0].mxu0
  %2350 = vmatprep.mubr.f32.mxu0 0.0
  %2351 = vmatmul.mubr.f32.gmra.mrb[0].mxu0 %v2069
  %v2352 = vpop.f32.mrb[0].mxu0
  %v2353 = vadd.f32 0.0, %v2352
  %v2354 = vpop.f32.mrb[0].mxu0
  %2355 = vmatprep.mubr.f32.mxu0 0.0
  %2356 = vmatmul.mubr.f32.gmra.mrb[0].mxu0 %v2072
  %v2357 = vpop.f32.mrb[0].mxu0
  %v2358 = vadd.f32 0.0, %v2357
  %v2359 = vpop.f32.mrb[0].mxu0
  %2360 = vmatprep.mubr.f32.mxu0 0.0
  %2361 = vmatmul.mubr.f32.gmra.mrb[0].mxu0 %v2075
  %v2362 = vpop.f32.mrb[0].mxu0
  %v2363 = vadd.f32 0.0, %v2362
  %v2364 = vpop.f32.mrb[0].mxu0
  %2365 = vmatprep.mubr.f32.mxu0 0.0
  %2366 = vmatmul.mubr.f32.gmra.mrb[0].mxu0 %v2078
  %v2367 = vpop.f32.mrb[0].mxu0
  %v2368 = vadd.f32 0.0, %v2367
  %v2369 = vpop.f32.mrb[0].mxu0
  %2370 = vmatprep.mubr.f32.mxu0 0.0
  %2371 = vmatmul.mubr.f32.gmra.mrb[0].mxu0 %v2081
  %v2372 = vpop.f32.mrb[0].mxu0
  %v2373 = vadd.f32 0.0, %v2372
  %v2374 = vpop.f32.mrb[0].mxu0
  %2375 = vmatprep.mubr.f32.mxu0 0.0
  %2376 = vmatmul.mubr.f32.gmra.mrb[0].mxu0 %v2084
  %v2377 = vpop.f32.mrb[0].mxu0
  %v2378 = vadd.f32 0.0, %v2377
  %v2379 = vpop.f32.mrb[0].mxu0
  %2380 = vmatprep.mubr.f32.mxu0 0.0
  %2381 = vmatmul.mubr.f32.gmra.mrb[0].mxu0 %v2087
  %v2382 = vpop.f32.mrb[0].mxu0
  %v2383 = vadd.f32 0.0, %v2382
  %v2384 = vpop.f32.mrb[0].mxu0
  %2385 = vmatprep.mubr.f32.mxu0 0.0
  %2386 = vmatmul.mubr.f32.gmra.mrb[0].mxu0 %v2090
  %v2387 = vpop.f32.mrb[0].mxu0
  %v2388 = vadd.f32 0.0, %v2387
  %v2389 = vpop.f32.mrb[0].mxu0
  %2390 = vmatprep.mubr.f32.mxu0 0.0
  %2391 = vmatmul.mubr.f32.gmra.mrb[0].mxu0 %v2093
  %v2392 = vpop.f32.mrb[0].mxu0
  %v2393 = vadd.f32 0.0, %v2392
  %v2394 = vpop.f32.mrb[0].mxu0
  %2395 = vmatprep.mubr.f32.mxu0 0.0
  %2396 = vmatmul.mubr.f32.gmra.mrb[0].mxu0 %v2096
  %v2397 = vpop.f32.mrb[0].mxu0
  %v2398 = vadd.f32 0.0, %v2397
  %v2399 = vpop.f32.mrb[0].mxu0
  %2400 = vmatprep.mubr.f32.mxu0 0.0
  %2401 = vmatmul.mubr.f32.gmra.mrb[0].mxu0 %v2099
  %v2402 = vpop.f32.mrb[0].mxu0
  %v2403 = vadd.f32 0.0, %v2402
  %v2404 = vpop.f32.mrb[0].mxu0
  %2405 = vmatprep.mubr.f32.mxu0 0.0
  %2406 = vmatmul.mubr.f32.gmra.mrb[0].mxu0 %v2102
  %v2407 = vpop.f32.mrb[0].mxu0
  %v2408 = vadd.f32 0.0, %v2407
  %v2409 = vpop.f32.mrb[0].mxu0
  %2410 = vmatprep.mubr.f32.mxu0 0.0
  %2411 = vmatmul.mubr.f32.gmra.mrb[0].mxu0 %v2105
  %v2412 = vpop.f32.mrb[0].mxu0
  %v2413 = vadd.f32 0.0, %v2412
  %v2414 = vpop.f32.mrb[0].mxu0
  %2415 = vmatprep.mubr.f32.mxu0 0.0
  %2416 = vmatmul.mubr.f32.gmra.mrb[0].mxu0 %v2108
  %v2417 = vpop.f32.mrb[0].mxu0
  %v2418 = vadd.f32 0.0, %v2417
  %v2419 = vpop.f32.mrb[0].mxu0
  %2420 = vmatprep.mubr.f32.mxu0 0.0
  %2421 = vmatmul.mubr.f32.gmra.mrb[0].mxu0 %v2111
  %v2422 = vpop.f32.mrb[0].mxu0
  %v2423 = vadd.f32 0.0, %v2422
  %v2424 = vpop.f32.mrb[0].mxu0
  %2425 = vmatprep.mubr.f32.mxu0 0.0
  %2426 = vmatmul.mubr.f32.gmra.mrb[0].mxu0 %v2114
  %v2427 = vpop.f32.mrb[0].mxu0
  %v2428 = vadd.f32 0.0, %v2427
  %v2429 = vpop.f32.mrb[0].mxu0
  %2430 = vmatprep.mubr.f32.mxu0 0.0
  %2431 = vmatmul.mubr.f32.gmra.mrb[0].mxu0 %v2117
  %v2432 = vpop.f32.mrb[0].mxu0
  %v2433 = vadd.f32 0.0, %v2432
  %v2434 = vpop.f32.mrb[0].mxu0
  %2435 = vmatprep.mubr.f32.mxu0 0.0
  %2436 = vmatmul.mubr.f32.gmra.mrb[0].mxu0 %v2120
  %v2437 = vpop.f32.mrb[0].mxu0
  %v2438 = vadd.f32 0.0, %v2437
  %v2439 = vpop.f32.mrb[0].mxu0
  %2440 = vmatprep.mubr.f32.mxu0 0.0
  %2441 = vmatmul.mubr.f32.gmra.mrb[0].mxu0 %v2123
  %v2442 = vpop.f32.mrb[0].mxu0
  %v2443 = vadd.f32 0.0, %v2442
  %v2444 = vpop.f32.mrb[0].mxu0
  %2445 = vmatprep.mubr.f32.mxu0 0.0
  %2446 = vmatmul.mubr.f32.gmra.mrb[0].mxu0 %v2126
  %v2447 = vpop.f32.mrb[0].mxu0
  %v2448 = vadd.f32 0.0, %v2447
  %v2449 = vpop.f32.mrb[0].mxu0
  %2450 = vmatprep.mubr.f32.mxu0 0.0
  %2451 = vmatmul.mubr.f32.gmra.mrb[0].mxu0 %v2129
  %v2452 = vpop.f32.mrb[0].mxu0
  %v2453 = vadd.f32 0.0, %v2452
  %v2454 = vpop.f32.mrb[0].mxu0
  %2455 = vmatprep.mubr.f32.mxu0 0.0
  %2456 = vmatmul.mubr.f32.gmra.mrb[0].mxu0 %v2132
  %v2457 = vpop.f32.mrb[0].mxu0
  %v2458 = vadd.f32 0.0, %v2457
  %v2459 = vpop.f32.mrb[0].mxu0
  %2460 = vmatprep.mubr.f32.mxu0 0.0
  %2461 = vmatmul.mubr.f32.gmra.mrb[0].mxu0 %v2135
  %v2462 = vpop.f32.mrb[0].mxu0
  %v2463 = vadd.f32 0.0, %v2462
  %v2464 = vpop.f32.mrb[0].mxu0
  %2465 = vmatprep.mubr.f32.mxu0 0.0
  %2466 = vmatmul.mubr.f32.gmra.mrb[0].mxu0 %v2138
  %v2467 = vpop.f32.mrb[0].mxu0
  %v2468 = vadd.f32 0.0, %v2467
  %v2469 = vpop.f32.mrb[0].mxu0
  %2470 = vmatprep.mubr.f32.mxu0 0.0
  %2471 = vmatmul.mubr.f32.gmra.mrb[0].mxu0 %v2141
  %v2472 = vpop.f32.mrb[0].mxu0
  %v2473 = vadd.f32 0.0, %v2472
  %v2474 = vpop.f32.mrb[0].mxu0
  %2475 = vmatprep.mubr.f32.mxu0 0.0
  %2476 = vmatmul.mubr.f32.gmra.mrb[0].mxu0 %v2144
  %v2477 = vpop.f32.mrb[0].mxu0
  %v2478 = vadd.f32 0.0, %v2477
  %v2479 = vpop.f32.mrb[0].mxu0
  %2480 = vmatprep.mubr.f32.mxu0 0.0
  %2481 = vmatmul.mubr.f32.gmra.mrb[0].mxu0 %v2147
  %v2482 = vpop.f32.mrb[0].mxu0
  %v2483 = vadd.f32 0.0, %v2482
  %v2484 = vpop.f32.mrb[0].mxu0
  %2485 = vmatprep.mubr.f32.mxu0 0.0
  %2486 = vmatmul.mubr.f32.gmra.mrb[0].mxu0 %v2150
  %v2487 = vpop.f32.mrb[0].mxu0
  %v2488 = vadd.f32 0.0, %v2487
  %v2489 = vpop.f32.mrb[0].mxu0
  %2490 = vmatprep.mubr.f32.mxu0 0.0
  %2491 = vmatmul.mubr.f32.gmra.mrb[0].mxu0 %v2153
  %v2492 = vpop.f32.mrb[0].mxu0
  %v2493 = vadd.f32 0.0, %v2492
  %v2494 = vpop.f32.mrb[0].mxu0
  %2495 = vmatprep.mubr.f32.mxu0 0.0
  %2496 = vmatmul.mubr.f32.gmra.mrb[0].mxu0 %v2156
  %v2497 = vpop.f32.mrb[0].mxu0
  %v2498 = vadd.f32 0.0, %v2497
  %v2499 = vpop.f32.mrb[0].mxu0
  %2500 = vmatprep.mubr.f32.mxu0 0.0
  %2501 = vmatmul.mubr.f32.gmra.mrb[0].mxu0 %v2159
  %v2502 = vpop.f32.mrb[0].mxu0
  %v2503 = vadd.f32 0.0, %v2502
  %v2504 = vpop.f32.mrb[0].mxu0
  %2505 = vmatprep.mubr.f32.mxu0 0.0
  %2506 = vmatmul.mubr.f32.gmra.mrb[0].mxu0 %v2162
  %v2507 = vpop.f32.mrb[0].mxu0
  %v2508 = vadd.f32 0.0, %v2507
  %v2509 = vpop.f32.mrb[0].mxu0
  %2510 = vmatprep.mubr.f32.mxu0 0.0
  %2511 = vmatmul.mubr.f32.gmra.mrb[0].mxu0 %v2165
  %v2512 = vpop.f32.mrb[0].mxu0
  %v2513 = vadd.f32 0.0, %v2512
  %v2514 = vpop.f32.mrb[0].mxu0
  %2515 = vmatprep.mubr.f32.mxu0 0.0
  %2516 = vmatmul.mubr.f32.gmra.mrb[0].mxu0 %v2168
  %v2517 = vpop.f32.mrb[0].mxu0
  %v2518 = vadd.f32 0.0, %v2517
  %v2519 = vpop.f32.mrb[0].mxu0
  %2520 = vmatprep.mubr.f32.mxu0 0.0
  %2521 = vmatmul.mubr.f32.gmra.mrb[0].mxu0 %v2171
  %v2522 = vpop.f32.mrb[0].mxu0
  %v2523 = vadd.f32 0.0, %v2522
  %v2524 = vpop.f32.mrb[0].mxu0
  %2525 = vmatprep.mubr.f32.mxu0 0.0
  %2526 = vmatmul.mubr.f32.gmra.mrb[0].mxu0 %v2174
  %v2527 = vpop.f32.mrb[0].mxu0
  %v2528 = vadd.f32 0.0, %v2527
  %v2529 = vpop.f32.mrb[0].mxu0
  %2530 = vmatprep.mubr.f32.mxu0 0.0
  %2531 = vmatmul.mubr.f32.gmra.mrb[0].mxu0 %v2177
  %v2532 = vpop.f32.mrb[0].mxu0
  %v2533 = vadd.f32 0.0, %v2532
  %v2534 = vpop.f32.mrb[0].mxu0
  %2535 = vmatprep.mubr.f32.mxu0 0.0
  %2536 = vmatmul.mubr.f32.gmra.mrb[0].mxu0 %v2180
  %v2537 = vpop.f32.mrb[0].mxu0
  %v2538 = vadd.f32 0.0, %v2537
  %v2539 = vpop.f32.mrb[0].mxu0
  %2540 = vmatprep.mubr.f32.mxu0 0.0
  %2541 = vmatmul.mubr.f32.gmra.mrb[0].mxu0 %v2183
  %v2542 = vpop.f32.mrb[0].mxu0
  %v2543 = vadd.f32 0.0, %v2542
  %v2544 = vpop.f32.mrb[0].mxu0
  %2545 = vmatprep.mubr.f32.mxu0 0.0
  %2546 = vmatmul.mubr.f32.gmra.mrb[0].mxu0 %v2186
  %v2547 = vpop.f32.mrb[0].mxu0
  %v2548 = vadd.f32 0.0, %v2547
  %v2549 = vpop.f32.mrb[0].mxu0
  %2550 = vmatprep.mubr.f32.mxu0 0.0
  %2551 = vmatmul.mubr.f32.gmra.mrb[0].mxu0 %v2189
  %v2552 = vpop.f32.mrb[0].mxu0
  %v2553 = vadd.f32 0.0, %v2552
  %v2554 = vpop.f32.mrb[0].mxu0
  %2555 = vmatprep.mubr.f32.mxu0 0.0
  %2556 = vmatmul.mubr.f32.gmra.mrb[0].mxu0 %v2192
  %v2557 = vpop.f32.mrb[0].mxu0
  %v2558 = vadd.f32 0.0, %v2557
  %v2559 = vpop.f32.mrb[0].mxu0
  %2560 = vmatprep.mubr.f32.mxu0 0.0
  %2561 = vmatmul.mubr.f32.gmra.mrb[0].mxu0 %v2195
  %v2562 = vpop.f32.mrb[0].mxu0
  %v2563 = vadd.f32 0.0, %v2562
  %v2564 = vpop.f32.mrb[0].mxu0
  %2565 = vmatprep.mubr.f32.mxu0 0.0
  %2566 = vmatmul.mubr.f32.gmra.mrb[0].mxu0 %v2198
  %v2567 = vpop.f32.mrb[0].mxu0
  %v2568 = vadd.f32 0.0, %v2567
  %v2569 = vpop.f32.mrb[0].mxu0
  %2570 = vmatprep.mubr.f32.mxu0 0.0
  %2571 = vmatmul.mubr.f32.gmra.mrb[0].mxu0 %v2201
  %v2572 = vpop.f32.mrb[0].mxu0
  %v2573 = vadd.f32 0.0, %v2572
  %v2574 = vpop.f32.mrb[0].mxu0
  %2575 = vmatprep.mubr.f32.mxu0 0.0
  %2576 = vmatmul.mubr.f32.gmra.mrb[0].mxu0 %v2204
  %v2577 = vpop.f32.mrb[0].mxu0
  %v2578 = vadd.f32 0.0, %v2577
  %v2579 = vpop.f32.mrb[0].mxu0
  %2580 = vmatprep.mubr.f32.mxu0 0.0
  %2581 = vmatmul.mubr.f32.gmra.mrb[0].mxu0 %v2207
  %v2582 = vpop.f32.mrb[0].mxu0
  %v2583 = vadd.f32 0.0, %v2582
  %v2584 = vpop.f32.mrb[0].mxu0
  %2585 = vmatprep.mubr.f32.mxu0 0.0
  %2586 = vmatmul.mubr.f32.gmra.mrb[0].mxu0 %v2210
  %v2587 = vpop.f32.mrb[0].mxu0
  %v2588 = vadd.f32 0.0, %v2587
  %v2589 = vpop.f32.mrb[0].mxu0
  %2590 = vmatprep.mubr.f32.mxu0 0.0
  %2591 = vmatmul.mubr.f32.gmra.mrb[0].mxu0 %v2213
  %v2592 = vpop.f32.mrb[0].mxu0
  %v2593 = vadd.f32 0.0, %v2592
  %v2594 = vpop.f32.mrb[0].mxu0
  %2595 = vmatprep.mubr.f32.mxu0 0.0
  %2596 = vmatmul.mubr.f32.gmra.mrb[0].mxu0 %v2216
  %v2597 = vpop.f32.mrb[0].mxu0
  %v2598 = vadd.f32 0.0, %v2597
  %v2599 = vpop.f32.mrb[0].mxu0
  %2600 = vmatprep.mubr.f32.mxu0 0.0
  %2601 = vmatmul.mubr.f32.gmra.mrb[0].mxu0 %v2219
  %v2602 = vpop.f32.mrb[0].mxu0
  %v2603 = vadd.f32 0.0, %v2602
  %v2604 = vpop.f32.mrb[0].mxu0
  %2605 = vdwg.mxu0
  %v2606 = vadd.f32 %v1647, %v2288
  %v2607 = vadd.f32 %v1652, %v2293
  %v2608 = vadd.f32 %v1657, %v2298
  %v2609 = vadd.f32 %v1662, %v2303
  %v2610 = vadd.f32 %v1667, %v2308
  %v2611 = vadd.f32 %v1672, %v2313
  %v2612 = vadd.f32 %v1677, %v2318
  %v2613 = vadd.f32 %v1682, %v2323
  %v2614 = vadd.f32 %v1687, %v2328
  %v2615 = vadd.f32 %v1692, %v2333
  %v2616 = vadd.f32 %v1697, %v2338
  %v2617 = vadd.f32 %v1702, %v2343
  %v2618 = vadd.f32 %v1707, %v2348
  %v2619 = vadd.f32 %v1712, %v2353
  %v2620 = vadd.f32 %v1717, %v2358
  %v2621 = vadd.f32 %v1722, %v2363
  %v2622 = vadd.f32 %v1727, %v2368
  %v2623 = vadd.f32 %v1732, %v2373
  %v2624 = vadd.f32 %v1737, %v2378
  %v2625 = vadd.f32 %v1742, %v2383
  %v2626 = vadd.f32 %v1747, %v2388
  %v2627 = vadd.f32 %v1752, %v2393
  %v2628 = vadd.f32 %v1757, %v2398
  %v2629 = vadd.f32 %v1762, %v2403
  %v2630 = vadd.f32 %v1767, %v2408
  %v2631 = vadd.f32 %v1772, %v2413
  %v2632 = vadd.f32 %v1777, %v2418
  %v2633 = vadd.f32 %v1782, %v2423
  %v2634 = vadd.f32 %v1787, %v2428
  %v2635 = vadd.f32 %v1792, %v2433
  %v2636 = vadd.f32 %v1797, %v2438
  %v2637 = vadd.f32 %v1802, %v2443
  %v2638 = vadd.f32 %v1807, %v2448
  %v2639 = vadd.f32 %v1812, %v2453
  %v2640 = vadd.f32 %v1817, %v2458
  %v2641 = vadd.f32 %v1822, %v2463
  %v2642 = vadd.f32 %v1827, %v2468
  %v2643 = vadd.f32 %v1832, %v2473
  %v2644 = vadd.f32 %v1837, %v2478
  %v2645 = vadd.f32 %v1842, %v2483
  %v2646 = vadd.f32 %v1847, %v2488
  %v2647 = vadd.f32 %v1852, %v2493
  %v2648 = vadd.f32 %v1857, %v2498
  %v2649 = vadd.f32 %v1862, %v2503
  %v2650 = vadd.f32 %v1867, %v2508
  %v2651 = vadd.f32 %v1872, %v2513
  %v2652 = vadd.f32 %v1877, %v2518
  %v2653 = vadd.f32 %v1882, %v2523
  %v2654 = vadd.f32 %v1887, %v2528
  %v2655 = vadd.f32 %v1892, %v2533
  %v2656 = vadd.f32 %v1897, %v2538
  %v2657 = vadd.f32 %v1902, %v2543
  %v2658 = vadd.f32 %v1907, %v2548
  %v2659 = vadd.f32 %v1912, %v2553
  %v2660 = vadd.f32 %v1917, %v2558
  %v2661 = vadd.f32 %v1922, %v2563
  %v2662 = vadd.f32 %v1927, %v2568
  %v2663 = vadd.f32 %v1932, %v2573
  %v2664 = vadd.f32 %v1937, %v2578
  %v2665 = vadd.f32 %v1942, %v2583
  %v2666 = vadd.f32 %v1947, %v2588
  %v2667 = vadd.f32 %v1952, %v2593
  %v2668 = vadd.f32 %v1957, %v2598
  %v2669 = vadd.f32 %v1962, %v2603
  %v2670 = vlaneseq
  %v2671 = vshrl.u32 %v2670, 7
  %v2672 = vsub.s32 0, %v2671
  %v2673 = vrot.slane %v126, %v2672
  %v2674 = vadd.f32 %v2606, %v2673
  %v2675 = vadd.f32 %v2607, %v2673
  %v2676 = vadd.f32 %v2608, %v2673
  %v2677 = vadd.f32 %v2609, %v2673
  %v2678 = vadd.f32 %v2610, %v2673
  %v2679 = vadd.f32 %v2611, %v2673
  %v2680 = vadd.f32 %v2612, %v2673
  %v2681 = vadd.f32 %v2613, %v2673
  %v2682 = vadd.f32 %v2614, %v2673
  %v2683 = vadd.f32 %v2615, %v2673
  %v2684 = vadd.f32 %v2616, %v2673
  %v2685 = vadd.f32 %v2617, %v2673
  %v2686 = vadd.f32 %v2618, %v2673
  %v2687 = vadd.f32 %v2619, %v2673
  %v2688 = vadd.f32 %v2620, %v2673
  %v2689 = vadd.f32 %v2621, %v2673
  %v2690 = vadd.f32 %v2622, %v2673
  %v2691 = vadd.f32 %v2623, %v2673
  %v2692 = vadd.f32 %v2624, %v2673
  %v2693 = vadd.f32 %v2625, %v2673
  %v2694 = vadd.f32 %v2626, %v2673
  %v2695 = vadd.f32 %v2627, %v2673
  %v2696 = vadd.f32 %v2628, %v2673
  %v2697 = vadd.f32 %v2629, %v2673
  %v2698 = vadd.f32 %v2630, %v2673
  %v2699 = vadd.f32 %v2631, %v2673
  %v2700 = vadd.f32 %v2632, %v2673
  %v2701 = vadd.f32 %v2633, %v2673
  %v2702 = vadd.f32 %v2634, %v2673
  %v2703 = vadd.f32 %v2635, %v2673
  %v2704 = vadd.f32 %v2636, %v2673
  %v2705 = vadd.f32 %v2637, %v2673
  %v2706 = vadd.f32 %v2638, %v2673
  %v2707 = vadd.f32 %v2639, %v2673
  %v2708 = vadd.f32 %v2640, %v2673
  %v2709 = vadd.f32 %v2641, %v2673
  %v2710 = vadd.f32 %v2642, %v2673
  %v2711 = vadd.f32 %v2643, %v2673
  %v2712 = vadd.f32 %v2644, %v2673
  %v2713 = vadd.f32 %v2645, %v2673
  %v2714 = vadd.f32 %v2646, %v2673
  %v2715 = vadd.f32 %v2647, %v2673
  %v2716 = vadd.f32 %v2648, %v2673
  %v2717 = vadd.f32 %v2649, %v2673
  %v2718 = vadd.f32 %v2650, %v2673
  %v2719 = vadd.f32 %v2651, %v2673
  %v2720 = vadd.f32 %v2652, %v2673
  %v2721 = vadd.f32 %v2653, %v2673
  %v2722 = vadd.f32 %v2654, %v2673
  %v2723 = vadd.f32 %v2655, %v2673
  %v2724 = vadd.f32 %v2656, %v2673
  %v2725 = vadd.f32 %v2657, %v2673
  %v2726 = vadd.f32 %v2658, %v2673
  %v2727 = vadd.f32 %v2659, %v2673
  %v2728 = vadd.f32 %v2660, %v2673
  %v2729 = vadd.f32 %v2661, %v2673
  %v2730 = vadd.f32 %v2662, %v2673
  %v2731 = vadd.f32 %v2663, %v2673
  %v2732 = vadd.f32 %v2664, %v2673
  %v2733 = vadd.f32 %v2665, %v2673
  %v2734 = vadd.f32 %v2666, %v2673
  %v2735 = vadd.f32 %v2667, %v2673
  %v2736 = vadd.f32 %v2668, %v2673
  %v2737 = vadd.f32 %v2669, %v2673
  %v2738 = vmax.f32 %v2674, 0.0
  %v2739 = vmax.f32 %v2675, 0.0
  %v2740 = vmax.f32 %v2676, 0.0
  %v2741 = vmax.f32 %v2677, 0.0
  %v2742 = vmax.f32 %v2678, 0.0
  %v2743 = vmax.f32 %v2679, 0.0
  %v2744 = vmax.f32 %v2680, 0.0
  %v2745 = vmax.f32 %v2681, 0.0
  %v2746 = vmax.f32 %v2682, 0.0
  %v2747 = vmax.f32 %v2683, 0.0
  %v2748 = vmax.f32 %v2684, 0.0
  %v2749 = vmax.f32 %v2685, 0.0
  %v2750 = vmax.f32 %v2686, 0.0
  %v2751 = vmax.f32 %v2687, 0.0
  %v2752 = vmax.f32 %v2688, 0.0
  %v2753 = vmax.f32 %v2689, 0.0
  %v2754 = vmax.f32 %v2690, 0.0
  %v2755 = vmax.f32 %v2691, 0.0
  %v2756 = vmax.f32 %v2692, 0.0
  %v2757 = vmax.f32 %v2693, 0.0
  %v2758 = vmax.f32 %v2694, 0.0
  %v2759 = vmax.f32 %v2695, 0.0
  %v2760 = vmax.f32 %v2696, 0.0
  %v2761 = vmax.f32 %v2697, 0.0
  %v2762 = vmax.f32 %v2698, 0.0
  %v2763 = vmax.f32 %v2699, 0.0
  %v2764 = vmax.f32 %v2700, 0.0
  %v2765 = vmax.f32 %v2701, 0.0
  %v2766 = vmax.f32 %v2702, 0.0
  %v2767 = vmax.f32 %v2703, 0.0
  %v2768 = vmax.f32 %v2704, 0.0
  %v2769 = vmax.f32 %v2705, 0.0
  %v2770 = vmax.f32 %v2706, 0.0
  %v2771 = vmax.f32 %v2707, 0.0
  %v2772 = vmax.f32 %v2708, 0.0
  %v2773 = vmax.f32 %v2709, 0.0
  %v2774 = vmax.f32 %v2710, 0.0
  %v2775 = vmax.f32 %v2711, 0.0
  %v2776 = vmax.f32 %v2712, 0.0
  %v2777 = vmax.f32 %v2713, 0.0
  %v2778 = vmax.f32 %v2714, 0.0
  %v2779 = vmax.f32 %v2715, 0.0
  %v2780 = vmax.f32 %v2716, 0.0
  %v2781 = vmax.f32 %v2717, 0.0
  %v2782 = vmax.f32 %v2718, 0.0
  %v2783 = vmax.f32 %v2719, 0.0
  %v2784 = vmax.f32 %v2720, 0.0
  %v2785 = vmax.f32 %v2721, 0.0
  %v2786 = vmax.f32 %v2722, 0.0
  %v2787 = vmax.f32 %v2723, 0.0
  %v2788 = vmax.f32 %v2724, 0.0
  %v2789 = vmax.f32 %v2725, 0.0
  %v2790 = vmax.f32 %v2726, 0.0
  %v2791 = vmax.f32 %v2727, 0.0
  %v2792 = vmax.f32 %v2728, 0.0
  %v2793 = vmax.f32 %v2729, 0.0
  %v2794 = vmax.f32 %v2730, 0.0
  %v2795 = vmax.f32 %v2731, 0.0
  %v2796 = vmax.f32 %v2732, 0.0
  %v2797 = vmax.f32 %v2733, 0.0
  %v2798 = vmax.f32 %v2734, 0.0
  %v2799 = vmax.f32 %v2735, 0.0
  %v2800 = vmax.f32 %v2736, 0.0
  %v2801 = vmax.f32 %v2737, 0.0
  %v2802 = vlaneseq
  %v2803 = vshrl.u32 %v2802, 7
  %v2804 = vsub.s32 0, %v2803
  %v2805 = vrot.slane %v135, %v2804
  %vm2806 = vcmask 523264
  %v2808 = vsel %vm2806, %v2738, 0
  %v2811 = vsel %vm2806, %v2739, 0
  %v2814 = vsel %vm2806, %v2740, 0
  %v2817 = vsel %vm2806, %v2741, 0
  %v2820 = vsel %vm2806, %v2742, 0
  %v2823 = vsel %vm2806, %v2743, 0
  %v2826 = vsel %vm2806, %v2744, 0
  %v2829 = vsel %vm2806, %v2745, 0
  %v2832 = vsel %vm2806, %v2746, 0
  %v2835 = vsel %vm2806, %v2747, 0
  %v2838 = vsel %vm2806, %v2748, 0
  %v2841 = vsel %vm2806, %v2749, 0
  %v2844 = vsel %vm2806, %v2750, 0
  %v2847 = vsel %vm2806, %v2751, 0
  %v2850 = vsel %vm2806, %v2752, 0
  %v2853 = vsel %vm2806, %v2753, 0
  %v2856 = vsel %vm2806, %v2754, 0
  %v2859 = vsel %vm2806, %v2755, 0
  %v2862 = vsel %vm2806, %v2756, 0
  %v2865 = vsel %vm2806, %v2757, 0
  %v2868 = vsel %vm2806, %v2758, 0
  %v2871 = vsel %vm2806, %v2759, 0
  %v2874 = vsel %vm2806, %v2760, 0
  %v2877 = vsel %vm2806, %v2761, 0
  %v2880 = vsel %vm2806, %v2762, 0
  %v2883 = vsel %vm2806, %v2763, 0
  %v2886 = vsel %vm2806, %v2764, 0
  %v2889 = vsel %vm2806, %v2765, 0
  %v2892 = vsel %vm2806, %v2766, 0
  %v2895 = vsel %vm2806, %v2767, 0
  %v2898 = vsel %vm2806, %v2768, 0
  %v2901 = vsel %vm2806, %v2769, 0
  %v2904 = vsel %vm2806, %v2770, 0
  %v2907 = vsel %vm2806, %v2771, 0
  %v2910 = vsel %vm2806, %v2772, 0
  %v2913 = vsel %vm2806, %v2773, 0
  %v2916 = vsel %vm2806, %v2774, 0
  %v2919 = vsel %vm2806, %v2775, 0
  %v2922 = vsel %vm2806, %v2776, 0
  %v2925 = vsel %vm2806, %v2777, 0
  %v2928 = vsel %vm2806, %v2778, 0
  %v2931 = vsel %vm2806, %v2779, 0
  %v2934 = vsel %vm2806, %v2780, 0
  %v2937 = vsel %vm2806, %v2781, 0
  %v2940 = vsel %vm2806, %v2782, 0
  %v2943 = vsel %vm2806, %v2783, 0
  %v2946 = vsel %vm2806, %v2784, 0
  %v2949 = vsel %vm2806, %v2785, 0
  %v2952 = vsel %vm2806, %v2786, 0
  %v2955 = vsel %vm2806, %v2787, 0
  %v2958 = vsel %vm2806, %v2788, 0
  %v2961 = vsel %vm2806, %v2789, 0
  %v2964 = vsel %vm2806, %v2790, 0
  %v2967 = vsel %vm2806, %v2791, 0
  %v2970 = vsel %vm2806, %v2792, 0
  %v2973 = vsel %vm2806, %v2793, 0
  %v2976 = vsel %vm2806, %v2794, 0
  %v2979 = vsel %vm2806, %v2795, 0
  %v2982 = vsel %vm2806, %v2796, 0
  %v2985 = vsel %vm2806, %v2797, 0
  %v2988 = vsel %vm2806, %v2798, 0
  %v2991 = vsel %vm2806, %v2799, 0
  %v2994 = vsel %vm2806, %v2800, 0
  %v2997 = vsel %vm2806, %v2801, 0
  %2999 = vmatprep.subr.mxu0 0.0
  %3000 = vmatpush1.msra.mxu0 %v127
  %3001 = vmatprep.subr.mxu0 0.0
  %3002 = vmatpush1.msra.mxu0 %v128
  %3003 = vmatprep.subr.mxu0 0.0
  %3004 = vmatpush1.msra.mxu0 %v129
  %3005 = vmatprep.subr.mxu0 0.0
  %3006 = vmatpush1.msra.mxu0 %v130
  %3007 = vmatprep.subr.mxu0 0.0
  %3008 = vmatpush1.msra.mxu0 %v131
  %3009 = vmatprep.subr.mxu0 0.0
  %3010 = vmatpush1.msra.mxu0 %v132
  %3011 = vmatprep.subr.mxu0 0.0
  %3012 = vmatpush1.msra.mxu0 %v133
  %3013 = vmatprep.subr.mxu0 0.0
  %3014 = vmatpush1.msra.mxu0 %v134
  %3015 = vmatprep.subr.mxu0 0.0
  %3016 = vmatpush1.msra.mxu0 0.0
  %3017 = vmatprep.subr.mxu0 0.0
  %3018 = vmatpush1.msra.mxu0 0.0
  %3019 = vmatprep.subr.mxu0 0.0
  %3020 = vmatpush1.msra.mxu0 0.0
  %3021 = vmatprep.subr.mxu0 0.0
  %3022 = vmatpush1.msra.mxu0 0.0
  %3023 = vmatprep.subr.mxu0 0.0
  %3024 = vmatpush1.msra.mxu0 0.0
  %3025 = vmatprep.subr.mxu0 0.0
  %3026 = vmatpush1.msra.mxu0 0.0
  %3027 = vmatprep.subr.mxu0 0.0
  %3028 = vmatpush1.msra.mxu0 0.0
  %3029 = vmatprep.subr.mxu0 0.0
  %3030 = vmatpush1.msra.mxu0 0.0
  %3031 = vmatprep.subr.mxu0 0.0
  %3032 = vmatpush1.msra.mxu0 0.0
  %3033 = vmatprep.subr.mxu0 0.0
  %3034 = vmatpush1.msra.mxu0 0.0
  %3035 = vmatprep.subr.mxu0 0.0
  %3036 = vmatpush1.msra.mxu0 0.0
  %3037 = vmatprep.subr.mxu0 0.0
  %3038 = vmatpush1.msra.mxu0 0.0
  %3039 = vmatprep.subr.mxu0 0.0
  %3040 = vmatpush1.msra.mxu0 0.0
  %3041 = vmatprep.subr.mxu0 0.0
  %3042 = vmatpush1.msra.mxu0 0.0
  %3043 = vmatprep.subr.mxu0 0.0
  %3044 = vmatpush1.msra.mxu0 0.0
  %3045 = vmatprep.subr.mxu0 0.0
  %3046 = vmatpush1.msra.mxu0 0.0
  %3047 = vmatprep.subr.mxu0 0.0
  %3048 = vmatpush1.msra.mxu0 0.0
  %3049 = vmatprep.subr.mxu0 0.0
  %3050 = vmatpush1.msra.mxu0 0.0
  %3051 = vmatprep.subr.mxu0 0.0
  %3052 = vmatpush1.msra.mxu0 0.0
  %3053 = vmatprep.subr.mxu0 0.0
  %3054 = vmatpush1.msra.mxu0 0.0
  %3055 = vmatprep.subr.mxu0 0.0
  %3056 = vmatpush1.msra.mxu0 0.0
  %3057 = vmatprep.subr.mxu0 0.0
  %3058 = vmatpush1.msra.mxu0 0.0
  %3059 = vmatprep.subr.mxu0 0.0
  %3060 = vmatpush1.msra.mxu0 0.0
  %3061 = vmatprep.subr.mxu0 0.0
  %3062 = vmatpush1.msra.mxu0 0.0
  %3063 = vmatprep.mubr.f32.mxu0 0.0
  %3064 = vmatmul.mubr.f32.gmra.mrb[0].mxu0 %v2808
  %v3065 = vpop.f32.mrb[0].mxu0
  %v3066 = vadd.f32 %v2805, %v3065
  %v3067 = vpop.f32.mrb[0].mxu0
  %3068 = vmatprep.mubr.f32.mxu0 0.0
  %3069 = vmatmul.mubr.f32.gmra.mrb[0].mxu0 %v2811
  %v3070 = vpop.f32.mrb[0].mxu0
  %v3071 = vadd.f32 %v2805, %v3070
  %v3072 = vpop.f32.mrb[0].mxu0
  %3073 = vmatprep.mubr.f32.mxu0 0.0
  %3074 = vmatmul.mubr.f32.gmra.mrb[0].mxu0 %v2814
  %v3075 = vpop.f32.mrb[0].mxu0
  %v3076 = vadd.f32 %v2805, %v3075
  %v3077 = vpop.f32.mrb[0].mxu0
  %3078 = vmatprep.mubr.f32.mxu0 0.0
  %3079 = vmatmul.mubr.f32.gmra.mrb[0].mxu0 %v2817
  %v3080 = vpop.f32.mrb[0].mxu0
  %v3081 = vadd.f32 %v2805, %v3080
  %v3082 = vpop.f32.mrb[0].mxu0
  %3083 = vmatprep.mubr.f32.mxu0 0.0
  %3084 = vmatmul.mubr.f32.gmra.mrb[0].mxu0 %v2820
  %v3085 = vpop.f32.mrb[0].mxu0
  %v3086 = vadd.f32 %v2805, %v3085
  %v3087 = vpop.f32.mrb[0].mxu0
  %3088 = vmatprep.mubr.f32.mxu0 0.0
  %3089 = vmatmul.mubr.f32.gmra.mrb[0].mxu0 %v2823
  %v3090 = vpop.f32.mrb[0].mxu0
  %v3091 = vadd.f32 %v2805, %v3090
  %v3092 = vpop.f32.mrb[0].mxu0
  %3093 = vmatprep.mubr.f32.mxu0 0.0
  %3094 = vmatmul.mubr.f32.gmra.mrb[0].mxu0 %v2826
  %v3095 = vpop.f32.mrb[0].mxu0
  %v3096 = vadd.f32 %v2805, %v3095
  %v3097 = vpop.f32.mrb[0].mxu0
  %3098 = vmatprep.mubr.f32.mxu0 0.0
  %3099 = vmatmul.mubr.f32.gmra.mrb[0].mxu0 %v2829
  %v3100 = vpop.f32.mrb[0].mxu0
  %v3101 = vadd.f32 %v2805, %v3100
  %v3102 = vpop.f32.mrb[0].mxu0
  %3103 = vmatprep.mubr.f32.mxu0 0.0
  %3104 = vmatmul.mubr.f32.gmra.mrb[0].mxu0 %v2832
  %v3105 = vpop.f32.mrb[0].mxu0
  %v3106 = vadd.f32 %v2805, %v3105
  %v3107 = vpop.f32.mrb[0].mxu0
  %3108 = vmatprep.mubr.f32.mxu0 0.0
  %3109 = vmatmul.mubr.f32.gmra.mrb[0].mxu0 %v2835
  %v3110 = vpop.f32.mrb[0].mxu0
  %v3111 = vadd.f32 %v2805, %v3110
  %v3112 = vpop.f32.mrb[0].mxu0
  %3113 = vmatprep.mubr.f32.mxu0 0.0
  %3114 = vmatmul.mubr.f32.gmra.mrb[0].mxu0 %v2838
  %v3115 = vpop.f32.mrb[0].mxu0
  %v3116 = vadd.f32 %v2805, %v3115
  %v3117 = vpop.f32.mrb[0].mxu0
  %3118 = vmatprep.mubr.f32.mxu0 0.0
  %3119 = vmatmul.mubr.f32.gmra.mrb[0].mxu0 %v2841
  %v3120 = vpop.f32.mrb[0].mxu0
  %v3121 = vadd.f32 %v2805, %v3120
  %v3122 = vpop.f32.mrb[0].mxu0
  %3123 = vmatprep.mubr.f32.mxu0 0.0
  %3124 = vmatmul.mubr.f32.gmra.mrb[0].mxu0 %v2844
  %v3125 = vpop.f32.mrb[0].mxu0
  %v3126 = vadd.f32 %v2805, %v3125
  %v3127 = vpop.f32.mrb[0].mxu0
  %3128 = vmatprep.mubr.f32.mxu0 0.0
  %3129 = vmatmul.mubr.f32.gmra.mrb[0].mxu0 %v2847
  %v3130 = vpop.f32.mrb[0].mxu0
  %v3131 = vadd.f32 %v2805, %v3130
  %v3132 = vpop.f32.mrb[0].mxu0
  %3133 = vmatprep.mubr.f32.mxu0 0.0
  %3134 = vmatmul.mubr.f32.gmra.mrb[0].mxu0 %v2850
  %v3135 = vpop.f32.mrb[0].mxu0
  %v3136 = vadd.f32 %v2805, %v3135
  %v3137 = vpop.f32.mrb[0].mxu0
  %3138 = vmatprep.mubr.f32.mxu0 0.0
  %3139 = vmatmul.mubr.f32.gmra.mrb[0].mxu0 %v2853
  %v3140 = vpop.f32.mrb[0].mxu0
  %v3141 = vadd.f32 %v2805, %v3140
  %v3142 = vpop.f32.mrb[0].mxu0
  %3143 = vmatprep.mubr.f32.mxu0 0.0
  %3144 = vmatmul.mubr.f32.gmra.mrb[0].mxu0 %v2856
  %v3145 = vpop.f32.mrb[0].mxu0
  %v3146 = vadd.f32 %v2805, %v3145
  %v3147 = vpop.f32.mrb[0].mxu0
  %3148 = vmatprep.mubr.f32.mxu0 0.0
  %3149 = vmatmul.mubr.f32.gmra.mrb[0].mxu0 %v2859
  %v3150 = vpop.f32.mrb[0].mxu0
  %v3151 = vadd.f32 %v2805, %v3150
  %v3152 = vpop.f32.mrb[0].mxu0
  %3153 = vmatprep.mubr.f32.mxu0 0.0
  %3154 = vmatmul.mubr.f32.gmra.mrb[0].mxu0 %v2862
  %v3155 = vpop.f32.mrb[0].mxu0
  %v3156 = vadd.f32 %v2805, %v3155
  %v3157 = vpop.f32.mrb[0].mxu0
  %3158 = vmatprep.mubr.f32.mxu0 0.0
  %3159 = vmatmul.mubr.f32.gmra.mrb[0].mxu0 %v2865
  %v3160 = vpop.f32.mrb[0].mxu0
  %v3161 = vadd.f32 %v2805, %v3160
  %v3162 = vpop.f32.mrb[0].mxu0
  %3163 = vmatprep.mubr.f32.mxu0 0.0
  %3164 = vmatmul.mubr.f32.gmra.mrb[0].mxu0 %v2868
  %v3165 = vpop.f32.mrb[0].mxu0
  %v3166 = vadd.f32 %v2805, %v3165
  %v3167 = vpop.f32.mrb[0].mxu0
  %3168 = vmatprep.mubr.f32.mxu0 0.0
  %3169 = vmatmul.mubr.f32.gmra.mrb[0].mxu0 %v2871
  %v3170 = vpop.f32.mrb[0].mxu0
  %v3171 = vadd.f32 %v2805, %v3170
  %v3172 = vpop.f32.mrb[0].mxu0
  %3173 = vmatprep.mubr.f32.mxu0 0.0
  %3174 = vmatmul.mubr.f32.gmra.mrb[0].mxu0 %v2874
  %v3175 = vpop.f32.mrb[0].mxu0
  %v3176 = vadd.f32 %v2805, %v3175
  %v3177 = vpop.f32.mrb[0].mxu0
  %3178 = vmatprep.mubr.f32.mxu0 0.0
  %3179 = vmatmul.mubr.f32.gmra.mrb[0].mxu0 %v2877
  %v3180 = vpop.f32.mrb[0].mxu0
  %v3181 = vadd.f32 %v2805, %v3180
  %v3182 = vpop.f32.mrb[0].mxu0
  %3183 = vmatprep.mubr.f32.mxu0 0.0
  %3184 = vmatmul.mubr.f32.gmra.mrb[0].mxu0 %v2880
  %v3185 = vpop.f32.mrb[0].mxu0
  %v3186 = vadd.f32 %v2805, %v3185
  %v3187 = vpop.f32.mrb[0].mxu0
  %3188 = vmatprep.mubr.f32.mxu0 0.0
  %3189 = vmatmul.mubr.f32.gmra.mrb[0].mxu0 %v2883
  %v3190 = vpop.f32.mrb[0].mxu0
  %v3191 = vadd.f32 %v2805, %v3190
  %v3192 = vpop.f32.mrb[0].mxu0
  %3193 = vmatprep.mubr.f32.mxu0 0.0
  %3194 = vmatmul.mubr.f32.gmra.mrb[0].mxu0 %v2886
  %v3195 = vpop.f32.mrb[0].mxu0
  %v3196 = vadd.f32 %v2805, %v3195
  %v3197 = vpop.f32.mrb[0].mxu0
  %3198 = vmatprep.mubr.f32.mxu0 0.0
  %3199 = vmatmul.mubr.f32.gmra.mrb[0].mxu0 %v2889
  %v3200 = vpop.f32.mrb[0].mxu0
  %v3201 = vadd.f32 %v2805, %v3200
  %v3202 = vpop.f32.mrb[0].mxu0
  %3203 = vmatprep.mubr.f32.mxu0 0.0
  %3204 = vmatmul.mubr.f32.gmra.mrb[0].mxu0 %v2892
  %v3205 = vpop.f32.mrb[0].mxu0
  %v3206 = vadd.f32 %v2805, %v3205
  %v3207 = vpop.f32.mrb[0].mxu0
  %3208 = vmatprep.mubr.f32.mxu0 0.0
  %3209 = vmatmul.mubr.f32.gmra.mrb[0].mxu0 %v2895
  %v3210 = vpop.f32.mrb[0].mxu0
  %v3211 = vadd.f32 %v2805, %v3210
  %v3212 = vpop.f32.mrb[0].mxu0
  %3213 = vmatprep.mubr.f32.mxu0 0.0
  %3214 = vmatmul.mubr.f32.gmra.mrb[0].mxu0 %v2898
  %v3215 = vpop.f32.mrb[0].mxu0
  %v3216 = vadd.f32 %v2805, %v3215
  %v3217 = vpop.f32.mrb[0].mxu0
  %3218 = vmatprep.mubr.f32.mxu0 0.0
  %3219 = vmatmul.mubr.f32.gmra.mrb[0].mxu0 %v2901
  %v3220 = vpop.f32.mrb[0].mxu0
  %v3221 = vadd.f32 %v2805, %v3220
  %v3222 = vpop.f32.mrb[0].mxu0
  %3223 = vmatprep.mubr.f32.mxu0 0.0
  %3224 = vmatmul.mubr.f32.gmra.mrb[0].mxu0 %v2904
  %v3225 = vpop.f32.mrb[0].mxu0
  %v3226 = vadd.f32 %v2805, %v3225
  %v3227 = vpop.f32.mrb[0].mxu0
  %3228 = vmatprep.mubr.f32.mxu0 0.0
  %3229 = vmatmul.mubr.f32.gmra.mrb[0].mxu0 %v2907
  %v3230 = vpop.f32.mrb[0].mxu0
  %v3231 = vadd.f32 %v2805, %v3230
  %v3232 = vpop.f32.mrb[0].mxu0
  %3233 = vmatprep.mubr.f32.mxu0 0.0
  %3234 = vmatmul.mubr.f32.gmra.mrb[0].mxu0 %v2910
  %v3235 = vpop.f32.mrb[0].mxu0
  %v3236 = vadd.f32 %v2805, %v3235
  %v3237 = vpop.f32.mrb[0].mxu0
  %3238 = vmatprep.mubr.f32.mxu0 0.0
  %3239 = vmatmul.mubr.f32.gmra.mrb[0].mxu0 %v2913
  %v3240 = vpop.f32.mrb[0].mxu0
  %v3241 = vadd.f32 %v2805, %v3240
  %v3242 = vpop.f32.mrb[0].mxu0
  %3243 = vmatprep.mubr.f32.mxu0 0.0
  %3244 = vmatmul.mubr.f32.gmra.mrb[0].mxu0 %v2916
  %v3245 = vpop.f32.mrb[0].mxu0
  %v3246 = vadd.f32 %v2805, %v3245
  %v3247 = vpop.f32.mrb[0].mxu0
  %3248 = vmatprep.mubr.f32.mxu0 0.0
  %3249 = vmatmul.mubr.f32.gmra.mrb[0].mxu0 %v2919
  %v3250 = vpop.f32.mrb[0].mxu0
  %v3251 = vadd.f32 %v2805, %v3250
  %v3252 = vpop.f32.mrb[0].mxu0
  %3253 = vmatprep.mubr.f32.mxu0 0.0
  %3254 = vmatmul.mubr.f32.gmra.mrb[0].mxu0 %v2922
  %v3255 = vpop.f32.mrb[0].mxu0
  %v3256 = vadd.f32 %v2805, %v3255
  %v3257 = vpop.f32.mrb[0].mxu0
  %3258 = vmatprep.mubr.f32.mxu0 0.0
  %3259 = vmatmul.mubr.f32.gmra.mrb[0].mxu0 %v2925
  %v3260 = vpop.f32.mrb[0].mxu0
  %v3261 = vadd.f32 %v2805, %v3260
  %v3262 = vpop.f32.mrb[0].mxu0
  %3263 = vmatprep.mubr.f32.mxu0 0.0
  %3264 = vmatmul.mubr.f32.gmra.mrb[0].mxu0 %v2928
  %v3265 = vpop.f32.mrb[0].mxu0
  %v3266 = vadd.f32 %v2805, %v3265
  %v3267 = vpop.f32.mrb[0].mxu0
  %3268 = vmatprep.mubr.f32.mxu0 0.0
  %3269 = vmatmul.mubr.f32.gmra.mrb[0].mxu0 %v2931
  %v3270 = vpop.f32.mrb[0].mxu0
  %v3271 = vadd.f32 %v2805, %v3270
  %v3272 = vpop.f32.mrb[0].mxu0
  %3273 = vmatprep.mubr.f32.mxu0 0.0
  %3274 = vmatmul.mubr.f32.gmra.mrb[0].mxu0 %v2934
  %v3275 = vpop.f32.mrb[0].mxu0
  %v3276 = vadd.f32 %v2805, %v3275
  %v3277 = vpop.f32.mrb[0].mxu0
  %3278 = vmatprep.mubr.f32.mxu0 0.0
  %3279 = vmatmul.mubr.f32.gmra.mrb[0].mxu0 %v2937
  %v3280 = vpop.f32.mrb[0].mxu0
  %v3281 = vadd.f32 %v2805, %v3280
  %v3282 = vpop.f32.mrb[0].mxu0
  %3283 = vmatprep.mubr.f32.mxu0 0.0
  %3284 = vmatmul.mubr.f32.gmra.mrb[0].mxu0 %v2940
  %v3285 = vpop.f32.mrb[0].mxu0
  %v3286 = vadd.f32 %v2805, %v3285
  %v3287 = vpop.f32.mrb[0].mxu0
  %3288 = vmatprep.mubr.f32.mxu0 0.0
  %3289 = vmatmul.mubr.f32.gmra.mrb[0].mxu0 %v2943
  %v3290 = vpop.f32.mrb[0].mxu0
  %v3291 = vadd.f32 %v2805, %v3290
  %v3292 = vpop.f32.mrb[0].mxu0
  %3293 = vmatprep.mubr.f32.mxu0 0.0
  %3294 = vmatmul.mubr.f32.gmra.mrb[0].mxu0 %v2946
  %v3295 = vpop.f32.mrb[0].mxu0
  %v3296 = vadd.f32 %v2805, %v3295
  %v3297 = vpop.f32.mrb[0].mxu0
  %3298 = vmatprep.mubr.f32.mxu0 0.0
  %3299 = vmatmul.mubr.f32.gmra.mrb[0].mxu0 %v2949
  %v3300 = vpop.f32.mrb[0].mxu0
  %v3301 = vadd.f32 %v2805, %v3300
  %v3302 = vpop.f32.mrb[0].mxu0
  %3303 = vmatprep.mubr.f32.mxu0 0.0
  %3304 = vmatmul.mubr.f32.gmra.mrb[0].mxu0 %v2952
  %v3305 = vpop.f32.mrb[0].mxu0
  %v3306 = vadd.f32 %v2805, %v3305
  %v3307 = vpop.f32.mrb[0].mxu0
  %3308 = vmatprep.mubr.f32.mxu0 0.0
  %3309 = vmatmul.mubr.f32.gmra.mrb[0].mxu0 %v2955
  %v3310 = vpop.f32.mrb[0].mxu0
  %v3311 = vadd.f32 %v2805, %v3310
  %v3312 = vpop.f32.mrb[0].mxu0
  %3313 = vmatprep.mubr.f32.mxu0 0.0
  %3314 = vmatmul.mubr.f32.gmra.mrb[0].mxu0 %v2958
  %v3315 = vpop.f32.mrb[0].mxu0
  %v3316 = vadd.f32 %v2805, %v3315
  %v3317 = vpop.f32.mrb[0].mxu0
  %3318 = vmatprep.mubr.f32.mxu0 0.0
  %3319 = vmatmul.mubr.f32.gmra.mrb[0].mxu0 %v2961
  %v3320 = vpop.f32.mrb[0].mxu0
  %v3321 = vadd.f32 %v2805, %v3320
  %v3322 = vpop.f32.mrb[0].mxu0
  %3323 = vmatprep.mubr.f32.mxu0 0.0
  %3324 = vmatmul.mubr.f32.gmra.mrb[0].mxu0 %v2964
  %v3325 = vpop.f32.mrb[0].mxu0
  %v3326 = vadd.f32 %v2805, %v3325
  %v3327 = vpop.f32.mrb[0].mxu0
  %3328 = vmatprep.mubr.f32.mxu0 0.0
  %3329 = vmatmul.mubr.f32.gmra.mrb[0].mxu0 %v2967
  %v3330 = vpop.f32.mrb[0].mxu0
  %v3331 = vadd.f32 %v2805, %v3330
  %v3332 = vpop.f32.mrb[0].mxu0
  %3333 = vmatprep.mubr.f32.mxu0 0.0
  %3334 = vmatmul.mubr.f32.gmra.mrb[0].mxu0 %v2970
  %v3335 = vpop.f32.mrb[0].mxu0
  %v3336 = vadd.f32 %v2805, %v3335
  %v3337 = vpop.f32.mrb[0].mxu0
  %3338 = vmatprep.mubr.f32.mxu0 0.0
  %3339 = vmatmul.mubr.f32.gmra.mrb[0].mxu0 %v2973
  %v3340 = vpop.f32.mrb[0].mxu0
  %v3341 = vadd.f32 %v2805, %v3340
  %v3342 = vpop.f32.mrb[0].mxu0
  %3343 = vmatprep.mubr.f32.mxu0 0.0
  %3344 = vmatmul.mubr.f32.gmra.mrb[0].mxu0 %v2976
  %v3345 = vpop.f32.mrb[0].mxu0
  %v3346 = vadd.f32 %v2805, %v3345
  %v3347 = vpop.f32.mrb[0].mxu0
  %3348 = vmatprep.mubr.f32.mxu0 0.0
  %3349 = vmatmul.mubr.f32.gmra.mrb[0].mxu0 %v2979
  %v3350 = vpop.f32.mrb[0].mxu0
  %v3351 = vadd.f32 %v2805, %v3350
  %v3352 = vpop.f32.mrb[0].mxu0
  %3353 = vmatprep.mubr.f32.mxu0 0.0
  %3354 = vmatmul.mubr.f32.gmra.mrb[0].mxu0 %v2982
  %v3355 = vpop.f32.mrb[0].mxu0
  %v3356 = vadd.f32 %v2805, %v3355
  %v3357 = vpop.f32.mrb[0].mxu0
  %3358 = vmatprep.mubr.f32.mxu0 0.0
  %3359 = vmatmul.mubr.f32.gmra.mrb[0].mxu0 %v2985
  %v3360 = vpop.f32.mrb[0].mxu0
  %v3361 = vadd.f32 %v2805, %v3360
  %v3362 = vpop.f32.mrb[0].mxu0
  %3363 = vmatprep.mubr.f32.mxu0 0.0
  %3364 = vmatmul.mubr.f32.gmra.mrb[0].mxu0 %v2988
  %v3365 = vpop.f32.mrb[0].mxu0
  %v3366 = vadd.f32 %v2805, %v3365
  %v3367 = vpop.f32.mrb[0].mxu0
  %3368 = vmatprep.mubr.f32.mxu0 0.0
  %3369 = vmatmul.mubr.f32.gmra.mrb[0].mxu0 %v2991
  %v3370 = vpop.f32.mrb[0].mxu0
  %v3371 = vadd.f32 %v2805, %v3370
  %v3372 = vpop.f32.mrb[0].mxu0
  %3373 = vmatprep.mubr.f32.mxu0 0.0
  %3374 = vmatmul.mubr.f32.gmra.mrb[0].mxu0 %v2994
  %v3375 = vpop.f32.mrb[0].mxu0
  %v3376 = vadd.f32 %v2805, %v3375
  %v3377 = vpop.f32.mrb[0].mxu0
  %3378 = vmatprep.mubr.f32.mxu0 0.0
  %3379 = vmatmul.mubr.f32.gmra.mrb[0].mxu0 %v2997
  %v3380 = vpop.f32.mrb[0].mxu0
  %v3381 = vadd.f32 %v2805, %v3380
  %v3382 = vpop.f32.mrb[0].mxu0
  %3383 = vdwg.mxu0
  %3385 = vset.pattern.permute.xlu0 0
  %3386 = vperm.xlu0 %3385, %v3066
  %v3387 = vpop.permute.xlu0 %3386
  %3390 = vset.pattern.permute.xlu0 0
  %3391 = vperm.xlu0 %3390, %v3071
  %v3392 = vpop.permute.xlu0 %3391
  %3395 = vset.pattern.permute.xlu0 0
  %3396 = vperm.xlu0 %3395, %v3076
  %v3397 = vpop.permute.xlu0 %3396
  %3400 = vset.pattern.permute.xlu0 0
  %3401 = vperm.xlu0 %3400, %v3081
  %v3402 = vpop.permute.xlu0 %3401
  %3405 = vset.pattern.permute.xlu0 0
  %3406 = vperm.xlu0 %3405, %v3086
  %v3407 = vpop.permute.xlu0 %3406
  %3410 = vset.pattern.permute.xlu0 0
  %3411 = vperm.xlu0 %3410, %v3091
  %v3412 = vpop.permute.xlu0 %3411
  %3415 = vset.pattern.permute.xlu0 0
  %3416 = vperm.xlu0 %3415, %v3096
  %v3417 = vpop.permute.xlu0 %3416
  %3420 = vset.pattern.permute.xlu0 0
  %3421 = vperm.xlu0 %3420, %v3101
  %v3422 = vpop.permute.xlu0 %3421
  %3425 = vset.pattern.permute.xlu0 0
  %3426 = vperm.xlu0 %3425, %v3106
  %v3427 = vpop.permute.xlu0 %3426
  %3430 = vset.pattern.permute.xlu0 0
  %3431 = vperm.xlu0 %3430, %v3111
  %v3432 = vpop.permute.xlu0 %3431
  %3435 = vset.pattern.permute.xlu0 0
  %3436 = vperm.xlu0 %3435, %v3116
  %v3437 = vpop.permute.xlu0 %3436
  %3440 = vset.pattern.permute.xlu0 0
  %3441 = vperm.xlu0 %3440, %v3121
  %v3442 = vpop.permute.xlu0 %3441
  %3445 = vset.pattern.permute.xlu0 0
  %3446 = vperm.xlu0 %3445, %v3126
  %v3447 = vpop.permute.xlu0 %3446
  %3450 = vset.pattern.permute.xlu0 0
  %3451 = vperm.xlu0 %3450, %v3131
  %v3452 = vpop.permute.xlu0 %3451
  %3455 = vset.pattern.permute.xlu0 0
  %3456 = vperm.xlu0 %3455, %v3136
  %v3457 = vpop.permute.xlu0 %3456
  %3460 = vset.pattern.permute.xlu0 0
  %3461 = vperm.xlu0 %3460, %v3141
  %v3462 = vpop.permute.xlu0 %3461
  %3465 = vset.pattern.permute.xlu0 0
  %3466 = vperm.xlu0 %3465, %v3146
  %v3467 = vpop.permute.xlu0 %3466
  %3470 = vset.pattern.permute.xlu0 0
  %3471 = vperm.xlu0 %3470, %v3151
  %v3472 = vpop.permute.xlu0 %3471
  %3475 = vset.pattern.permute.xlu0 0
  %3476 = vperm.xlu0 %3475, %v3156
  %v3477 = vpop.permute.xlu0 %3476
  %3480 = vset.pattern.permute.xlu0 0
  %3481 = vperm.xlu0 %3480, %v3161
  %v3482 = vpop.permute.xlu0 %3481
  %3485 = vset.pattern.permute.xlu0 0
  %3486 = vperm.xlu0 %3485, %v3166
  %v3487 = vpop.permute.xlu0 %3486
  %3490 = vset.pattern.permute.xlu0 0
  %3491 = vperm.xlu0 %3490, %v3171
  %v3492 = vpop.permute.xlu0 %3491
  %3495 = vset.pattern.permute.xlu0 0
  %3496 = vperm.xlu0 %3495, %v3176
  %v3497 = vpop.permute.xlu0 %3496
  %3500 = vset.pattern.permute.xlu0 0
  %3501 = vperm.xlu0 %3500, %v3181
  %v3502 = vpop.permute.xlu0 %3501
  %3505 = vset.pattern.permute.xlu0 0
  %3506 = vperm.xlu0 %3505, %v3186
  %v3507 = vpop.permute.xlu0 %3506
  %3510 = vset.pattern.permute.xlu0 0
  %3511 = vperm.xlu0 %3510, %v3191
  %v3512 = vpop.permute.xlu0 %3511
  %3515 = vset.pattern.permute.xlu0 0
  %3516 = vperm.xlu0 %3515, %v3196
  %v3517 = vpop.permute.xlu0 %3516
  %3520 = vset.pattern.permute.xlu0 0
  %3521 = vperm.xlu0 %3520, %v3201
  %v3522 = vpop.permute.xlu0 %3521
  %3525 = vset.pattern.permute.xlu0 0
  %3526 = vperm.xlu0 %3525, %v3206
  %v3527 = vpop.permute.xlu0 %3526
  %3530 = vset.pattern.permute.xlu0 0
  %3531 = vperm.xlu0 %3530, %v3211
  %v3532 = vpop.permute.xlu0 %3531
  %3535 = vset.pattern.permute.xlu0 0
  %3536 = vperm.xlu0 %3535, %v3216
  %v3537 = vpop.permute.xlu0 %3536
  %3540 = vset.pattern.permute.xlu0 0
  %3541 = vperm.xlu0 %3540, %v3221
  %v3542 = vpop.permute.xlu0 %3541
  %3545 = vset.pattern.permute.xlu0 0
  %3546 = vperm.xlu0 %3545, %v3226
  %v3547 = vpop.permute.xlu0 %3546
  %3550 = vset.pattern.permute.xlu0 0
  %3551 = vperm.xlu0 %3550, %v3231
  %v3552 = vpop.permute.xlu0 %3551
  %3555 = vset.pattern.permute.xlu0 0
  %3556 = vperm.xlu0 %3555, %v3236
  %v3557 = vpop.permute.xlu0 %3556
  %3560 = vset.pattern.permute.xlu0 0
  %3561 = vperm.xlu0 %3560, %v3241
  %v3562 = vpop.permute.xlu0 %3561
  %3565 = vset.pattern.permute.xlu0 0
  %3566 = vperm.xlu0 %3565, %v3246
  %v3567 = vpop.permute.xlu0 %3566
  %3570 = vset.pattern.permute.xlu0 0
  %3571 = vperm.xlu0 %3570, %v3251
  %v3572 = vpop.permute.xlu0 %3571
  %3575 = vset.pattern.permute.xlu0 0
  %3576 = vperm.xlu0 %3575, %v3256
  %v3577 = vpop.permute.xlu0 %3576
  %3580 = vset.pattern.permute.xlu0 0
  %3581 = vperm.xlu0 %3580, %v3261
  %v3582 = vpop.permute.xlu0 %3581
  %3585 = vset.pattern.permute.xlu0 0
  %3586 = vperm.xlu0 %3585, %v3266
  %v3587 = vpop.permute.xlu0 %3586
  %3590 = vset.pattern.permute.xlu0 0
  %3591 = vperm.xlu0 %3590, %v3271
  %v3592 = vpop.permute.xlu0 %3591
  %3595 = vset.pattern.permute.xlu0 0
  %3596 = vperm.xlu0 %3595, %v3276
  %v3597 = vpop.permute.xlu0 %3596
  %3600 = vset.pattern.permute.xlu0 0
  %3601 = vperm.xlu0 %3600, %v3281
  %v3602 = vpop.permute.xlu0 %3601
  %3605 = vset.pattern.permute.xlu0 0
  %3606 = vperm.xlu0 %3605, %v3286
  %v3607 = vpop.permute.xlu0 %3606
  %3610 = vset.pattern.permute.xlu0 0
  %3611 = vperm.xlu0 %3610, %v3291
  %v3612 = vpop.permute.xlu0 %3611
  %3615 = vset.pattern.permute.xlu0 0
  %3616 = vperm.xlu0 %3615, %v3296
  %v3617 = vpop.permute.xlu0 %3616
  %3620 = vset.pattern.permute.xlu0 0
  %3621 = vperm.xlu0 %3620, %v3301
  %v3622 = vpop.permute.xlu0 %3621
  %3625 = vset.pattern.permute.xlu0 0
  %3626 = vperm.xlu0 %3625, %v3306
  %v3627 = vpop.permute.xlu0 %3626
  %3630 = vset.pattern.permute.xlu0 0
  %3631 = vperm.xlu0 %3630, %v3311
  %v3632 = vpop.permute.xlu0 %3631
  %3635 = vset.pattern.permute.xlu0 0
  %3636 = vperm.xlu0 %3635, %v3316
  %v3637 = vpop.permute.xlu0 %3636
  %3640 = vset.pattern.permute.xlu0 0
  %3641 = vperm.xlu0 %3640, %v3321
  %v3642 = vpop.permute.xlu0 %3641
  %3645 = vset.pattern.permute.xlu0 0
  %3646 = vperm.xlu0 %3645, %v3326
  %v3647 = vpop.permute.xlu0 %3646
  %3650 = vset.pattern.permute.xlu0 0
  %3651 = vperm.xlu0 %3650, %v3331
  %v3652 = vpop.permute.xlu0 %3651
  %3655 = vset.pattern.permute.xlu0 0
  %3656 = vperm.xlu0 %3655, %v3336
  %v3657 = vpop.permute.xlu0 %3656
  %3660 = vset.pattern.permute.xlu0 0
  %3661 = vperm.xlu0 %3660, %v3341
  %v3662 = vpop.permute.xlu0 %3661
  %3665 = vset.pattern.permute.xlu0 0
  %3666 = vperm.xlu0 %3665, %v3346
  %v3667 = vpop.permute.xlu0 %3666
  %3670 = vset.pattern.permute.xlu0 0
  %3671 = vperm.xlu0 %3670, %v3351
  %v3672 = vpop.permute.xlu0 %3671
  %3675 = vset.pattern.permute.xlu0 0
  %3676 = vperm.xlu0 %3675, %v3356
  %v3677 = vpop.permute.xlu0 %3676
  %3680 = vset.pattern.permute.xlu0 0
  %3681 = vperm.xlu0 %3680, %v3361
  %v3682 = vpop.permute.xlu0 %3681
  %3685 = vset.pattern.permute.xlu0 0
  %3686 = vperm.xlu0 %3685, %v3366
  %v3687 = vpop.permute.xlu0 %3686
  %3690 = vset.pattern.permute.xlu0 0
  %3691 = vperm.xlu0 %3690, %v3371
  %v3692 = vpop.permute.xlu0 %3691
  %3695 = vset.pattern.permute.xlu0 0
  %3696 = vperm.xlu0 %3695, %v3376
  %v3697 = vpop.permute.xlu0 %3696
  %3700 = vset.pattern.permute.xlu0 0
  %3701 = vperm.xlu0 %3700, %v3381
  %v3702 = vpop.permute.xlu0 %3701
  %v3704 = vmul.f32 %v3387, %v48
  %v3705 = vmul.f32 %v3392, %v49
  %v3706 = vmul.f32 %v3397, %v50
  %v3707 = vmul.f32 %v3402, %v51
  %v3708 = vmul.f32 %v3407, %v52
  %v3709 = vmul.f32 %v3412, %v53
  %v3710 = vmul.f32 %v3417, %v54
  %v3711 = vmul.f32 %v3422, %v55
  %v3712 = vmul.f32 %v3427, %v56
  %v3713 = vmul.f32 %v3432, %v57
  %v3714 = vmul.f32 %v3437, %v58
  %v3715 = vmul.f32 %v3442, %v59
  %v3716 = vmul.f32 %v3447, %v60
  %v3717 = vmul.f32 %v3452, %v61
  %v3718 = vmul.f32 %v3457, %v62
  %v3719 = vmul.f32 %v3462, %v63
  %v3720 = vmul.f32 %v3467, %v64
  %v3721 = vmul.f32 %v3472, %v65
  %v3722 = vmul.f32 %v3477, %v66
  %v3723 = vmul.f32 %v3482, %v67
  %v3724 = vmul.f32 %v3487, %v68
  %v3725 = vmul.f32 %v3492, %v69
  %v3726 = vmul.f32 %v3497, %v70
  %v3727 = vmul.f32 %v3502, %v71
  %v3728 = vmul.f32 %v3507, %v72
  %v3729 = vmul.f32 %v3512, %v73
  %v3730 = vmul.f32 %v3517, %v74
  %v3731 = vmul.f32 %v3522, %v75
  %v3732 = vmul.f32 %v3527, %v76
  %v3733 = vmul.f32 %v3532, %v77
  %v3734 = vmul.f32 %v3537, %v78
  %v3735 = vmul.f32 %v3542, %v79
  %v3736 = vmul.f32 %v3547, %v80
  %v3737 = vmul.f32 %v3552, %v81
  %v3738 = vmul.f32 %v3557, %v82
  %v3739 = vmul.f32 %v3562, %v83
  %v3740 = vmul.f32 %v3567, %v84
  %v3741 = vmul.f32 %v3572, %v85
  %v3742 = vmul.f32 %v3577, %v86
  %v3743 = vmul.f32 %v3582, %v87
  %v3744 = vmul.f32 %v3587, %v88
  %v3745 = vmul.f32 %v3592, %v89
  %v3746 = vmul.f32 %v3597, %v90
  %v3747 = vmul.f32 %v3602, %v91
  %v3748 = vmul.f32 %v3607, %v92
  %v3749 = vmul.f32 %v3612, %v93
  %v3750 = vmul.f32 %v3617, %v94
  %v3751 = vmul.f32 %v3622, %v95
  %v3752 = vmul.f32 %v3627, %v96
  %v3753 = vmul.f32 %v3632, %v97
  %v3754 = vmul.f32 %v3637, %v98
  %v3755 = vmul.f32 %v3642, %v99
  %v3756 = vmul.f32 %v3647, %v100
  %v3757 = vmul.f32 %v3652, %v101
  %v3758 = vmul.f32 %v3657, %v102
  %v3759 = vmul.f32 %v3662, %v103
  %v3760 = vmul.f32 %v3667, %v104
  %v3761 = vmul.f32 %v3672, %v105
  %v3762 = vmul.f32 %v3677, %v106
  %v3763 = vmul.f32 %v3682, %v107
  %v3764 = vmul.f32 %v3687, %v108
  %v3765 = vmul.f32 %v3692, %v109
  %v3766 = vmul.f32 %v3697, %v110
  %v3767 = vmul.f32 %v3702, %v111
  %v3768 = vsel %vm874, %v3704, 0.0
  %v3769 = vrot.slane %v3768, 4
  %v3770 = vadd.f32 %v3768, %v3769
  %v3771 = vrot.slane %v3770, 2
  %v3772 = vadd.f32 %v3770, %v3771
  %v3773 = vrot.slane %v3772, 1
  %v3774 = vadd.f32 %v3772, %v3773
  %v3775 = vsel %vm874, %v3705, 0.0
  %v3776 = vrot.slane %v3775, 4
  %v3777 = vadd.f32 %v3775, %v3776
  %v3778 = vrot.slane %v3777, 2
  %v3779 = vadd.f32 %v3777, %v3778
  %v3780 = vrot.slane %v3779, 1
  %v3781 = vadd.f32 %v3779, %v3780
  %v3782 = vsel %vm874, %v3706, 0.0
  %v3783 = vrot.slane %v3782, 4
  %v3784 = vadd.f32 %v3782, %v3783
  %v3785 = vrot.slane %v3784, 2
  %v3786 = vadd.f32 %v3784, %v3785
  %v3787 = vrot.slane %v3786, 1
  %v3788 = vadd.f32 %v3786, %v3787
  %v3789 = vsel %vm874, %v3707, 0.0
  %v3790 = vrot.slane %v3789, 4
  %v3791 = vadd.f32 %v3789, %v3790
  %v3792 = vrot.slane %v3791, 2
  %v3793 = vadd.f32 %v3791, %v3792
  %v3794 = vrot.slane %v3793, 1
  %v3795 = vadd.f32 %v3793, %v3794
  %v3796 = vsel %vm874, %v3708, 0.0
  %v3797 = vrot.slane %v3796, 4
  %v3798 = vadd.f32 %v3796, %v3797
  %v3799 = vrot.slane %v3798, 2
  %v3800 = vadd.f32 %v3798, %v3799
  %v3801 = vrot.slane %v3800, 1
  %v3802 = vadd.f32 %v3800, %v3801
  %v3803 = vsel %vm874, %v3709, 0.0
  %v3804 = vrot.slane %v3803, 4
  %v3805 = vadd.f32 %v3803, %v3804
  %v3806 = vrot.slane %v3805, 2
  %v3807 = vadd.f32 %v3805, %v3806
  %v3808 = vrot.slane %v3807, 1
  %v3809 = vadd.f32 %v3807, %v3808
  %v3810 = vsel %vm874, %v3710, 0.0
  %v3811 = vrot.slane %v3810, 4
  %v3812 = vadd.f32 %v3810, %v3811
  %v3813 = vrot.slane %v3812, 2
  %v3814 = vadd.f32 %v3812, %v3813
  %v3815 = vrot.slane %v3814, 1
  %v3816 = vadd.f32 %v3814, %v3815
  %v3817 = vsel %vm874, %v3711, 0.0
  %v3818 = vrot.slane %v3817, 4
  %v3819 = vadd.f32 %v3817, %v3818
  %v3820 = vrot.slane %v3819, 2
  %v3821 = vadd.f32 %v3819, %v3820
  %v3822 = vrot.slane %v3821, 1
  %v3823 = vadd.f32 %v3821, %v3822
  %v3824 = vsel %vm874, %v3712, 0.0
  %v3825 = vrot.slane %v3824, 4
  %v3826 = vadd.f32 %v3824, %v3825
  %v3827 = vrot.slane %v3826, 2
  %v3828 = vadd.f32 %v3826, %v3827
  %v3829 = vrot.slane %v3828, 1
  %v3830 = vadd.f32 %v3828, %v3829
  %v3831 = vsel %vm874, %v3713, 0.0
  %v3832 = vrot.slane %v3831, 4
  %v3833 = vadd.f32 %v3831, %v3832
  %v3834 = vrot.slane %v3833, 2
  %v3835 = vadd.f32 %v3833, %v3834
  %v3836 = vrot.slane %v3835, 1
  %v3837 = vadd.f32 %v3835, %v3836
  %v3838 = vsel %vm874, %v3714, 0.0
  %v3839 = vrot.slane %v3838, 4
  %v3840 = vadd.f32 %v3838, %v3839
  %v3841 = vrot.slane %v3840, 2
  %v3842 = vadd.f32 %v3840, %v3841
  %v3843 = vrot.slane %v3842, 1
  %v3844 = vadd.f32 %v3842, %v3843
  %v3845 = vsel %vm874, %v3715, 0.0
  %v3846 = vrot.slane %v3845, 4
  %v3847 = vadd.f32 %v3845, %v3846
  %v3848 = vrot.slane %v3847, 2
  %v3849 = vadd.f32 %v3847, %v3848
  %v3850 = vrot.slane %v3849, 1
  %v3851 = vadd.f32 %v3849, %v3850
  %v3852 = vsel %vm874, %v3716, 0.0
  %v3853 = vrot.slane %v3852, 4
  %v3854 = vadd.f32 %v3852, %v3853
  %v3855 = vrot.slane %v3854, 2
  %v3856 = vadd.f32 %v3854, %v3855
  %v3857 = vrot.slane %v3856, 1
  %v3858 = vadd.f32 %v3856, %v3857
  %v3859 = vsel %vm874, %v3717, 0.0
  %v3860 = vrot.slane %v3859, 4
  %v3861 = vadd.f32 %v3859, %v3860
  %v3862 = vrot.slane %v3861, 2
  %v3863 = vadd.f32 %v3861, %v3862
  %v3864 = vrot.slane %v3863, 1
  %v3865 = vadd.f32 %v3863, %v3864
  %v3866 = vsel %vm874, %v3718, 0.0
  %v3867 = vrot.slane %v3866, 4
  %v3868 = vadd.f32 %v3866, %v3867
  %v3869 = vrot.slane %v3868, 2
  %v3870 = vadd.f32 %v3868, %v3869
  %v3871 = vrot.slane %v3870, 1
  %v3872 = vadd.f32 %v3870, %v3871
  %v3873 = vsel %vm874, %v3719, 0.0
  %v3874 = vrot.slane %v3873, 4
  %v3875 = vadd.f32 %v3873, %v3874
  %v3876 = vrot.slane %v3875, 2
  %v3877 = vadd.f32 %v3875, %v3876
  %v3878 = vrot.slane %v3877, 1
  %v3879 = vadd.f32 %v3877, %v3878
  %v3880 = vsel %vm874, %v3720, 0.0
  %v3881 = vrot.slane %v3880, 4
  %v3882 = vadd.f32 %v3880, %v3881
  %v3883 = vrot.slane %v3882, 2
  %v3884 = vadd.f32 %v3882, %v3883
  %v3885 = vrot.slane %v3884, 1
  %v3886 = vadd.f32 %v3884, %v3885
  %v3887 = vsel %vm874, %v3721, 0.0
  %v3888 = vrot.slane %v3887, 4
  %v3889 = vadd.f32 %v3887, %v3888
  %v3890 = vrot.slane %v3889, 2
  %v3891 = vadd.f32 %v3889, %v3890
  %v3892 = vrot.slane %v3891, 1
  %v3893 = vadd.f32 %v3891, %v3892
  %v3894 = vsel %vm874, %v3722, 0.0
  %v3895 = vrot.slane %v3894, 4
  %v3896 = vadd.f32 %v3894, %v3895
  %v3897 = vrot.slane %v3896, 2
  %v3898 = vadd.f32 %v3896, %v3897
  %v3899 = vrot.slane %v3898, 1
  %v3900 = vadd.f32 %v3898, %v3899
  %v3901 = vsel %vm874, %v3723, 0.0
  %v3902 = vrot.slane %v3901, 4
  %v3903 = vadd.f32 %v3901, %v3902
  %v3904 = vrot.slane %v3903, 2
  %v3905 = vadd.f32 %v3903, %v3904
  %v3906 = vrot.slane %v3905, 1
  %v3907 = vadd.f32 %v3905, %v3906
  %v3908 = vsel %vm874, %v3724, 0.0
  %v3909 = vrot.slane %v3908, 4
  %v3910 = vadd.f32 %v3908, %v3909
  %v3911 = vrot.slane %v3910, 2
  %v3912 = vadd.f32 %v3910, %v3911
  %v3913 = vrot.slane %v3912, 1
  %v3914 = vadd.f32 %v3912, %v3913
  %v3915 = vsel %vm874, %v3725, 0.0
  %v3916 = vrot.slane %v3915, 4
  %v3917 = vadd.f32 %v3915, %v3916
  %v3918 = vrot.slane %v3917, 2
  %v3919 = vadd.f32 %v3917, %v3918
  %v3920 = vrot.slane %v3919, 1
  %v3921 = vadd.f32 %v3919, %v3920
  %v3922 = vsel %vm874, %v3726, 0.0
  %v3923 = vrot.slane %v3922, 4
  %v3924 = vadd.f32 %v3922, %v3923
  %v3925 = vrot.slane %v3924, 2
  %v3926 = vadd.f32 %v3924, %v3925
  %v3927 = vrot.slane %v3926, 1
  %v3928 = vadd.f32 %v3926, %v3927
  %v3929 = vsel %vm874, %v3727, 0.0
  %v3930 = vrot.slane %v3929, 4
  %v3931 = vadd.f32 %v3929, %v3930
  %v3932 = vrot.slane %v3931, 2
  %v3933 = vadd.f32 %v3931, %v3932
  %v3934 = vrot.slane %v3933, 1
  %v3935 = vadd.f32 %v3933, %v3934
  %v3936 = vsel %vm874, %v3728, 0.0
  %v3937 = vrot.slane %v3936, 4
  %v3938 = vadd.f32 %v3936, %v3937
  %v3939 = vrot.slane %v3938, 2
  %v3940 = vadd.f32 %v3938, %v3939
  %v3941 = vrot.slane %v3940, 1
  %v3942 = vadd.f32 %v3940, %v3941
  %v3943 = vsel %vm874, %v3729, 0.0
  %v3944 = vrot.slane %v3943, 4
  %v3945 = vadd.f32 %v3943, %v3944
  %v3946 = vrot.slane %v3945, 2
  %v3947 = vadd.f32 %v3945, %v3946
  %v3948 = vrot.slane %v3947, 1
  %v3949 = vadd.f32 %v3947, %v3948
  %v3950 = vsel %vm874, %v3730, 0.0
  %v3951 = vrot.slane %v3950, 4
  %v3952 = vadd.f32 %v3950, %v3951
  %v3953 = vrot.slane %v3952, 2
  %v3954 = vadd.f32 %v3952, %v3953
  %v3955 = vrot.slane %v3954, 1
  %v3956 = vadd.f32 %v3954, %v3955
  %v3957 = vsel %vm874, %v3731, 0.0
  %v3958 = vrot.slane %v3957, 4
  %v3959 = vadd.f32 %v3957, %v3958
  %v3960 = vrot.slane %v3959, 2
  %v3961 = vadd.f32 %v3959, %v3960
  %v3962 = vrot.slane %v3961, 1
  %v3963 = vadd.f32 %v3961, %v3962
  %v3964 = vsel %vm874, %v3732, 0.0
  %v3965 = vrot.slane %v3964, 4
  %v3966 = vadd.f32 %v3964, %v3965
  %v3967 = vrot.slane %v3966, 2
  %v3968 = vadd.f32 %v3966, %v3967
  %v3969 = vrot.slane %v3968, 1
  %v3970 = vadd.f32 %v3968, %v3969
  %v3971 = vsel %vm874, %v3733, 0.0
  %v3972 = vrot.slane %v3971, 4
  %v3973 = vadd.f32 %v3971, %v3972
  %v3974 = vrot.slane %v3973, 2
  %v3975 = vadd.f32 %v3973, %v3974
  %v3976 = vrot.slane %v3975, 1
  %v3977 = vadd.f32 %v3975, %v3976
  %v3978 = vsel %vm874, %v3734, 0.0
  %v3979 = vrot.slane %v3978, 4
  %v3980 = vadd.f32 %v3978, %v3979
  %v3981 = vrot.slane %v3980, 2
  %v3982 = vadd.f32 %v3980, %v3981
  %v3983 = vrot.slane %v3982, 1
  %v3984 = vadd.f32 %v3982, %v3983
  %v3985 = vsel %vm874, %v3735, 0.0
  %v3986 = vrot.slane %v3985, 4
  %v3987 = vadd.f32 %v3985, %v3986
  %v3988 = vrot.slane %v3987, 2
  %v3989 = vadd.f32 %v3987, %v3988
  %v3990 = vrot.slane %v3989, 1
  %v3991 = vadd.f32 %v3989, %v3990
  %v3992 = vsel %vm874, %v3736, 0.0
  %v3993 = vrot.slane %v3992, 4
  %v3994 = vadd.f32 %v3992, %v3993
  %v3995 = vrot.slane %v3994, 2
  %v3996 = vadd.f32 %v3994, %v3995
  %v3997 = vrot.slane %v3996, 1
  %v3998 = vadd.f32 %v3996, %v3997
  %v3999 = vsel %vm874, %v3737, 0.0
  %v4000 = vrot.slane %v3999, 4
  %v4001 = vadd.f32 %v3999, %v4000
  %v4002 = vrot.slane %v4001, 2
  %v4003 = vadd.f32 %v4001, %v4002
  %v4004 = vrot.slane %v4003, 1
  %v4005 = vadd.f32 %v4003, %v4004
  %v4006 = vsel %vm874, %v3738, 0.0
  %v4007 = vrot.slane %v4006, 4
  %v4008 = vadd.f32 %v4006, %v4007
  %v4009 = vrot.slane %v4008, 2
  %v4010 = vadd.f32 %v4008, %v4009
  %v4011 = vrot.slane %v4010, 1
  %v4012 = vadd.f32 %v4010, %v4011
  %v4013 = vsel %vm874, %v3739, 0.0
  %v4014 = vrot.slane %v4013, 4
  %v4015 = vadd.f32 %v4013, %v4014
  %v4016 = vrot.slane %v4015, 2
  %v4017 = vadd.f32 %v4015, %v4016
  %v4018 = vrot.slane %v4017, 1
  %v4019 = vadd.f32 %v4017, %v4018
  %v4020 = vsel %vm874, %v3740, 0.0
  %v4021 = vrot.slane %v4020, 4
  %v4022 = vadd.f32 %v4020, %v4021
  %v4023 = vrot.slane %v4022, 2
  %v4024 = vadd.f32 %v4022, %v4023
  %v4025 = vrot.slane %v4024, 1
  %v4026 = vadd.f32 %v4024, %v4025
  %v4027 = vsel %vm874, %v3741, 0.0
  %v4028 = vrot.slane %v4027, 4
  %v4029 = vadd.f32 %v4027, %v4028
  %v4030 = vrot.slane %v4029, 2
  %v4031 = vadd.f32 %v4029, %v4030
  %v4032 = vrot.slane %v4031, 1
  %v4033 = vadd.f32 %v4031, %v4032
  %v4034 = vsel %vm874, %v3742, 0.0
  %v4035 = vrot.slane %v4034, 4
  %v4036 = vadd.f32 %v4034, %v4035
  %v4037 = vrot.slane %v4036, 2
  %v4038 = vadd.f32 %v4036, %v4037
  %v4039 = vrot.slane %v4038, 1
  %v4040 = vadd.f32 %v4038, %v4039
  %v4041 = vsel %vm874, %v3743, 0.0
  %v4042 = vrot.slane %v4041, 4
  %v4043 = vadd.f32 %v4041, %v4042
  %v4044 = vrot.slane %v4043, 2
  %v4045 = vadd.f32 %v4043, %v4044
  %v4046 = vrot.slane %v4045, 1
  %v4047 = vadd.f32 %v4045, %v4046
  %v4048 = vsel %vm874, %v3744, 0.0
  %v4049 = vrot.slane %v4048, 4
  %v4050 = vadd.f32 %v4048, %v4049
  %v4051 = vrot.slane %v4050, 2
  %v4052 = vadd.f32 %v4050, %v4051
  %v4053 = vrot.slane %v4052, 1
  %v4054 = vadd.f32 %v4052, %v4053
  %v4055 = vsel %vm874, %v3745, 0.0
  %v4056 = vrot.slane %v4055, 4
  %v4057 = vadd.f32 %v4055, %v4056
  %v4058 = vrot.slane %v4057, 2
  %v4059 = vadd.f32 %v4057, %v4058
  %v4060 = vrot.slane %v4059, 1
  %v4061 = vadd.f32 %v4059, %v4060
  %v4062 = vsel %vm874, %v3746, 0.0
  %v4063 = vrot.slane %v4062, 4
  %v4064 = vadd.f32 %v4062, %v4063
  %v4065 = vrot.slane %v4064, 2
  %v4066 = vadd.f32 %v4064, %v4065
  %v4067 = vrot.slane %v4066, 1
  %v4068 = vadd.f32 %v4066, %v4067
  %v4069 = vsel %vm874, %v3747, 0.0
  %v4070 = vrot.slane %v4069, 4
  %v4071 = vadd.f32 %v4069, %v4070
  %v4072 = vrot.slane %v4071, 2
  %v4073 = vadd.f32 %v4071, %v4072
  %v4074 = vrot.slane %v4073, 1
  %v4075 = vadd.f32 %v4073, %v4074
  %v4076 = vsel %vm874, %v3748, 0.0
  %v4077 = vrot.slane %v4076, 4
  %v4078 = vadd.f32 %v4076, %v4077
  %v4079 = vrot.slane %v4078, 2
  %v4080 = vadd.f32 %v4078, %v4079
  %v4081 = vrot.slane %v4080, 1
  %v4082 = vadd.f32 %v4080, %v4081
  %v4083 = vsel %vm874, %v3749, 0.0
  %v4084 = vrot.slane %v4083, 4
  %v4085 = vadd.f32 %v4083, %v4084
  %v4086 = vrot.slane %v4085, 2
  %v4087 = vadd.f32 %v4085, %v4086
  %v4088 = vrot.slane %v4087, 1
  %v4089 = vadd.f32 %v4087, %v4088
  %v4090 = vsel %vm874, %v3750, 0.0
  %v4091 = vrot.slane %v4090, 4
  %v4092 = vadd.f32 %v4090, %v4091
  %v4093 = vrot.slane %v4092, 2
  %v4094 = vadd.f32 %v4092, %v4093
  %v4095 = vrot.slane %v4094, 1
  %v4096 = vadd.f32 %v4094, %v4095
  %v4097 = vsel %vm874, %v3751, 0.0
  %v4098 = vrot.slane %v4097, 4
  %v4099 = vadd.f32 %v4097, %v4098
  %v4100 = vrot.slane %v4099, 2
  %v4101 = vadd.f32 %v4099, %v4100
  %v4102 = vrot.slane %v4101, 1
  %v4103 = vadd.f32 %v4101, %v4102
  %v4104 = vsel %vm874, %v3752, 0.0
  %v4105 = vrot.slane %v4104, 4
  %v4106 = vadd.f32 %v4104, %v4105
  %v4107 = vrot.slane %v4106, 2
  %v4108 = vadd.f32 %v4106, %v4107
  %v4109 = vrot.slane %v4108, 1
  %v4110 = vadd.f32 %v4108, %v4109
  %v4111 = vsel %vm874, %v3753, 0.0
  %v4112 = vrot.slane %v4111, 4
  %v4113 = vadd.f32 %v4111, %v4112
  %v4114 = vrot.slane %v4113, 2
  %v4115 = vadd.f32 %v4113, %v4114
  %v4116 = vrot.slane %v4115, 1
  %v4117 = vadd.f32 %v4115, %v4116
  %v4118 = vsel %vm874, %v3754, 0.0
  %v4119 = vrot.slane %v4118, 4
  %v4120 = vadd.f32 %v4118, %v4119
  %v4121 = vrot.slane %v4120, 2
  %v4122 = vadd.f32 %v4120, %v4121
  %v4123 = vrot.slane %v4122, 1
  %v4124 = vadd.f32 %v4122, %v4123
  %v4125 = vsel %vm874, %v3755, 0.0
  %v4126 = vrot.slane %v4125, 4
  %v4127 = vadd.f32 %v4125, %v4126
  %v4128 = vrot.slane %v4127, 2
  %v4129 = vadd.f32 %v4127, %v4128
  %v4130 = vrot.slane %v4129, 1
  %v4131 = vadd.f32 %v4129, %v4130
  %v4132 = vsel %vm874, %v3756, 0.0
  %v4133 = vrot.slane %v4132, 4
  %v4134 = vadd.f32 %v4132, %v4133
  %v4135 = vrot.slane %v4134, 2
  %v4136 = vadd.f32 %v4134, %v4135
  %v4137 = vrot.slane %v4136, 1
  %v4138 = vadd.f32 %v4136, %v4137
  %v4139 = vsel %vm874, %v3757, 0.0
  %v4140 = vrot.slane %v4139, 4
  %v4141 = vadd.f32 %v4139, %v4140
  %v4142 = vrot.slane %v4141, 2
  %v4143 = vadd.f32 %v4141, %v4142
  %v4144 = vrot.slane %v4143, 1
  %v4145 = vadd.f32 %v4143, %v4144
  %v4146 = vsel %vm874, %v3758, 0.0
  %v4147 = vrot.slane %v4146, 4
  %v4148 = vadd.f32 %v4146, %v4147
  %v4149 = vrot.slane %v4148, 2
  %v4150 = vadd.f32 %v4148, %v4149
  %v4151 = vrot.slane %v4150, 1
  %v4152 = vadd.f32 %v4150, %v4151
  %v4153 = vsel %vm874, %v3759, 0.0
  %v4154 = vrot.slane %v4153, 4
  %v4155 = vadd.f32 %v4153, %v4154
  %v4156 = vrot.slane %v4155, 2
  %v4157 = vadd.f32 %v4155, %v4156
  %v4158 = vrot.slane %v4157, 1
  %v4159 = vadd.f32 %v4157, %v4158
  %v4160 = vsel %vm874, %v3760, 0.0
  %v4161 = vrot.slane %v4160, 4
  %v4162 = vadd.f32 %v4160, %v4161
  %v4163 = vrot.slane %v4162, 2
  %v4164 = vadd.f32 %v4162, %v4163
  %v4165 = vrot.slane %v4164, 1
  %v4166 = vadd.f32 %v4164, %v4165
  %v4167 = vsel %vm874, %v3761, 0.0
  %v4168 = vrot.slane %v4167, 4
  %v4169 = vadd.f32 %v4167, %v4168
  %v4170 = vrot.slane %v4169, 2
  %v4171 = vadd.f32 %v4169, %v4170
  %v4172 = vrot.slane %v4171, 1
  %v4173 = vadd.f32 %v4171, %v4172
  %v4174 = vsel %vm874, %v3762, 0.0
  %v4175 = vrot.slane %v4174, 4
  %v4176 = vadd.f32 %v4174, %v4175
  %v4177 = vrot.slane %v4176, 2
  %v4178 = vadd.f32 %v4176, %v4177
  %v4179 = vrot.slane %v4178, 1
  %v4180 = vadd.f32 %v4178, %v4179
  %v4181 = vsel %vm874, %v3763, 0.0
  %v4182 = vrot.slane %v4181, 4
  %v4183 = vadd.f32 %v4181, %v4182
  %v4184 = vrot.slane %v4183, 2
  %v4185 = vadd.f32 %v4183, %v4184
  %v4186 = vrot.slane %v4185, 1
  %v4187 = vadd.f32 %v4185, %v4186
  %v4188 = vsel %vm874, %v3764, 0.0
  %v4189 = vrot.slane %v4188, 4
  %v4190 = vadd.f32 %v4188, %v4189
  %v4191 = vrot.slane %v4190, 2
  %v4192 = vadd.f32 %v4190, %v4191
  %v4193 = vrot.slane %v4192, 1
  %v4194 = vadd.f32 %v4192, %v4193
  %v4195 = vsel %vm874, %v3765, 0.0
  %v4196 = vrot.slane %v4195, 4
  %v4197 = vadd.f32 %v4195, %v4196
  %v4198 = vrot.slane %v4197, 2
  %v4199 = vadd.f32 %v4197, %v4198
  %v4200 = vrot.slane %v4199, 1
  %v4201 = vadd.f32 %v4199, %v4200
  %v4202 = vsel %vm874, %v3766, 0.0
  %v4203 = vrot.slane %v4202, 4
  %v4204 = vadd.f32 %v4202, %v4203
  %v4205 = vrot.slane %v4204, 2
  %v4206 = vadd.f32 %v4204, %v4205
  %v4207 = vrot.slane %v4206, 1
  %v4208 = vadd.f32 %v4206, %v4207
  %v4209 = vsel %vm874, %v3767, 0.0
  %v4210 = vrot.slane %v4209, 4
  %v4211 = vadd.f32 %v4209, %v4210
  %v4212 = vrot.slane %v4211, 2
  %v4213 = vadd.f32 %v4211, %v4212
  %v4214 = vrot.slane %v4213, 1
  %v4215 = vadd.f32 %v4213, %v4214
  %vm4280 = vcmask 1041409
  %v4281 = vsel %vm4280, %v3781, %v3774
  %vm4282 = vcmask 1042434
  %v4283 = vsel %vm4282, %v3788, %v4281
  %vm4284 = vcmask 1043459
  %v4285 = vsel %vm4284, %v3795, %v4283
  %vm4286 = vcmask 1044484
  %v4287 = vsel %vm4286, %v3802, %v4285
  %vm4288 = vcmask 1045509
  %v4289 = vsel %vm4288, %v3809, %v4287
  %vm4290 = vcmask 1046534
  %v4291 = vsel %vm4290, %v3816, %v4289
  %vm4292 = vcmask 1047559
  %v4293 = vsel %vm4292, %v3823, %v4291
  %v4294 = vsel %vm4280, %v3837, %v3830
  %v4295 = vsel %vm4282, %v3844, %v4294
  %v4296 = vsel %vm4284, %v3851, %v4295
  %v4297 = vsel %vm4286, %v3858, %v4296
  %v4298 = vsel %vm4288, %v3865, %v4297
  %v4299 = vsel %vm4290, %v3872, %v4298
  %v4300 = vsel %vm4292, %v3879, %v4299
  %v4301 = vsel %vm4280, %v3893, %v3886
  %v4302 = vsel %vm4282, %v3900, %v4301
  %v4303 = vsel %vm4284, %v3907, %v4302
  %v4304 = vsel %vm4286, %v3914, %v4303
  %v4305 = vsel %vm4288, %v3921, %v4304
  %v4306 = vsel %vm4290, %v3928, %v4305
  %v4307 = vsel %vm4292, %v3935, %v4306
  %v4308 = vsel %vm4280, %v3949, %v3942
  %v4309 = vsel %vm4282, %v3956, %v4308
  %v4310 = vsel %vm4284, %v3963, %v4309
  %v4311 = vsel %vm4286, %v3970, %v4310
  %v4312 = vsel %vm4288, %v3977, %v4311
  %v4313 = vsel %vm4290, %v3984, %v4312
  %v4314 = vsel %vm4292, %v3991, %v4313
  %v4315 = vsel %vm4280, %v4005, %v3998
  %v4316 = vsel %vm4282, %v4012, %v4315
  %v4317 = vsel %vm4284, %v4019, %v4316
  %v4318 = vsel %vm4286, %v4026, %v4317
  %v4319 = vsel %vm4288, %v4033, %v4318
  %v4320 = vsel %vm4290, %v4040, %v4319
  %v4321 = vsel %vm4292, %v4047, %v4320
  %v4322 = vsel %vm4280, %v4061, %v4054
  %v4323 = vsel %vm4282, %v4068, %v4322
  %v4324 = vsel %vm4284, %v4075, %v4323
  %v4325 = vsel %vm4286, %v4082, %v4324
  %v4326 = vsel %vm4288, %v4089, %v4325
  %v4327 = vsel %vm4290, %v4096, %v4326
  %v4328 = vsel %vm4292, %v4103, %v4327
  %v4329 = vsel %vm4280, %v4117, %v4110
  %v4330 = vsel %vm4282, %v4124, %v4329
  %v4331 = vsel %vm4284, %v4131, %v4330
  %v4332 = vsel %vm4286, %v4138, %v4331
  %v4333 = vsel %vm4288, %v4145, %v4332
  %v4334 = vsel %vm4290, %v4152, %v4333
  %v4335 = vsel %vm4292, %v4159, %v4334
  %v4336 = vsel %vm4280, %v4173, %v4166
  %v4337 = vsel %vm4282, %v4180, %v4336
  %v4338 = vsel %vm4284, %v4187, %v4337
  %v4339 = vsel %vm4286, %v4194, %v4338
  %v4340 = vsel %vm4288, %v4201, %v4339
  %v4341 = vsel %vm4290, %v4208, %v4340
  %v4342 = vsel %vm4292, %v4215, %v4341
  %v4343 = vsel %vm874, %v4293, 0
  %v4345 = vsel %vm874, %v4300, 0
  %v4347 = vsel %vm874, %v4307, 0
  %v4349 = vsel %vm874, %v4314, 0
  %v4351 = vsel %vm874, %v4321, 0
  %v4353 = vsel %vm874, %v4328, 0
  %v4355 = vsel %vm874, %v4335, 0
  %v4357 = vsel %vm874, %v4342, 0
  %4359 = vmatprep.subr.mxu0 0.0
  %4360 = vmatpush1.msra.mxu0 %v138
  %4361 = vmatprep.subr.mxu0 0.0
  %4362 = vmatpush1.msra.mxu0 %v139
  %4363 = vmatprep.subr.mxu0 0.0
  %4364 = vmatpush1.msra.mxu0 0.0
  %4365 = vmatprep.subr.mxu0 0.0
  %4366 = vmatpush1.msra.mxu0 0.0
  %4367 = vmatprep.subr.mxu0 0.0
  %4368 = vmatpush1.msra.mxu0 0.0
  %4369 = vmatprep.subr.mxu0 0.0
  %4370 = vmatpush1.msra.mxu0 0.0
  %4371 = vmatprep.subr.mxu0 0.0
  %4372 = vmatpush1.msra.mxu0 0.0
  %4373 = vmatprep.subr.mxu0 0.0
  %4374 = vmatpush1.msra.mxu0 0.0
  %4375 = vmatprep.subr.mxu0 0.0
  %4376 = vmatpush1.msra.mxu0 0.0
  %4377 = vmatprep.subr.mxu0 0.0
  %4378 = vmatpush1.msra.mxu0 0.0
  %4379 = vmatprep.subr.mxu0 0.0
  %4380 = vmatpush1.msra.mxu0 0.0
  %4381 = vmatprep.subr.mxu0 0.0
  %4382 = vmatpush1.msra.mxu0 0.0
  %4383 = vmatprep.subr.mxu0 0.0
  %4384 = vmatpush1.msra.mxu0 0.0
  %4385 = vmatprep.subr.mxu0 0.0
  %4386 = vmatpush1.msra.mxu0 0.0
  %4387 = vmatprep.subr.mxu0 0.0
  %4388 = vmatpush1.msra.mxu0 0.0
  %4389 = vmatprep.subr.mxu0 0.0
  %4390 = vmatpush1.msra.mxu0 0.0
  %4391 = vmatprep.subr.mxu0 0.0
  %4392 = vmatpush1.msra.mxu0 0.0
  %4393 = vmatprep.subr.mxu0 0.0
  %4394 = vmatpush1.msra.mxu0 0.0
  %4395 = vmatprep.subr.mxu0 0.0
  %4396 = vmatpush1.msra.mxu0 0.0
  %4397 = vmatprep.subr.mxu0 0.0
  %4398 = vmatpush1.msra.mxu0 0.0
  %4399 = vmatprep.subr.mxu0 0.0
  %4400 = vmatpush1.msra.mxu0 0.0
  %4401 = vmatprep.subr.mxu0 0.0
  %4402 = vmatpush1.msra.mxu0 0.0
  %4403 = vmatprep.subr.mxu0 0.0
  %4404 = vmatpush1.msra.mxu0 0.0
  %4405 = vmatprep.subr.mxu0 0.0
  %4406 = vmatpush1.msra.mxu0 0.0
  %4407 = vmatprep.subr.mxu0 0.0
  %4408 = vmatpush1.msra.mxu0 0.0
  %4409 = vmatprep.subr.mxu0 0.0
  %4410 = vmatpush1.msra.mxu0 0.0
  %4411 = vmatprep.subr.mxu0 0.0
  %4412 = vmatpush1.msra.mxu0 0.0
  %4413 = vmatprep.subr.mxu0 0.0
  %4414 = vmatpush1.msra.mxu0 0.0
  %4415 = vmatprep.subr.mxu0 0.0
  %4416 = vmatpush1.msra.mxu0 0.0
  %4417 = vmatprep.subr.mxu0 0.0
  %4418 = vmatpush1.msra.mxu0 0.0
  %4419 = vmatprep.subr.mxu0 0.0
  %4420 = vmatpush1.msra.mxu0 0.0
  %4421 = vmatprep.subr.mxu0 0.0
  %4422 = vmatpush1.msra.mxu0 0.0
  %4423 = vmatprep.mubr.f32.mxu0 0.0
  %4424 = vmatmul.mubr.f32.gmra.mrb[0].mxu0 %v4343
  %v4425 = vpop.f32.mrb[0].mxu0
  %v4426 = vadd.f32 0.0, %v4425
  %v4427 = vpop.f32.mrb[0].mxu0
  %4428 = vmatprep.mubr.f32.mxu0 0.0
  %4429 = vmatmul.mubr.f32.gmra.mrb[0].mxu0 %v4345
  %v4430 = vpop.f32.mrb[0].mxu0
  %v4431 = vadd.f32 0.0, %v4430
  %v4432 = vpop.f32.mrb[0].mxu0
  %4433 = vmatprep.mubr.f32.mxu0 0.0
  %4434 = vmatmul.mubr.f32.gmra.mrb[0].mxu0 %v4347
  %v4435 = vpop.f32.mrb[0].mxu0
  %v4436 = vadd.f32 0.0, %v4435
  %v4437 = vpop.f32.mrb[0].mxu0
  %4438 = vmatprep.mubr.f32.mxu0 0.0
  %4439 = vmatmul.mubr.f32.gmra.mrb[0].mxu0 %v4349
  %v4440 = vpop.f32.mrb[0].mxu0
  %v4441 = vadd.f32 0.0, %v4440
  %v4442 = vpop.f32.mrb[0].mxu0
  %4443 = vmatprep.mubr.f32.mxu0 0.0
  %4444 = vmatmul.mubr.f32.gmra.mrb[0].mxu0 %v4351
  %v4445 = vpop.f32.mrb[0].mxu0
  %v4446 = vadd.f32 0.0, %v4445
  %v4447 = vpop.f32.mrb[0].mxu0
  %4448 = vmatprep.mubr.f32.mxu0 0.0
  %4449 = vmatmul.mubr.f32.gmra.mrb[0].mxu0 %v4353
  %v4450 = vpop.f32.mrb[0].mxu0
  %v4451 = vadd.f32 0.0, %v4450
  %v4452 = vpop.f32.mrb[0].mxu0
  %4453 = vmatprep.mubr.f32.mxu0 0.0
  %4454 = vmatmul.mubr.f32.gmra.mrb[0].mxu0 %v4355
  %v4455 = vpop.f32.mrb[0].mxu0
  %v4456 = vadd.f32 0.0, %v4455
  %v4457 = vpop.f32.mrb[0].mxu0
  %4458 = vmatprep.mubr.f32.mxu0 0.0
  %4459 = vmatmul.mubr.f32.gmra.mrb[0].mxu0 %v4357
  %v4460 = vpop.f32.mrb[0].mxu0
  %v4461 = vadd.f32 0.0, %v4460
  %v4462 = vpop.f32.mrb[0].mxu0
  %4463 = vdwg.mxu0
  %v4464 = vsel %vm874, %v32, 0
  %v4466 = vsel %vm874, %v33, 0
  %v4468 = vsel %vm874, %v34, 0
  %v4470 = vsel %vm874, %v35, 0
  %v4472 = vsel %vm874, %v36, 0
  %v4474 = vsel %vm874, %v37, 0
  %v4476 = vsel %vm874, %v38, 0
  %v4478 = vsel %vm874, %v39, 0
  %4480 = vmatprep.subr.mxu0 0.0
  %4481 = vmatpush1.msra.mxu0 %v136
  %4482 = vmatprep.subr.mxu0 0.0
  %4483 = vmatpush1.msra.mxu0 %v137
  %4484 = vmatprep.subr.mxu0 0.0
  %4485 = vmatpush1.msra.mxu0 0.0
  %4486 = vmatprep.subr.mxu0 0.0
  %4487 = vmatpush1.msra.mxu0 0.0
  %4488 = vmatprep.subr.mxu0 0.0
  %4489 = vmatpush1.msra.mxu0 0.0
  %4490 = vmatprep.subr.mxu0 0.0
  %4491 = vmatpush1.msra.mxu0 0.0
  %4492 = vmatprep.subr.mxu0 0.0
  %4493 = vmatpush1.msra.mxu0 0.0
  %4494 = vmatprep.subr.mxu0 0.0
  %4495 = vmatpush1.msra.mxu0 0.0
  %4496 = vmatprep.subr.mxu0 0.0
  %4497 = vmatpush1.msra.mxu0 0.0
  %4498 = vmatprep.subr.mxu0 0.0
  %4499 = vmatpush1.msra.mxu0 0.0
  %4500 = vmatprep.subr.mxu0 0.0
  %4501 = vmatpush1.msra.mxu0 0.0
  %4502 = vmatprep.subr.mxu0 0.0
  %4503 = vmatpush1.msra.mxu0 0.0
  %4504 = vmatprep.subr.mxu0 0.0
  %4505 = vmatpush1.msra.mxu0 0.0
  %4506 = vmatprep.subr.mxu0 0.0
  %4507 = vmatpush1.msra.mxu0 0.0
  %4508 = vmatprep.subr.mxu0 0.0
  %4509 = vmatpush1.msra.mxu0 0.0
  %4510 = vmatprep.subr.mxu0 0.0
  %4511 = vmatpush1.msra.mxu0 0.0
  %4512 = vmatprep.subr.mxu0 0.0
  %4513 = vmatpush1.msra.mxu0 0.0
  %4514 = vmatprep.subr.mxu0 0.0
  %4515 = vmatpush1.msra.mxu0 0.0
  %4516 = vmatprep.subr.mxu0 0.0
  %4517 = vmatpush1.msra.mxu0 0.0
  %4518 = vmatprep.subr.mxu0 0.0
  %4519 = vmatpush1.msra.mxu0 0.0
  %4520 = vmatprep.subr.mxu0 0.0
  %4521 = vmatpush1.msra.mxu0 0.0
  %4522 = vmatprep.subr.mxu0 0.0
  %4523 = vmatpush1.msra.mxu0 0.0
  %4524 = vmatprep.subr.mxu0 0.0
  %4525 = vmatpush1.msra.mxu0 0.0
  %4526 = vmatprep.subr.mxu0 0.0
  %4527 = vmatpush1.msra.mxu0 0.0
  %4528 = vmatprep.subr.mxu0 0.0
  %4529 = vmatpush1.msra.mxu0 0.0
  %4530 = vmatprep.subr.mxu0 0.0
  %4531 = vmatpush1.msra.mxu0 0.0
  %4532 = vmatprep.subr.mxu0 0.0
  %4533 = vmatpush1.msra.mxu0 0.0
  %4534 = vmatprep.subr.mxu0 0.0
  %4535 = vmatpush1.msra.mxu0 0.0
  %4536 = vmatprep.subr.mxu0 0.0
  %4537 = vmatpush1.msra.mxu0 0.0
  %4538 = vmatprep.subr.mxu0 0.0
  %4539 = vmatpush1.msra.mxu0 0.0
  %4540 = vmatprep.subr.mxu0 0.0
  %4541 = vmatpush1.msra.mxu0 0.0
  %4542 = vmatprep.subr.mxu0 0.0
  %4543 = vmatpush1.msra.mxu0 0.0
  %4544 = vmatprep.mubr.f32.mxu0 0.0
  %4545 = vmatmul.mubr.f32.gmra.mrb[0].mxu0 %v4464
  %v4546 = vpop.f32.mrb[0].mxu0
  %v4547 = vadd.f32 %v4426, %v4546
  %v4548 = vpop.f32.mrb[0].mxu0
  %4549 = vmatprep.mubr.f32.mxu0 0.0
  %4550 = vmatmul.mubr.f32.gmra.mrb[0].mxu0 %v4466
  %v4551 = vpop.f32.mrb[0].mxu0
  %v4552 = vadd.f32 %v4431, %v4551
  %v4553 = vpop.f32.mrb[0].mxu0
  %4554 = vmatprep.mubr.f32.mxu0 0.0
  %4555 = vmatmul.mubr.f32.gmra.mrb[0].mxu0 %v4468
  %v4556 = vpop.f32.mrb[0].mxu0
  %v4557 = vadd.f32 %v4436, %v4556
  %v4558 = vpop.f32.mrb[0].mxu0
  %4559 = vmatprep.mubr.f32.mxu0 0.0
  %4560 = vmatmul.mubr.f32.gmra.mrb[0].mxu0 %v4470
  %v4561 = vpop.f32.mrb[0].mxu0
  %v4562 = vadd.f32 %v4441, %v4561
  %v4563 = vpop.f32.mrb[0].mxu0
  %4564 = vmatprep.mubr.f32.mxu0 0.0
  %4565 = vmatmul.mubr.f32.gmra.mrb[0].mxu0 %v4472
  %v4566 = vpop.f32.mrb[0].mxu0
  %v4567 = vadd.f32 %v4446, %v4566
  %v4568 = vpop.f32.mrb[0].mxu0
  %4569 = vmatprep.mubr.f32.mxu0 0.0
  %4570 = vmatmul.mubr.f32.gmra.mrb[0].mxu0 %v4474
  %v4571 = vpop.f32.mrb[0].mxu0
  %v4572 = vadd.f32 %v4451, %v4571
  %v4573 = vpop.f32.mrb[0].mxu0
  %4574 = vmatprep.mubr.f32.mxu0 0.0
  %4575 = vmatmul.mubr.f32.gmra.mrb[0].mxu0 %v4476
  %v4576 = vpop.f32.mrb[0].mxu0
  %v4577 = vadd.f32 %v4456, %v4576
  %v4578 = vpop.f32.mrb[0].mxu0
  %4579 = vmatprep.mubr.f32.mxu0 0.0
  %4580 = vmatmul.mubr.f32.gmra.mrb[0].mxu0 %v4478
  %v4581 = vpop.f32.mrb[0].mxu0
  %v4582 = vadd.f32 %v4461, %v4581
  %v4583 = vpop.f32.mrb[0].mxu0
  %4584 = vdwg.mxu0
  %vm4585 = vcmask 64512
  %v4587 = vsel %vm4585, %v40, 0
  %v4590 = vsel %vm4585, %v41, 0
  %v4593 = vsel %vm4585, %v42, 0
  %v4596 = vsel %vm4585, %v43, 0
  %v4599 = vsel %vm4585, %v44, 0
  %v4602 = vsel %vm4585, %v45, 0
  %v4605 = vsel %vm4585, %v46, 0
  %v4608 = vsel %vm4585, %v47, 0
  %4610 = vmatprep.subr.mxu0 0.0
  %4611 = vmatpush1.msra.mxu0 %v140
  %4612 = vmatprep.subr.mxu0 0.0
  %4613 = vmatpush1.msra.mxu0 0.0
  %4614 = vmatprep.subr.mxu0 0.0
  %4615 = vmatpush1.msra.mxu0 0.0
  %4616 = vmatprep.subr.mxu0 0.0
  %4617 = vmatpush1.msra.mxu0 0.0
  %4618 = vmatprep.subr.mxu0 0.0
  %4619 = vmatpush1.msra.mxu0 0.0
  %4620 = vmatprep.subr.mxu0 0.0
  %4621 = vmatpush1.msra.mxu0 0.0
  %4622 = vmatprep.subr.mxu0 0.0
  %4623 = vmatpush1.msra.mxu0 0.0
  %4624 = vmatprep.subr.mxu0 0.0
  %4625 = vmatpush1.msra.mxu0 0.0
  %4626 = vmatprep.subr.mxu0 0.0
  %4627 = vmatpush1.msra.mxu0 0.0
  %4628 = vmatprep.subr.mxu0 0.0
  %4629 = vmatpush1.msra.mxu0 0.0
  %4630 = vmatprep.subr.mxu0 0.0
  %4631 = vmatpush1.msra.mxu0 0.0
  %4632 = vmatprep.subr.mxu0 0.0
  %4633 = vmatpush1.msra.mxu0 0.0
  %4634 = vmatprep.subr.mxu0 0.0
  %4635 = vmatpush1.msra.mxu0 0.0
  %4636 = vmatprep.subr.mxu0 0.0
  %4637 = vmatpush1.msra.mxu0 0.0
  %4638 = vmatprep.subr.mxu0 0.0
  %4639 = vmatpush1.msra.mxu0 0.0
  %4640 = vmatprep.subr.mxu0 0.0
  %4641 = vmatpush1.msra.mxu0 0.0
  %4642 = vmatprep.subr.mxu0 0.0
  %4643 = vmatpush1.msra.mxu0 0.0
  %4644 = vmatprep.subr.mxu0 0.0
  %4645 = vmatpush1.msra.mxu0 0.0
  %4646 = vmatprep.subr.mxu0 0.0
  %4647 = vmatpush1.msra.mxu0 0.0
  %4648 = vmatprep.subr.mxu0 0.0
  %4649 = vmatpush1.msra.mxu0 0.0
  %4650 = vmatprep.subr.mxu0 0.0
  %4651 = vmatpush1.msra.mxu0 0.0
  %4652 = vmatprep.subr.mxu0 0.0
  %4653 = vmatpush1.msra.mxu0 0.0
  %4654 = vmatprep.subr.mxu0 0.0
  %4655 = vmatpush1.msra.mxu0 0.0
  %4656 = vmatprep.subr.mxu0 0.0
  %4657 = vmatpush1.msra.mxu0 0.0
  %4658 = vmatprep.subr.mxu0 0.0
  %4659 = vmatpush1.msra.mxu0 0.0
  %4660 = vmatprep.subr.mxu0 0.0
  %4661 = vmatpush1.msra.mxu0 0.0
  %4662 = vmatprep.subr.mxu0 0.0
  %4663 = vmatpush1.msra.mxu0 0.0
  %4664 = vmatprep.subr.mxu0 0.0
  %4665 = vmatpush1.msra.mxu0 0.0
  %4666 = vmatprep.subr.mxu0 0.0
  %4667 = vmatpush1.msra.mxu0 0.0
  %4668 = vmatprep.subr.mxu0 0.0
  %4669 = vmatpush1.msra.mxu0 0.0
  %4670 = vmatprep.subr.mxu0 0.0
  %4671 = vmatpush1.msra.mxu0 0.0
  %4672 = vmatprep.subr.mxu0 0.0
  %4673 = vmatpush1.msra.mxu0 0.0
  %4674 = vmatprep.mubr.f32.mxu0 0.0
  %4675 = vmatmul.mubr.f32.gmra.mrb[0].mxu0 %v4587
  %v4676 = vpop.f32.mrb[0].mxu0
  %v4677 = vadd.f32 0.0, %v4676
  %v4678 = vpop.f32.mrb[0].mxu0
  %4679 = vmatprep.mubr.f32.mxu0 0.0
  %4680 = vmatmul.mubr.f32.gmra.mrb[0].mxu0 %v4590
  %v4681 = vpop.f32.mrb[0].mxu0
  %v4682 = vadd.f32 0.0, %v4681
  %v4683 = vpop.f32.mrb[0].mxu0
  %4684 = vmatprep.mubr.f32.mxu0 0.0
  %4685 = vmatmul.mubr.f32.gmra.mrb[0].mxu0 %v4593
  %v4686 = vpop.f32.mrb[0].mxu0
  %v4687 = vadd.f32 0.0, %v4686
  %v4688 = vpop.f32.mrb[0].mxu0
  %4689 = vmatprep.mubr.f32.mxu0 0.0
  %4690 = vmatmul.mubr.f32.gmra.mrb[0].mxu0 %v4596
  %v4691 = vpop.f32.mrb[0].mxu0
  %v4692 = vadd.f32 0.0, %v4691
  %v4693 = vpop.f32.mrb[0].mxu0
  %4694 = vmatprep.mubr.f32.mxu0 0.0
  %4695 = vmatmul.mubr.f32.gmra.mrb[0].mxu0 %v4599
  %v4696 = vpop.f32.mrb[0].mxu0
  %v4697 = vadd.f32 0.0, %v4696
  %v4698 = vpop.f32.mrb[0].mxu0
  %4699 = vmatprep.mubr.f32.mxu0 0.0
  %4700 = vmatmul.mubr.f32.gmra.mrb[0].mxu0 %v4602
  %v4701 = vpop.f32.mrb[0].mxu0
  %v4702 = vadd.f32 0.0, %v4701
  %v4703 = vpop.f32.mrb[0].mxu0
  %4704 = vmatprep.mubr.f32.mxu0 0.0
  %4705 = vmatmul.mubr.f32.gmra.mrb[0].mxu0 %v4605
  %v4706 = vpop.f32.mrb[0].mxu0
  %v4707 = vadd.f32 0.0, %v4706
  %v4708 = vpop.f32.mrb[0].mxu0
  %4709 = vmatprep.mubr.f32.mxu0 0.0
  %4710 = vmatmul.mubr.f32.gmra.mrb[0].mxu0 %v4608
  %v4711 = vpop.f32.mrb[0].mxu0
  %v4712 = vadd.f32 0.0, %v4711
  %v4713 = vpop.f32.mrb[0].mxu0
  %4714 = vdwg.mxu0
  %v4715 = vadd.f32 %v4547, %v4677
  %v4716 = vadd.f32 %v4552, %v4682
  %v4717 = vadd.f32 %v4557, %v4687
  %v4718 = vadd.f32 %v4562, %v4692
  %v4719 = vadd.f32 %v4567, %v4697
  %v4720 = vadd.f32 %v4572, %v4702
  %v4721 = vadd.f32 %v4577, %v4707
  %v4722 = vadd.f32 %v4582, %v4712
  %v4723 = vlaneseq
  %v4724 = vshrl.u32 %v4723, 7
  %v4725 = vsub.s32 0, %v4724
  %v4726 = vrot.slane %v141, %v4725
  %v4727 = vadd.f32 %v4715, %v4726
  %v4728 = vadd.f32 %v4716, %v4726
  %v4729 = vadd.f32 %v4717, %v4726
  %v4730 = vadd.f32 %v4718, %v4726
  %v4731 = vadd.f32 %v4719, %v4726
  %v4732 = vadd.f32 %v4720, %v4726
  %v4733 = vadd.f32 %v4721, %v4726
  %v4734 = vadd.f32 %v4722, %v4726
  %v4735 = vmax.f32 %v4727, 0.0
  %v4736 = vmax.f32 %v4728, 0.0
  %v4737 = vmax.f32 %v4729, 0.0
  %v4738 = vmax.f32 %v4730, 0.0
  %v4739 = vmax.f32 %v4731, 0.0
  %v4740 = vmax.f32 %v4732, 0.0
  %v4741 = vmax.f32 %v4733, 0.0
  %v4742 = vmax.f32 %v4734, 0.0
  %v4743 = vlaneseq
  %v4744 = vshrl.u32 %v4743, 7
  %v4745 = vsub.s32 0, %v4744
  %v4746 = vrot.slane %v150, %v4745
  %v4748 = vsel %vm2806, %v4735, 0
  %v4751 = vsel %vm2806, %v4736, 0
  %v4754 = vsel %vm2806, %v4737, 0
  %v4757 = vsel %vm2806, %v4738, 0
  %v4760 = vsel %vm2806, %v4739, 0
  %v4763 = vsel %vm2806, %v4740, 0
  %v4766 = vsel %vm2806, %v4741, 0
  %v4769 = vsel %vm2806, %v4742, 0
  %4771 = vmatprep.subr.mxu0 0.0
  %4772 = vmatpush1.msra.mxu0 %v142
  %4773 = vmatprep.subr.mxu0 0.0
  %4774 = vmatpush1.msra.mxu0 %v143
  %4775 = vmatprep.subr.mxu0 0.0
  %4776 = vmatpush1.msra.mxu0 %v144
  %4777 = vmatprep.subr.mxu0 0.0
  %4778 = vmatpush1.msra.mxu0 %v145
  %4779 = vmatprep.subr.mxu0 0.0
  %4780 = vmatpush1.msra.mxu0 %v146
  %4781 = vmatprep.subr.mxu0 0.0
  %4782 = vmatpush1.msra.mxu0 %v147
  %4783 = vmatprep.subr.mxu0 0.0
  %4784 = vmatpush1.msra.mxu0 %v148
  %4785 = vmatprep.subr.mxu0 0.0
  %4786 = vmatpush1.msra.mxu0 %v149
  %4787 = vmatprep.subr.mxu0 0.0
  %4788 = vmatpush1.msra.mxu0 0.0
  %4789 = vmatprep.subr.mxu0 0.0
  %4790 = vmatpush1.msra.mxu0 0.0
  %4791 = vmatprep.subr.mxu0 0.0
  %4792 = vmatpush1.msra.mxu0 0.0
  %4793 = vmatprep.subr.mxu0 0.0
  %4794 = vmatpush1.msra.mxu0 0.0
  %4795 = vmatprep.subr.mxu0 0.0
  %4796 = vmatpush1.msra.mxu0 0.0
  %4797 = vmatprep.subr.mxu0 0.0
  %4798 = vmatpush1.msra.mxu0 0.0
  %4799 = vmatprep.subr.mxu0 0.0
  %4800 = vmatpush1.msra.mxu0 0.0
  %4801 = vmatprep.subr.mxu0 0.0
  %4802 = vmatpush1.msra.mxu0 0.0
  %4803 = vmatprep.subr.mxu0 0.0
  %4804 = vmatpush1.msra.mxu0 0.0
  %4805 = vmatprep.subr.mxu0 0.0
  %4806 = vmatpush1.msra.mxu0 0.0
  %4807 = vmatprep.subr.mxu0 0.0
  %4808 = vmatpush1.msra.mxu0 0.0
  %4809 = vmatprep.subr.mxu0 0.0
  %4810 = vmatpush1.msra.mxu0 0.0
  %4811 = vmatprep.subr.mxu0 0.0
  %4812 = vmatpush1.msra.mxu0 0.0
  %4813 = vmatprep.subr.mxu0 0.0
  %4814 = vmatpush1.msra.mxu0 0.0
  %4815 = vmatprep.subr.mxu0 0.0
  %4816 = vmatpush1.msra.mxu0 0.0
  %4817 = vmatprep.subr.mxu0 0.0
  %4818 = vmatpush1.msra.mxu0 0.0
  %4819 = vmatprep.subr.mxu0 0.0
  %4820 = vmatpush1.msra.mxu0 0.0
  %4821 = vmatprep.subr.mxu0 0.0
  %4822 = vmatpush1.msra.mxu0 0.0
  %4823 = vmatprep.subr.mxu0 0.0
  %4824 = vmatpush1.msra.mxu0 0.0
  %4825 = vmatprep.subr.mxu0 0.0
  %4826 = vmatpush1.msra.mxu0 0.0
  %4827 = vmatprep.subr.mxu0 0.0
  %4828 = vmatpush1.msra.mxu0 0.0
  %4829 = vmatprep.subr.mxu0 0.0
  %4830 = vmatpush1.msra.mxu0 0.0
  %4831 = vmatprep.subr.mxu0 0.0
  %4832 = vmatpush1.msra.mxu0 0.0
  %4833 = vmatprep.subr.mxu0 0.0
  %4834 = vmatpush1.msra.mxu0 0.0
  %4835 = vmatprep.mubr.f32.mxu0 0.0
  %4836 = vmatmul.mubr.f32.gmra.mrb[0].mxu0 %v4748
  %v4837 = vpop.f32.mrb[0].mxu0
  %v4838 = vadd.f32 %v4746, %v4837
  %v4839 = vpop.f32.mrb[0].mxu0
  %4840 = vmatprep.mubr.f32.mxu0 0.0
  %4841 = vmatmul.mubr.f32.gmra.mrb[0].mxu0 %v4751
  %v4842 = vpop.f32.mrb[0].mxu0
  %v4843 = vadd.f32 %v4746, %v4842
  %v4844 = vpop.f32.mrb[0].mxu0
  %4845 = vmatprep.mubr.f32.mxu0 0.0
  %4846 = vmatmul.mubr.f32.gmra.mrb[0].mxu0 %v4754
  %v4847 = vpop.f32.mrb[0].mxu0
  %v4848 = vadd.f32 %v4746, %v4847
  %v4849 = vpop.f32.mrb[0].mxu0
  %4850 = vmatprep.mubr.f32.mxu0 0.0
  %4851 = vmatmul.mubr.f32.gmra.mrb[0].mxu0 %v4757
  %v4852 = vpop.f32.mrb[0].mxu0
  %v4853 = vadd.f32 %v4746, %v4852
  %v4854 = vpop.f32.mrb[0].mxu0
  %4855 = vmatprep.mubr.f32.mxu0 0.0
  %4856 = vmatmul.mubr.f32.gmra.mrb[0].mxu0 %v4760
  %v4857 = vpop.f32.mrb[0].mxu0
  %v4858 = vadd.f32 %v4746, %v4857
  %v4859 = vpop.f32.mrb[0].mxu0
  %4860 = vmatprep.mubr.f32.mxu0 0.0
  %4861 = vmatmul.mubr.f32.gmra.mrb[0].mxu0 %v4763
  %v4862 = vpop.f32.mrb[0].mxu0
  %v4863 = vadd.f32 %v4746, %v4862
  %v4864 = vpop.f32.mrb[0].mxu0
  %4865 = vmatprep.mubr.f32.mxu0 0.0
  %4866 = vmatmul.mubr.f32.gmra.mrb[0].mxu0 %v4766
  %v4867 = vpop.f32.mrb[0].mxu0
  %v4868 = vadd.f32 %v4746, %v4867
  %v4869 = vpop.f32.mrb[0].mxu0
  %4870 = vmatprep.mubr.f32.mxu0 0.0
  %4871 = vmatmul.mubr.f32.gmra.mrb[0].mxu0 %v4769
  %v4872 = vpop.f32.mrb[0].mxu0
  %v4873 = vadd.f32 %v4746, %v4872
  %v4874 = vpop.f32.mrb[0].mxu0
  %4875 = vdwg.mxu0
  %v4876 = vmax.f32 %v4838, 0.0
  %v4877 = vmax.f32 %v4843, 0.0
  %v4878 = vmax.f32 %v4848, 0.0
  %v4879 = vmax.f32 %v4853, 0.0
  %v4880 = vmax.f32 %v4858, 0.0
  %v4881 = vmax.f32 %v4863, 0.0
  %v4882 = vmax.f32 %v4868, 0.0
  %v4883 = vmax.f32 %v4873, 0.0
  %v4884 = vlaneseq
  %v4885 = vshrl.u32 %v4884, 7
  %v4886 = vsub.s32 0, %v4885
  %v4887 = vrot.slane %v153, %v4886
  %v4889 = vsel %vm874, %v4876, 0
  %v4892 = vsel %vm874, %v4877, 0
  %v4895 = vsel %vm874, %v4878, 0
  %v4898 = vsel %vm874, %v4879, 0
  %v4901 = vsel %vm874, %v4880, 0
  %v4904 = vsel %vm874, %v4881, 0
  %v4907 = vsel %vm874, %v4882, 0
  %v4910 = vsel %vm874, %v4883, 0
  %4912 = vmatprep.subr.mxu0 0.0
  %4913 = vmatpush1.msra.mxu0 %v151
  %4914 = vmatprep.subr.mxu0 0.0
  %4915 = vmatpush1.msra.mxu0 %v152
  %4916 = vmatprep.subr.mxu0 0.0
  %4917 = vmatpush1.msra.mxu0 0.0
  %4918 = vmatprep.subr.mxu0 0.0
  %4919 = vmatpush1.msra.mxu0 0.0
  %4920 = vmatprep.subr.mxu0 0.0
  %4921 = vmatpush1.msra.mxu0 0.0
  %4922 = vmatprep.subr.mxu0 0.0
  %4923 = vmatpush1.msra.mxu0 0.0
  %4924 = vmatprep.subr.mxu0 0.0
  %4925 = vmatpush1.msra.mxu0 0.0
  %4926 = vmatprep.subr.mxu0 0.0
  %4927 = vmatpush1.msra.mxu0 0.0
  %4928 = vmatprep.subr.mxu0 0.0
  %4929 = vmatpush1.msra.mxu0 0.0
  %4930 = vmatprep.subr.mxu0 0.0
  %4931 = vmatpush1.msra.mxu0 0.0
  %4932 = vmatprep.subr.mxu0 0.0
  %4933 = vmatpush1.msra.mxu0 0.0
  %4934 = vmatprep.subr.mxu0 0.0
  %4935 = vmatpush1.msra.mxu0 0.0
  %4936 = vmatprep.subr.mxu0 0.0
  %4937 = vmatpush1.msra.mxu0 0.0
  %4938 = vmatprep.subr.mxu0 0.0
  %4939 = vmatpush1.msra.mxu0 0.0
  %4940 = vmatprep.subr.mxu0 0.0
  %4941 = vmatpush1.msra.mxu0 0.0
  %4942 = vmatprep.subr.mxu0 0.0
  %4943 = vmatpush1.msra.mxu0 0.0
  %4944 = vmatprep.subr.mxu0 0.0
  %4945 = vmatpush1.msra.mxu0 0.0
  %4946 = vmatprep.subr.mxu0 0.0
  %4947 = vmatpush1.msra.mxu0 0.0
  %4948 = vmatprep.subr.mxu0 0.0
  %4949 = vmatpush1.msra.mxu0 0.0
  %4950 = vmatprep.subr.mxu0 0.0
  %4951 = vmatpush1.msra.mxu0 0.0
  %4952 = vmatprep.subr.mxu0 0.0
  %4953 = vmatpush1.msra.mxu0 0.0
  %4954 = vmatprep.subr.mxu0 0.0
  %4955 = vmatpush1.msra.mxu0 0.0
  %4956 = vmatprep.subr.mxu0 0.0
  %4957 = vmatpush1.msra.mxu0 0.0
  %4958 = vmatprep.subr.mxu0 0.0
  %4959 = vmatpush1.msra.mxu0 0.0
  %4960 = vmatprep.subr.mxu0 0.0
  %4961 = vmatpush1.msra.mxu0 0.0
  %4962 = vmatprep.subr.mxu0 0.0
  %4963 = vmatpush1.msra.mxu0 0.0
  %4964 = vmatprep.subr.mxu0 0.0
  %4965 = vmatpush1.msra.mxu0 0.0
  %4966 = vmatprep.subr.mxu0 0.0
  %4967 = vmatpush1.msra.mxu0 0.0
  %4968 = vmatprep.subr.mxu0 0.0
  %4969 = vmatpush1.msra.mxu0 0.0
  %4970 = vmatprep.subr.mxu0 0.0
  %4971 = vmatpush1.msra.mxu0 0.0
  %4972 = vmatprep.subr.mxu0 0.0
  %4973 = vmatpush1.msra.mxu0 0.0
  %4974 = vmatprep.subr.mxu0 0.0
  %4975 = vmatpush1.msra.mxu0 0.0
  %4976 = vmatprep.mubr.f32.mxu0 0.0
  %4977 = vmatmul.mubr.f32.gmra.mrb[0].mxu0 %v4889
  %v4978 = vpop.f32.mrb[0].mxu0
  %v4979 = vadd.f32 %v4887, %v4978
  %v4980 = vpop.f32.mrb[0].mxu0
  %4981 = vmatprep.mubr.f32.mxu0 0.0
  %4982 = vmatmul.mubr.f32.gmra.mrb[0].mxu0 %v4892
  %v4983 = vpop.f32.mrb[0].mxu0
  %v4984 = vadd.f32 %v4887, %v4983
  %v4985 = vpop.f32.mrb[0].mxu0
  %4986 = vmatprep.mubr.f32.mxu0 0.0
  %4987 = vmatmul.mubr.f32.gmra.mrb[0].mxu0 %v4895
  %v4988 = vpop.f32.mrb[0].mxu0
  %v4989 = vadd.f32 %v4887, %v4988
  %v4990 = vpop.f32.mrb[0].mxu0
  %4991 = vmatprep.mubr.f32.mxu0 0.0
  %4992 = vmatmul.mubr.f32.gmra.mrb[0].mxu0 %v4898
  %v4993 = vpop.f32.mrb[0].mxu0
  %v4994 = vadd.f32 %v4887, %v4993
  %v4995 = vpop.f32.mrb[0].mxu0
  %4996 = vmatprep.mubr.f32.mxu0 0.0
  %4997 = vmatmul.mubr.f32.gmra.mrb[0].mxu0 %v4901
  %v4998 = vpop.f32.mrb[0].mxu0
  %v4999 = vadd.f32 %v4887, %v4998
  %v5000 = vpop.f32.mrb[0].mxu0
  %5001 = vmatprep.mubr.f32.mxu0 0.0
  %5002 = vmatmul.mubr.f32.gmra.mrb[0].mxu0 %v4904
  %v5003 = vpop.f32.mrb[0].mxu0
  %v5004 = vadd.f32 %v4887, %v5003
  %v5005 = vpop.f32.mrb[0].mxu0
  %5006 = vmatprep.mubr.f32.mxu0 0.0
  %5007 = vmatmul.mubr.f32.gmra.mrb[0].mxu0 %v4907
  %v5008 = vpop.f32.mrb[0].mxu0
  %v5009 = vadd.f32 %v4887, %v5008
  %v5010 = vpop.f32.mrb[0].mxu0
  %5011 = vmatprep.mubr.f32.mxu0 0.0
  %5012 = vmatmul.mubr.f32.gmra.mrb[0].mxu0 %v4910
  %v5013 = vpop.f32.mrb[0].mxu0
  %v5014 = vadd.f32 %v4887, %v5013
  %v5015 = vpop.f32.mrb[0].mxu0
  %5016 = vdwg.mxu0
  %v5017 = vxor.u32 %v4979, 2147483648
  %v5018 = vxor.u32 %v4984, 2147483648
  %v5019 = vxor.u32 %v4989, 2147483648
  %v5020 = vxor.u32 %v4994, 2147483648
  %v5021 = vxor.u32 %v4999, 2147483648
  %v5022 = vxor.u32 %v5004, 2147483648
  %v5023 = vxor.u32 %v5009, 2147483648
  %v5024 = vxor.u32 %v5014, 2147483648
  %v5025 = vmul.f32 %v5017, 1.442695
  %v5026 = vpow.pop %v5025
  %v5027 = vmul.f32 %v5018, 1.442695
  %v5028 = vpow.pop %v5027
  %v5029 = vmul.f32 %v5019, 1.442695
  %v5030 = vpow.pop %v5029
  %v5031 = vmul.f32 %v5020, 1.442695
  %v5032 = vpow.pop %v5031
  %v5033 = vmul.f32 %v5021, 1.442695
  %v5034 = vpow.pop %v5033
  %v5035 = vmul.f32 %v5022, 1.442695
  %v5036 = vpow.pop %v5035
  %v5037 = vmul.f32 %v5023, 1.442695
  %v5038 = vpow.pop %v5037
  %v5039 = vmul.f32 %v5024, 1.442695
  %v5040 = vpow.pop %v5039
  %v5041 = vadd.f32 %v5026, 1.0
  %v5042 = vadd.f32 %v5028, 1.0
  %v5043 = vadd.f32 %v5030, 1.0
  %v5044 = vadd.f32 %v5032, 1.0
  %v5045 = vadd.f32 %v5034, 1.0
  %v5046 = vadd.f32 %v5036, 1.0
  %v5047 = vadd.f32 %v5038, 1.0
  %v5048 = vadd.f32 %v5040, 1.0
  %v5049 = vrcp.pop %v5041
  %v5050 = vmul.f32 1.0, %v5049
  %v5051 = vrcp.pop %v5042
  %v5052 = vmul.f32 1.0, %v5051
  %v5053 = vrcp.pop %v5043
  %v5054 = vmul.f32 1.0, %v5053
  %v5055 = vrcp.pop %v5044
  %v5056 = vmul.f32 1.0, %v5055
  %v5057 = vrcp.pop %v5045
  %v5058 = vmul.f32 1.0, %v5057
  %v5059 = vrcp.pop %v5046
  %v5060 = vmul.f32 1.0, %v5059
  %v5061 = vrcp.pop %v5047
  %v5062 = vmul.f32 1.0, %v5061
  %v5063 = vrcp.pop %v5048
  %v5064 = vmul.f32 1.0, %v5063
  %v5065 = vadd.f32 %v5050, %v112
  %v5066 = vadd.f32 %v5052, %v113
  %v5067 = vadd.f32 %v5054, %v114
  %v5068 = vadd.f32 %v5056, %v115
  %v5069 = vadd.f32 %v5058, %v116
  %v5070 = vadd.f32 %v5060, %v117
  %v5071 = vadd.f32 %v5062, %v118
  %v5072 = vadd.f32 %v5064, %v119
  %vm5073 = vcmask 7168
  %v5074 = vsel %vm5073, %v5065, -inf
  %v5075 = vrot.slane %v5074, 4
  %v5076 = vmax.f32 %v5074, %v5075
  %v5077 = vrot.slane %v5076, 2
  %v5078 = vmax.f32 %v5076, %v5077
  %v5079 = vrot.slane %v5078, 1
  %v5080 = vmax.f32 %v5078, %v5079
  %v5081 = vsel %vm5073, %v5066, -inf
  %v5082 = vrot.slane %v5081, 4
  %v5083 = vmax.f32 %v5081, %v5082
  %v5084 = vrot.slane %v5083, 2
  %v5085 = vmax.f32 %v5083, %v5084
  %v5086 = vrot.slane %v5085, 1
  %v5087 = vmax.f32 %v5085, %v5086
  %v5088 = vsel %vm5073, %v5067, -inf
  %v5089 = vrot.slane %v5088, 4
  %v5090 = vmax.f32 %v5088, %v5089
  %v5091 = vrot.slane %v5090, 2
  %v5092 = vmax.f32 %v5090, %v5091
  %v5093 = vrot.slane %v5092, 1
  %v5094 = vmax.f32 %v5092, %v5093
  %v5095 = vsel %vm5073, %v5068, -inf
  %v5096 = vrot.slane %v5095, 4
  %v5097 = vmax.f32 %v5095, %v5096
  %v5098 = vrot.slane %v5097, 2
  %v5099 = vmax.f32 %v5097, %v5098
  %v5100 = vrot.slane %v5099, 1
  %v5101 = vmax.f32 %v5099, %v5100
  %v5102 = vsel %vm5073, %v5069, -inf
  %v5103 = vrot.slane %v5102, 4
  %v5104 = vmax.f32 %v5102, %v5103
  %v5105 = vrot.slane %v5104, 2
  %v5106 = vmax.f32 %v5104, %v5105
  %v5107 = vrot.slane %v5106, 1
  %v5108 = vmax.f32 %v5106, %v5107
  %v5109 = vsel %vm5073, %v5070, -inf
  %v5110 = vrot.slane %v5109, 4
  %v5111 = vmax.f32 %v5109, %v5110
  %v5112 = vrot.slane %v5111, 2
  %v5113 = vmax.f32 %v5111, %v5112
  %v5114 = vrot.slane %v5113, 1
  %v5115 = vmax.f32 %v5113, %v5114
  %v5116 = vsel %vm5073, %v5071, -inf
  %v5117 = vrot.slane %v5116, 4
  %v5118 = vmax.f32 %v5116, %v5117
  %v5119 = vrot.slane %v5118, 2
  %v5120 = vmax.f32 %v5118, %v5119
  %v5121 = vrot.slane %v5120, 1
  %v5122 = vmax.f32 %v5120, %v5121
  %v5123 = vsel %vm5073, %v5072, -inf
  %v5124 = vrot.slane %v5123, 4
  %v5125 = vmax.f32 %v5123, %v5124
  %v5126 = vrot.slane %v5125, 2
  %v5127 = vmax.f32 %v5125, %v5126
  %v5128 = vrot.slane %v5127, 1
  %v5129 = vmax.f32 %v5127, %v5128
  %v5130 = vsub.f32 %v5065, %v5080
  %v5131 = vsub.f32 %v5066, %v5087
  %v5132 = vsub.f32 %v5067, %v5094
  %v5133 = vsub.f32 %v5068, %v5101
  %v5134 = vsub.f32 %v5069, %v5108
  %v5135 = vsub.f32 %v5070, %v5115
  %v5136 = vsub.f32 %v5071, %v5122
  %v5137 = vsub.f32 %v5072, %v5129
  %v5138 = vmul.f32 %v5130, 1.442695
  %v5139 = vpow.pop %v5138
  %v5140 = vmul.f32 %v5131, 1.442695
  %v5141 = vpow.pop %v5140
  %v5142 = vmul.f32 %v5132, 1.442695
  %v5143 = vpow.pop %v5142
  %v5144 = vmul.f32 %v5133, 1.442695
  %v5145 = vpow.pop %v5144
  %v5146 = vmul.f32 %v5134, 1.442695
  %v5147 = vpow.pop %v5146
  %v5148 = vmul.f32 %v5135, 1.442695
  %v5149 = vpow.pop %v5148
  %v5150 = vmul.f32 %v5136, 1.442695
  %v5151 = vpow.pop %v5150
  %v5152 = vmul.f32 %v5137, 1.442695
  %v5153 = vpow.pop %v5152
  %v5154 = vsel %vm5073, %v5139, 0.0
  %v5155 = vrot.slane %v5154, 4
  %v5156 = vadd.f32 %v5154, %v5155
  %v5157 = vrot.slane %v5156, 2
  %v5158 = vadd.f32 %v5156, %v5157
  %v5159 = vrot.slane %v5158, 1
  %v5160 = vadd.f32 %v5158, %v5159
  %v5161 = vsel %vm5073, %v5141, 0.0
  %v5162 = vrot.slane %v5161, 4
  %v5163 = vadd.f32 %v5161, %v5162
  %v5164 = vrot.slane %v5163, 2
  %v5165 = vadd.f32 %v5163, %v5164
  %v5166 = vrot.slane %v5165, 1
  %v5167 = vadd.f32 %v5165, %v5166
  %v5168 = vsel %vm5073, %v5143, 0.0
  %v5169 = vrot.slane %v5168, 4
  %v5170 = vadd.f32 %v5168, %v5169
  %v5171 = vrot.slane %v5170, 2
  %v5172 = vadd.f32 %v5170, %v5171
  %v5173 = vrot.slane %v5172, 1
  %v5174 = vadd.f32 %v5172, %v5173
  %v5175 = vsel %vm5073, %v5145, 0.0
  %v5176 = vrot.slane %v5175, 4
  %v5177 = vadd.f32 %v5175, %v5176
  %v5178 = vrot.slane %v5177, 2
  %v5179 = vadd.f32 %v5177, %v5178
  %v5180 = vrot.slane %v5179, 1
  %v5181 = vadd.f32 %v5179, %v5180
  %v5182 = vsel %vm5073, %v5147, 0.0
  %v5183 = vrot.slane %v5182, 4
  %v5184 = vadd.f32 %v5182, %v5183
  %v5185 = vrot.slane %v5184, 2
  %v5186 = vadd.f32 %v5184, %v5185
  %v5187 = vrot.slane %v5186, 1
  %v5188 = vadd.f32 %v5186, %v5187
  %v5189 = vsel %vm5073, %v5149, 0.0
  %v5190 = vrot.slane %v5189, 4
  %v5191 = vadd.f32 %v5189, %v5190
  %v5192 = vrot.slane %v5191, 2
  %v5193 = vadd.f32 %v5191, %v5192
  %v5194 = vrot.slane %v5193, 1
  %v5195 = vadd.f32 %v5193, %v5194
  %v5196 = vsel %vm5073, %v5151, 0.0
  %v5197 = vrot.slane %v5196, 4
  %v5198 = vadd.f32 %v5196, %v5197
  %v5199 = vrot.slane %v5198, 2
  %v5200 = vadd.f32 %v5198, %v5199
  %v5201 = vrot.slane %v5200, 1
  %v5202 = vadd.f32 %v5200, %v5201
  %v5203 = vsel %vm5073, %v5153, 0.0
  %v5204 = vrot.slane %v5203, 4
  %v5205 = vadd.f32 %v5203, %v5204
  %v5206 = vrot.slane %v5205, 2
  %v5207 = vadd.f32 %v5205, %v5206
  %v5208 = vrot.slane %v5207, 1
  %v5209 = vadd.f32 %v5207, %v5208
  %v5210 = vrcp.pop %v5160
  %v5211 = vmul.f32 %v5139, %v5210
  %v5212 = vrcp.pop %v5167
  %v5213 = vmul.f32 %v5141, %v5212
  %v5214 = vrcp.pop %v5174
  %v5215 = vmul.f32 %v5143, %v5214
  %v5216 = vrcp.pop %v5181
  %v5217 = vmul.f32 %v5145, %v5216
  %v5218 = vrcp.pop %v5188
  %v5219 = vmul.f32 %v5147, %v5218
  %v5220 = vrcp.pop %v5195
  %v5221 = vmul.f32 %v5149, %v5220
  %v5222 = vrcp.pop %v5202
  %v5223 = vmul.f32 %v5151, %v5222
  %v5224 = vrcp.pop %v5209
  %v5225 = vmul.f32 %v5153, %v5224
  %5226 = vst.msk [vmem:[%s9] sm:$0xff] %vm5073, %v5211
  %5227 = vst.msk [vmem:[%s9 + $0x8] sm:$0xff] %vm5073, %v5213
  %5228 = vst.msk [vmem:[%s9 + $0x10] sm:$0xff] %vm5073, %v5215
  %5229 = vst.msk [vmem:[%s9 + $0x18] sm:$0xff] %vm5073, %v5217
  %5230 = vst.msk [vmem:[%s9 + $0x20] sm:$0xff] %vm5073, %v5219
  %5231 = vst.msk [vmem:[%s9 + $0x28] sm:$0xff] %vm5073, %v5221
  %5232 = vst.msk [vmem:[%s9 + $0x30] sm:$0xff] %vm5073, %v5223
  %5233 = vst.msk [vmem:[%s9 + $0x38] sm:$0xff] %vm5073, %v5225
  // Predicated region
  $region38: #{tpu_custom_call.1} parent=0 // pred_check
    _
  $region39: #{tpu_custom_call.1} parent=0 // pred_check_branch
    %5235 = sbr.rel (0) target = $region41
  $region40: #{tpu_custom_call.1} parent=0 // pred_region
    _
  $region41: #{tpu_custom_call.1} parent=0 // pred_fallthru
    _
  // Predicated region
  $region42: #{tpu_custom_call.1} parent=0 // pred_check
    _
  $region43: #{tpu_custom_call.1} parent=0 // pred_check_branch
    %5237 = sbr.rel (0) target = $region45
  $region44: #{tpu_custom_call.1} parent=0 // pred_region
    _
  $region45: #{tpu_custom_call.1} parent=0 // pred_fallthru
    _

</llo_original>
